<compile_context>
chip_gen: v5e
topology: v5e:2x2
jax: 0.10.0
libtpu: 0.0.40
codegen_flags: <defaults>
</compile_context>

<pallas_src>
import functools
import math

import numpy as np
import jax
import jax.numpy as jnp
from jax.experimental import pallas as pl
from jax.experimental.pallas import tpu as pltpu


# ------------------------------- small helpers -------------------------------

def _round_up(x, m):
    return (x + m - 1) // m * m


@functools.lru_cache(maxsize=None)
def _vmem_limit_bytes():
    """~96 MiB on 128-MiB parts (v5e/v6e), 48 MiB on v7x, safe fallback otherwise."""
    cap = 0
    try:
        cap = int(getattr(pltpu.get_tpu_info(), "vmem_capacity_bytes", 0) or 0)
    except Exception:
        cap = 0
    if cap <= 0:
        cap = 64 * 1024 * 1024
    return int(min(cap * 3 // 4, 100 * 1024 * 1024))


def _cparams(*sems):
    return pltpu.CompilerParams(dimension_semantics=sems,
                                vmem_limit_bytes=_vmem_limit_bytes())


def _choose_tile(dim, target, unit):
    """Return (padded_dim, tile).

    If dim <= target: full-dim block (always legal).  Otherwise pad dim up to a multiple
    of `unit` and return the largest tile <= target that is a multiple of `unit` and
    divides the padded dim (never falls back to the full dimension)."""
    if dim <= target:
        return dim, dim
    padded = _round_up(dim, unit)
    t = (min(target, padded) // unit) * unit
    while t >= unit:
        if padded % t == 0:
            return padded, t
        t -= unit
    return padded, padded        # unreachable: `unit` always divides `padded`


# ----------------------------- tiled linear (x @ W + b) -----------------------------

def _linear_kernel(*refs, has_bias):
    if has_bias:
        x_ref, w_ref, b_ref, o_ref, acc_ref = refs
    else:
        x_ref, w_ref, o_ref, acc_ref = refs

    @pl.when(pl.program_id(2) == 0)
    def _init():
        acc_ref[...] = jnp.zeros_like(acc_ref)

    acc_ref[...] += jnp.dot(x_ref[...].astype(jnp.bfloat16), w_ref[...],
                            preferred_element_type=jnp.float32)

    @pl.when(pl.program_id(2) == pl.num_programs(2) - 1)
    def _fin():
        r = acc_ref[...]
        if has_bias:
            r = r + b_ref[...]
        o_ref[...] = r.astype(o_ref.dtype)


def linear(x, w, b=None, *, out_dtype=jnp.float32, tm=512, tn=512, tk=1024):
    """x: [M, K] f32/bf16, w: [K, N] (pre-cast bf16 preferred), b: [N] f32 or None."""
    M, K = x.shape
    N = w.shape[1]
    if w.dtype != jnp.bfloat16:
        w = w.astype(jnp.bfloat16)

    Mp, tm = _choose_tile(M, tm, 8)
    Np, tn = _choose_tile(N, tn, 128)
    Kp, tk = _choose_tile(K, tk, 128)
    if (Mp, Kp) != (M, K):
        x = jnp.pad(x, ((0, Mp - M), (0, Kp - K)))
    if (Kp, Np) != (K, N):
        w = jnp.pad(w, ((0, Kp - K), (0, Np - N)))

    has_bias = b is not None
    inputs = [x, w]
    in_specs = [pl.BlockSpec((tm, tk), lambda i, j, k: (i, k)),
                pl.BlockSpec((tk, tn), lambda i, j, k: (k, j))]
    if has_bias:
        if Np != N:
            b = jnp.pad(b, (0, Np - N))
        inputs.append(b.reshape(1, Np))
        in_specs.append(pl.BlockSpec((1, tn), lambda i, j, k: (0, j)))

    out = pl.pallas_call(
        functools.partial(_linear_kernel, has_bias=has_bias),
        out_shape=jax.ShapeDtypeStruct((Mp, Np), out_dtype),
        grid=(Mp // tm, Np // tn, Kp // tk),
        in_specs=in_specs,
        out_specs=pl.BlockSpec((tm, tn), lambda i, j, k: (i, j)),
        scratch_shapes=[pltpu.VMEM((tm, tn), jnp.float32)],
        compiler_params=_cparams("parallel", "parallel", "arbitrary"),
    )(*inputs)
    if (Mp, Np) != (M, N):
        out = out[:M, :N]
    return out


# ---------------- fused multi-head attention (head-major, batched heads) ------------

def _attention_kernel(*refs, scale, has_mask):
    if has_mask:
        q_ref, k_ref, v_ref, mask_ref, ctx_ref, attn_ref = refs
    else:
        q_ref, k_ref, v_ref, ctx_ref, attn_ref = refs

    q = q_ref[...]                                   # [hb, Lq, d] bf16
    k = k_ref[...]                                   # [hb, Lk, d] bf16
    v = v_ref[...]                                   # [hb, Lk, d] bf16
    s = jnp.einsum("hqd,hkd->hqk", q, k,
                   preferred_element_type=jnp.float32) * scale
    if has_mask:
        s = jnp.where(mask_ref[...][None, :, :] > 0.5, jnp.float32(-1e9), s)
    s = s - jnp.max(s, axis=-1, keepdims=True)
    e = jnp.exp(s)
    p = e * pl.reciprocal(jnp.sum(e, axis=-1, keepdims=True), approx=True)
    ctx = jnp.einsum("hqk,hkd->hqd", p.astype(jnp.bfloat16), v,
                     preferred_element_type=jnp.float32)
    ctx_ref[...] = ctx.astype(ctx_ref.dtype)
    attn_ref[...] = p


def fused_attention(q, k, v, mask=None, *, heads_per_block=None):
    """q: [B,H,Lq,d] bf16, k/v: [B,H,Lk,d] bf16, mask: [B,Lq,Lk] f32 (1.0 == masked) or None.
    Returns (ctx [B,H,Lq,d] bf16, attn [B,H,Lq,Lk] f32)."""
    B, H, Lq, d = q.shape
    Lk = k.shape[2]
    if heads_per_block is None:
        heads_per_block = 2 if H % 2 == 0 else 1
    hb = heads_per_block
    assert H % hb == 0
    has_mask = mask is not None

    inputs = [q, k, v]
    in_specs = [pl.BlockSpec((None, hb, Lq, d), lambda b, g: (b, g, 0, 0)),
                pl.BlockSpec((None, hb, Lk, d), lambda b, g: (b, g, 0, 0)),
                pl.BlockSpec((None, hb, Lk, d), lambda b, g: (b, g, 0, 0))]
    if has_mask:
        inputs.append(mask)
        in_specs.append(pl.BlockSpec((None, Lq, Lk), lambda b, g: (b, 0, 0)))

    kern = functools.partial(_attention_kernel, scale=1.0 / math.sqrt(d),
                             has_mask=has_mask)
    ctx, attn = pl.pallas_call(
        kern,
        out_shape=(jax.ShapeDtypeStruct((B, H, Lq, d), jnp.bfloat16),
                   jax.ShapeDtypeStruct((B, H, Lq, Lk), jnp.float32)),
        grid=(B, H // hb),
        in_specs=in_specs,
        out_specs=(pl.BlockSpec((None, hb, Lq, d), lambda b, g: (b, g, 0, 0)),
                   pl.BlockSpec((None, hb, Lq, Lk), lambda b, g: (b, g, 0, 0))),
        compiler_params=_cparams("parallel", "parallel"),
    )(*inputs)
    return ctx, attn


# --------------------- fused W_O projection + residual + LayerNorm ------------------

def _o_add_ln_kernel(ctx_ref, wo_ref, bo_ref, res_ref, o_ref, *, eps):
    y = jnp.dot(ctx_ref[...].astype(jnp.bfloat16), wo_ref[...],
                preferred_element_type=jnp.float32) + bo_ref[...]
    z = y + res_ref[...]
    mu = jnp.mean(z, axis=-1, keepdims=True)
    var = jnp.mean((z - mu) ** 2, axis=-1, keepdims=True)
    o_ref[...] = (z - mu) * jax.lax.rsqrt(var + eps)


def o_add_layernorm(ctx, wo, bo, residual, *, eps=1e-5, tm=512):
    M, Hd = ctx.shape
    D = wo.shape[1]
    if wo.dtype != jnp.bfloat16:
        wo = wo.astype(jnp.bfloat16)
    Mp, tm = _choose_tile(M, tm, 8)
    if Mp != M:
        ctx = jnp.pad(ctx, ((0, Mp - M), (0, 0)))
        residual = jnp.pad(residual, ((0, Mp - M), (0, 0)))
    out = pl.pallas_call(
        functools.partial(_o_add_ln_kernel, eps=eps),
        out_shape=jax.ShapeDtypeStruct((Mp, D), jnp.float32),
        grid=(Mp // tm,),
        in_specs=[pl.BlockSpec((tm, Hd), lambda i: (i, 0)),
                  pl.BlockSpec((Hd, D), lambda i: (0, 0)),
                  pl.BlockSpec((1, D), lambda i: (0, 0)),
                  pl.BlockSpec((tm, D), lambda i: (i, 0))],
        out_specs=pl.BlockSpec((tm, D), lambda i: (i, 0)),
        compiler_params=_cparams("parallel"),
    )(ctx, wo, bo.reshape(1, D), residual)
    if Mp != M:
        out = out[:M]
    return out


# -------------- fused position-wise FFN (+ residual + LayerNorm), F-tiled -----------

def _ffn_kernel(x_ref, w1_ref, b1_ref, w2_ref, b2_ref, o_ref, acc_ref, *, eps):
    f = pl.program_id(1)

    @pl.when(f == 0)
    def _init():
        acc_ref[...] = jnp.zeros_like(acc_ref)

    x = x_ref[...]
    h = jnp.dot(x.astype(jnp.bfloat16), w1_ref[...],
                preferred_element_type=jnp.float32) + b1_ref[...]
    h = jnp.maximum(h, 0.0).astype(jnp.bfloat16)          # relu intermediate in bf16
    acc_ref[...] += jnp.dot(h, w2_ref[...], preferred_element_type=jnp.float32)

    @pl.when(f == pl.num_programs(1) - 1)
    def _fin():
        z = acc_ref[...] + b2_ref[...] + x                 # residual = FFN input
        mu = jnp.mean(z, axis=-1, keepdims=True)
        var = jnp.mean((z - mu) ** 2, axis=-1, keepdims=True)
        o_ref[...] = (z - mu) * jax.lax.rsqrt(var + eps)


def poswise_ffn(x3, w1, b1, w2, b2, *, eps=1e-5, tm=256, tf=512):
    """x3: [B, L, D]; conv1d(kernel=1) == per-position linear."""
    B, L, D = x3.shape
    F = w1.shape[1]
    M = B * L
    x = x3.reshape(M, D)
    if w1.dtype != jnp.bfloat16:
        w1 = w1.astype(jnp.bfloat16)
    if w2.dtype != jnp.bfloat16:
        w2 = w2.astype(jnp.bfloat16)

    Mp, tm = _choose_tile(M, tm, 8)
    Fp, tf = _choose_tile(F, tf, 128)
    if Mp != M:
        x = jnp.pad(x, ((0, Mp - M), (0, 0)))
    if Fp != F:
        w1 = jnp.pad(w1, ((0, 0), (0, Fp - F)))
        b1 = jnp.pad(b1, (0, Fp - F))
        w2 = jnp.pad(w2, ((0, Fp - F), (0, 0)))

    out = pl.pallas_call(
        functools.partial(_ffn_kernel, eps=eps),
        out_shape=jax.ShapeDtypeStruct((Mp, D), jnp.float32),
        grid=(Mp // tm, Fp // tf),
        in_specs=[pl.BlockSpec((tm, D), lambda i, f: (i, 0)),
                  pl.BlockSpec((D, tf), lambda i, f: (0, f)),
                  pl.BlockSpec((1, tf), lambda i, f: (0, f)),
                  pl.BlockSpec((tf, D), lambda i, f: (f, 0)),
                  pl.BlockSpec((1, D), lambda i, f: (0, 0))],
        out_specs=pl.BlockSpec((tm, D), lambda i, f: (i, 0)),
        scratch_shapes=[pltpu.VMEM((tm, D), jnp.float32)],
        compiler_params=_cparams("parallel", "arbitrary"),
    )(x, w1, b1.reshape(1, Fp), w2, b2.reshape(1, D))
    if Mp != M:
        out = out[:M]
    return out.reshape(B, L, D)


# --------------------------- model building blocks -------------------------

def self_attention_block(x3, mask, p, n_heads, d):
    """x3: [B, L, D]  mask: [B, L, L] float (1=mask) or None (all-False -> skipped)."""
    B, L, D = x3.shape
    Hd = n_heads * d
    x2 = x3.reshape(B * L, D)
    qkv = linear(x2, p["Wqkv"], p["bqkv"], out_dtype=jnp.bfloat16)     # [B*L, 3*Hd] bf16
    qkv = qkv.reshape(B, L, 3, n_heads, d).transpose(2, 0, 3, 1, 4)    # [3, B, H, L, d]
    ctx, attn = fused_attention(qkv[0], qkv[1], qkv[2], mask)
    # TODO(synk): dropout omitted (inference / eval semantics)
    ctx2 = ctx.transpose(0, 2, 1, 3).reshape(B * L, Hd)                # bf16, lane-dense
    out = o_add_layernorm(ctx2, p["Wo"], p["bo"], x2)
    return out.reshape(B, L, D), attn


def cross_attention_block(q3, kv3, p, n_heads, d):
    """q3: [B, Lq, Dq] (decoder)  kv3: [B, Lk, Dk] (encoder).  Mask all-False -> skipped."""
    B, Lq, Dq = q3.shape
    Lk, Dk = kv3.shape[1], kv3.shape[2]
    Hd = n_heads * d
    q2 = q3.reshape(B * Lq, Dq)
    q = linear(q2, p["Wq"], p["bq"], out_dtype=jnp.bfloat16)
    q = q.reshape(B, Lq, n_heads, d).transpose(0, 2, 1, 3)             # [B, H, Lq, d]
    kv = linear(kv3.reshape(B * Lk, Dk), p["Wkv"], p["bkv"], out_dtype=jnp.bfloat16)
    kv = kv.reshape(B, Lk, 2, n_heads, d).transpose(2, 0, 3, 1, 4)     # [2, B, H, Lk, d]
    ctx, attn = fused_attention(q, kv[0], kv[1], None)
    ctx2 = ctx.transpose(0, 2, 1, 3).reshape(B * Lq, Hd)
    out = o_add_layernorm(ctx2, p["Wo"], p["bo"], q2)
    return out.reshape(B, Lq, Dq), attn


# -------------------------- parameter construction -------------------------

def _normal(key, shape, scale=0.05):
    return jax.random.normal(key, shape, jnp.float32) * scale


def init_mha_params(key, q_dim, k_dim, qkv_dim, n_heads):
    ks = jax.random.split(key, 8)
    hd = qkv_dim * n_heads
    return dict(
        Wq=_normal(ks[0], (q_dim, hd)), bq=_normal(ks[1], (hd,)),
        Wk=_normal(ks[2], (k_dim, hd)), bk=_normal(ks[3], (hd,)),
        Wv=_normal(ks[4], (k_dim, hd)), bv=_normal(ks[5], (hd,)),
        Wo=_normal(ks[6], (hd, q_dim)), bo=_normal(ks[7], (q_dim,)),
    )


def init_ffn_params(key, embed_dim, d_ff):
    ks = jax.random.split(key, 4)
    return dict(
        W1=_normal(ks[0], (embed_dim, d_ff)), b1=_normal(ks[1], (d_ff,)),
        W2=_normal(ks[2], (d_ff, embed_dim)), b2=_normal(ks[3], (embed_dim,)),
    )


def decoder_pos_table(n_pos, embed_dim):
    tab = np.array([[pos / np.power(10000, 2 * (j // 2) / embed_dim)
                     for j in range(embed_dim)] for pos in range(n_pos)])
    tab[:, 0::2] = np.sin(tab[:, 0::2])
    tab[:, 1::2] = np.cos(tab[:, 1::2])
    return jnp.asarray(tab, dtype=jnp.float32)


def encoder_pos_table(n_pos, enc_dim, grid_side):
    half = enc_dim // 2
    tab = np.zeros((n_pos, enc_dim), dtype=np.float64)
    for pos in range(n_pos):
        x, y = pos % grid_side, pos // grid_side
        for j in range(half):
            x_enc = x / np.power(10000, j / half)
            y_enc = y / np.power(10000, j / half)
            if j % 2 == 0:
                tab[pos, j] = np.sin(x_enc)
                tab[pos, half + j] = np.cos(y_enc)
            else:
                tab[pos, j] = np.cos(x_enc)
                tab[pos, half + j] = np.sin(y_enc)
    return jnp.asarray(tab, dtype=jnp.float32)


def init_transformer_params(key, cfg):
    keys = jax.random.split(key, 4 + cfg["enc_layers"] + cfg["dec_layers"])
    enc_layers, dec_layers = [], []
    kidx = 0
    for _ in range(cfg["enc_layers"]):
        ks = jax.random.split(keys[kidx], 2)
        kidx += 1
        enc_layers.append(dict(
            attn=init_mha_params(ks[0], cfg["enc_dim"], cfg["enc_dim"],
                                 cfg["qkv_dim"], cfg["n_heads"]),
            ffn=init_ffn_params(ks[1], cfg["enc_dim"], cfg["d_ff_enc"])))
    for _ in range(cfg["dec_layers"]):
        ks = jax.random.split(keys[kidx], 3)
        kidx += 1
        dec_layers.append(dict(
            self_attn=init_mha_params(ks[0], cfg["embed_dim"], cfg["embed_dim"],
                                      cfg["qkv_dim"], cfg["n_heads"]),
            enc_attn=init_mha_params(ks[1], cfg["embed_dim"], cfg["enc_dim"],
                                     cfg["qkv_dim"], cfg["n_heads"]),
            ffn=init_ffn_params(ks[2], cfg["embed_dim"], cfg["d_ff_dec"])))
    tgt_emb = _normal(keys[kidx], (cfg["vocab_size"], cfg["embed_dim"]), 0.1)
    tgt_emb = tgt_emb.at[0].set(0.0)                       # padding_idx=0
    proj_w = _normal(keys[kidx + 1], (cfg["embed_dim"], cfg["vocab_size"]))
    return dict(
        enc_layers=enc_layers,
        dec_layers=dec_layers,
        tgt_emb=tgt_emb,
        proj_w=proj_w,
        enc_pos=encoder_pos_table(cfg["num_pixels"], cfg["enc_dim"], cfg["grid_side"]),
        dec_pos=decoder_pos_table(cfg["seq_len"], cfg["embed_dim"]),
    )


def prepare_for_inference(raw, cfg):
    """One-time weight fusion / bf16 cast / vocab padding (no per-forward HBM copies)."""
    def prep_self(p):
        return dict(
            Wqkv=jnp.concatenate([p["Wq"], p["Wk"], p["Wv"]], axis=1).astype(jnp.bfloat16),
            bqkv=jnp.concatenate([p["bq"], p["bk"], p["bv"]]),
            Wo=p["Wo"].astype(jnp.bfloat16), bo=p["bo"])

    def prep_cross(p):
        return dict(
            Wq=p["Wq"].astype(jnp.bfloat16), bq=p["bq"],
            Wkv=jnp.concatenate([p["Wk"], p["Wv"]], axis=1).astype(jnp.bfloat16),
            bkv=jnp.concatenate([p["bk"], p["bv"]]),
            Wo=p["Wo"].astype(jnp.bfloat16), bo=p["bo"])

    def prep_ffn(p):
        return dict(W1=p["W1"].astype(jnp.bfloat16), b1=p["b1"],
                    W2=p["W2"].astype(jnp.bfloat16), b2=p["b2"])

    V = cfg["vocab_size"]
    Vp = _round_up(V, 512)                       # lane-friendly tiles for the vocab matmul
    proj_w = raw["proj_w"].astype(jnp.bfloat16)
    if Vp != V:
        proj_w = jnp.pad(proj_w, ((0, 0), (0, Vp - V)))

    return dict(
        enc_layers=[dict(attn=prep_self(l["attn"]), ffn=prep_ffn(l["ffn"]))
                    for l in raw["enc_layers"]],
        dec_layers=[dict(self_attn=prep_self(l["self_attn"]),
                         enc_attn=prep_cross(l["enc_attn"]),
                         ffn=prep_ffn(l["ffn"])) for l in raw["dec_layers"]],
        tgt_emb=raw["tgt_emb"],
        proj_w=proj_w,
        enc_pos=raw["enc_pos"],
        dec_pos=raw["dec_pos"],
    )


# ------------------------------ full forward --------------------------------

def transformer_forward(enc_inputs, encoded_captions, params, cfg):
    B = enc_inputs.shape[0]
    enc_dim = enc_inputs.shape[-1]
    enc_inputs = enc_inputs.reshape(B, -1, enc_dim)        # [B, P, C] (ByPixel)
    P = enc_inputs.shape[1]
    H, d = cfg["n_heads"], cfg["qkv_dim"]

    # ---------------- Encoder ----------------
    x = enc_inputs + params["enc_pos"][None, :P, :]
    enc_self_attns = []
    for lp in params["enc_layers"]:
        # encoder self-attn mask is all-False -> unmasked kernel variant (no mask DMA)
        x, a = self_attention_block(x, None, lp["attn"], H, d)
        x = poswise_ffn(x, lp["ffn"]["W1"], lp["ffn"]["b1"],
                        lp["ffn"]["W2"], lp["ffn"]["b2"])
        enc_self_attns.append(a)
    encoder_out = x

    # ---------------- Decoder ----------------
    L = encoded_captions.shape[1]
    dec = jnp.take(params["tgt_emb"], encoded_captions, axis=0) \
        + params["dec_pos"][None, :L, :]
    # TODO(synk): decoder input dropout omitted (inference / eval semantics)

    pad_mask = jnp.broadcast_to((encoded_captions == 0)[:, None, :], (B, L, L))
    subseq_mask = jnp.broadcast_to(
        jnp.triu(jnp.ones((L, L), jnp.bool_), k=1)[None], (B, L, L))
    dec_self_mask = (pad_mask | subseq_mask).astype(jnp.float32)

    dec_self_attns, dec_enc_attns = [], []
    for lp in params["dec_layers"]:
        dec, sa = self_attention_block(dec, dec_self_mask, lp["self_attn"], H, d)
        # dec-enc mask is all-False -> unmasked kernel variant
        dec, ea = cross_attention_block(dec, encoder_out, lp["enc_attn"], H, d)
        dec = poswise_ffn(dec, lp["ffn"]["W1"], lp["ffn"]["b1"],
                          lp["ffn"]["W2"], lp["ffn"]["b2"])
        dec_self_attns.append(sa)
        dec_enc_attns.append(ea)

    # final projection (Linear, bias=False); proj_w is pre-padded -> slice back to vocab
    logits = linear(dec.reshape(B * L, cfg["embed_dim"]), params["proj_w"], None)
    predictions = logits[:, :cfg["vocab_size"]].reshape(B, L, cfg["vocab_size"])

    alphas = {"enc_self_attns": enc_self_attns,
              "dec_self_attns": dec_self_attns,
              "dec_enc_attns": dec_enc_attns}
    return predictions, alphas


# ---------------------------------- main ------------------------------------

if __name__ == "__main__":
    cfg = dict(
        batch=2,
        grid_side=4, num_pixels=16,   # 4x4 "pixels" (scaled down from 14x14=196)
        enc_dim=32,                   # scaled down from 2048
        embed_dim=32,                 # scaled down from 512
        seq_len=8,                    # scaled down from 52
        vocab_size=20,
        n_heads=2, qkv_dim=8,         # scaled down from 8 heads x 64
        d_ff_enc=64, d_ff_dec=64,     # scaled down from 4096 / 2048
        enc_layers=1, dec_layers=1,
    )

    root = jax.random.PRNGKey(0)
    k_param, k_feat, k_cap = jax.random.split(root, 3)

    raw_params = init_transformer_params(k_param, cfg)
    params = prepare_for_inference(raw_params, cfg)        # one-time fuse/cast/pad

    # enc_inputs: [B, Hs, Ws, C]  (ByPixel), captions: [B, L] with trailing padding
    enc_inputs = jax.random.normal(
        k_feat, (cfg["batch"], cfg["grid_side"], cfg["grid_side"], cfg["enc_dim"]),
        jnp.float32)
    captions = jax.random.randint(
        k_cap, (cfg["batch"], cfg["seq_len"]), 1, cfg["vocab_size"], jnp.int32)
    captions = captions.at[1, -2:].set(0)   # padding tokens to exercise the pad mask

    fwd = jax.jit(functools.partial(transformer_forward, cfg=cfg))
    predictions, alphas = fwd(enc_inputs, captions, params)
    jax.block_until_ready(predictions)
    for a in alphas["dec_enc_attns"]:
        jax.block_until_ready(a)

    assert predictions.shape == (cfg["batch"], cfg["seq_len"], cfg["vocab_size"])
    assert alphas["enc_self_attns"][0].shape == (
        cfg["batch"], cfg["n_heads"], cfg["num_pixels"], cfg["num_pixels"])
    assert alphas["dec_self_attns"][0].shape == (
        cfg["batch"], cfg["n_heads"], cfg["seq_len"], cfg["seq_len"])
    assert alphas["dec_enc_attns"][0].shape == (
        cfg["batch"], cfg["n_heads"], cfg["seq_len"], cfg["num_pixels"])
    assert bool(jnp.all(jnp.isfinite(predictions)))
    # attention rows should sum to ~1 (approx reciprocal in softmax)
    row_sums = jnp.sum(alphas["dec_self_attns"][0], axis=-1)
    assert bool(jnp.all(jnp.abs(row_sums - 1.0) < 1e-2))
    print("KERNEL_OK")
</pallas_src>

<mosaic_0001>
module attributes {stable_mosaic.version = 11 : i64} {
  func.func @_linear_kernel(%arg0: i32, %arg1: i32, %arg2: i32, %arg3: memref<16x32xf32, #tpu.memory_space<vmem>>, %arg4: memref<32x48xbf16, #tpu.memory_space<vmem>>, %arg5: memref<1x48xf32, #tpu.memory_space<vmem>>, %arg6: memref<16x48xbf16, #tpu.memory_space<vmem>>, %arg7: memref<16x48xf32, #tpu.memory_space<vmem>>) attributes {dimension_semantics = [#tpu.dimension_semantics<parallel>, #tpu.dimension_semantics<parallel>, #tpu.dimension_semantics<arbitrary>], iteration_bounds = array<i64: 1, 1, 1>, scalar_prefetch = 0 : i64, scratch_operands = 1 : i64, tpu.core_type = #tpu.core_type<tc>, window_params = [{transform_indices = @transform_0, window_bounds = array<i64: 16, 32>}, {transform_indices = @transform_1, window_bounds = array<i64: 32, 48>}, {transform_indices = @transform_2, window_bounds = array<i64: 1, 48>}, {transform_indices = @transform_3, window_bounds = array<i64: 16, 48>}]} {
    %c0_i32 = arith.constant 0 : i32
    %0 = arith.cmpi eq, %arg2, %c0_i32 : i32
    %1 = arith.extui %0 : i1 to i32
    %c0_i32_0 = arith.constant 0 : i32
    %2 = arith.cmpi ne, %1, %c0_i32_0 : i32
    scf.if %2 {
      %cst_10 = arith.constant 0.000000e+00 : f32
      %13 = vector.broadcast %cst_10 : f32 to vector<16x48xf32>
      %c0_11 = arith.constant 0 : index
      %c0_12 = arith.constant 0 : index
      %14 = vector.load %arg7[%c0_11, %c0_12] : memref<16x48xf32, #tpu.memory_space<vmem>>, vector<16x48xf32>
      tpu.vector_store %arg7[%c0_11, %c0_12], %13 {strides = array<i32>} : memref<16x48xf32, #tpu.memory_space<vmem>>, vector<16x48xf32>,
    } else {
    }
    %c0 = arith.constant 0 : index
    %c0_1 = arith.constant 0 : index
    %3 = vector.load %arg7[%c0, %c0_1] : memref<16x48xf32, #tpu.memory_space<vmem>>, vector<16x48xf32>
    %c0_2 = arith.constant 0 : index
    %c0_3 = arith.constant 0 : index
    %4 = vector.load %arg3[%c0_2, %c0_3] : memref<16x32xf32, #tpu.memory_space<vmem>>, vector<16x32xf32>
    %5 = arith.truncf %4 : vector<16x32xf32> to vector<16x32xbf16>
    %c0_4 = arith.constant 0 : index
    %c0_5 = arith.constant 0 : index
    %6 = vector.load %arg4[%c0_4, %c0_5] : memref<32x48xbf16, #tpu.memory_space<vmem>>, vector<32x48xbf16>
    %cst = arith.constant dense<0.000000e+00> : vector<16x48xf32>
    %7 = tpu.matmul %5, %6, %cst {dimension_numbers = #tpu.dot_dimension_numbers<[1], [0], [0], [1], [0, 0, 1, 1], [], []>} : vector<16x32xbf16>, vector<32x48xbf16>, vector<16x48xf32> -> vector<16x48xf32>
    %8 = arith.addf %3, %7 : vector<16x48xf32>
    %c0_6 = arith.constant 0 : index
    %c0_7 = arith.constant 0 : index
    %9 = vector.load %arg7[%c0_6, %c0_7] : memref<16x48xf32, #tpu.memory_space<vmem>>, vector<16x48xf32>
    tpu.vector_store %arg7[%c0_6, %c0_7], %8 {strides = array<i32>} : memref<16x48xf32, #tpu.memory_space<vmem>>, vector<16x48xf32>,
    %c0_i32_8 = arith.constant 0 : i32
    %10 = arith.cmpi eq, %arg2, %c0_i32_8 : i32
    %11 = arith.extui %10 : i1 to i32
    %c0_i32_9 = arith.constant 0 : i32
    %12 = arith.cmpi ne, %11, %c0_i32_9 : i32
    scf.if %12 {
      %c0_10 = arith.constant 0 : index
      %c0_11 = arith.constant 0 : index
      %13 = vector.load %arg7[%c0_10, %c0_11] : memref<16x48xf32, #tpu.memory_space<vmem>>, vector<16x48xf32>
      %c0_12 = arith.constant 0 : index
      %c0_13 = arith.constant 0 : index
      %14 = vector.load %arg5[%c0_12, %c0_13] : memref<1x48xf32, #tpu.memory_space<vmem>>, vector<1x48xf32>
      %15 = vector.broadcast %14 : vector<1x48xf32> to vector<16x48xf32>
      %16 = arith.addf %13, %15 : vector<16x48xf32>
      %17 = arith.truncf %16 : vector<16x48xf32> to vector<16x48xbf16>
      %c0_14 = arith.constant 0 : index
      %c0_15 = arith.constant 0 : index
      %18 = vector.load %arg6[%c0_14, %c0_15] : memref<16x48xbf16, #tpu.memory_space<vmem>>, vector<16x48xbf16>
      tpu.vector_store %arg6[%c0_14, %c0_15], %17 {strides = array<i32>} : memref<16x48xbf16, #tpu.memory_space<vmem>>, vector<16x48xbf16>,
    } else {
    }
    return
  }
  func.func @transform_0(%arg0: i32, %arg1: i32, %arg2: i32) -> (i32, i32) {
    %c0_i32 = arith.constant 0 : i32
    return %arg0, %arg2 : i32, i32
  }
  func.func @transform_1(%arg0: i32, %arg1: i32, %arg2: i32) -> (i32, i32) {
    %c0_i32 = arith.constant 0 : i32
    return %arg2, %arg1 : i32, i32
  }
  func.func @transform_2(%arg0: i32, %arg1: i32, %arg2: i32) -> (i32, i32) {
    %c0_i32 = arith.constant 0 : i32
    %c0_i32_0 = arith.constant 0 : i32
    return %c0_i32, %arg1 : i32, i32
  }
  func.func @transform_3(%arg0: i32, %arg1: i32, %arg2: i32) -> (i32, i32) {
    %c0_i32 = arith.constant 0 : i32
    return %arg0, %arg1 : i32, i32
  }
}

module attributes {stable_mosaic.version = 11 : i64} {
  func.func @_attention_kernel(%arg0: i32, %arg1: i32, %arg2: memref<1x2x8x8xbf16, #tpu.memory_space<vmem>>, %arg3: memref<1x2x8x8xbf16, #tpu.memory_space<vmem>>, %arg4: memref<1x2x8x8xbf16, #tpu.memory_space<vmem>>, %arg5: memref<1x8x8xf32, #tpu.memory_space<vmem>>, %arg6: memref<1x2x8x8xbf16, #tpu.memory_space<vmem>>, %arg7: memref<1x2x8x8xf32, #tpu.memory_space<vmem>>) attributes {dimension_semantics = [#tpu.dimension_semantics<parallel>, #tpu.dimension_semantics<parallel>], iteration_bounds = array<i64: 2, 1>, scalar_prefetch = 0 : i64, scratch_operands = 0 : i64, tpu.core_type = #tpu.core_type<tc>, window_params = [{transform_indices = @transform_0, window_bounds = array<i64: 1, 2, 8, 8>}, {transform_indices = @transform_1, window_bounds = array<i64: 1, 2, 8, 8>}, {transform_indices = @transform_2, window_bounds = array<i64: 1, 2, 8, 8>}, {transform_indices = @transform_3, window_bounds = array<i64: 1, 8, 8>}, {transform_indices = @transform_4, window_bounds = array<i64: 1, 2, 8, 8>}, {transform_indices = @transform_5, window_bounds = array<i64: 1, 2, 8, 8>}]} {
    %c0 = arith.constant 0 : index
    %c0_0 = arith.constant 0 : index
    %c0_1 = arith.constant 0 : index
    %c0_2 = arith.constant 0 : index
    %0 = vector.load %arg2[%c0, %c0_0, %c0_1, %c0_2] : memref<1x2x8x8xbf16, #tpu.memory_space<vmem>>, vector<1x2x8x8xbf16>
    %1 = vector.shape_cast %0 : vector<1x2x8x8xbf16> to vector<2x8x8xbf16>
    %c0_3 = arith.constant 0 : index
    %c0_4 = arith.constant 0 : index
    %c0_5 = arith.constant 0 : index
    %c0_6 = arith.constant 0 : index
    %2 = vector.load %arg3[%c0_3, %c0_4, %c0_5, %c0_6] : memref<1x2x8x8xbf16, #tpu.memory_space<vmem>>, vector<1x2x8x8xbf16>
    %3 = vector.shape_cast %2 : vector<1x2x8x8xbf16> to vector<2x8x8xbf16>
    %c0_7 = arith.constant 0 : index
    %c0_8 = arith.constant 0 : index
    %c0_9 = arith.constant 0 : index
    %c0_10 = arith.constant 0 : index
    %4 = vector.load %arg4[%c0_7, %c0_8, %c0_9, %c0_10] : memref<1x2x8x8xbf16, #tpu.memory_space<vmem>>, vector<1x2x8x8xbf16>
    %5 = vector.shape_cast %4 : vector<1x2x8x8xbf16> to vector<2x8x8xbf16>
    "tpu.trace_start"() <{level = 10 : i32, message = "hqd,hkd->hqk"}> : () -> ()
    %cst = arith.constant dense<0.000000e+00> : vector<2x8x8xf32>
    %6 = tpu.matmul %1, %3, %cst {dimension_numbers = #tpu.dot_dimension_numbers<[2], [2], [1], [1], [0, 0, 0, 1, 1, 1], [0], [0]>} : vector<2x8x8xbf16>, vector<2x8x8xbf16>, vector<2x8x8xf32> -> vector<2x8x8xf32>
    "tpu.trace_stop"() : () -> ()
    %cst_11 = arith.constant 0.353553385 : f32
    %7 = vector.broadcast %cst_11 : f32 to vector<2x8x8xf32>
    %8 = arith.mulf %6, %7 : vector<2x8x8xf32>
    %c0_12 = arith.constant 0 : index
    %c0_13 = arith.constant 0 : index
    %c0_14 = arith.constant 0 : index
    %9 = vector.load %arg5[%c0_12, %c0_13, %c0_14] : memref<1x8x8xf32, #tpu.memory_space<vmem>>, vector<1x8x8xf32>
    %10 = vector.shape_cast %9 : vector<1x8x8xf32> to vector<8x8xf32>
    %11 = vector.shape_cast %10 : vector<8x8xf32> to vector<1x8x8xf32>
    %cst_15 = arith.constant 5.000000e-01 : f32
    %12 = vector.broadcast %cst_15 : f32 to vector<1x8x8xf32>
    %13 = arith.cmpf ogt, %11, %12 : vector<1x8x8xf32>
    %cst_16 = arith.constant -1.000000e+09 : f32
    %14 = vector.shape_cast %13 : vector<1x8x8xi1> to vector<1x8x8xi1>
    %15 = vector.broadcast %14 : vector<1x8x8xi1> to vector<2x8x8xi1>
    %16 = vector.broadcast %cst_16 : f32 to vector<2x8x8xf32>
    %17 = arith.select %15, %16, %8 : vector<2x8x8xi1>, vector<2x8x8xf32>
    %cst_17 = arith.constant dense<0xFF800000> : vector<2x8xf32>
    %18 = vector.multi_reduction <maximumf>, %17, %cst_17 [2] : vector<2x8x8xf32> to vector<2x8xf32>
    %19 = vector.shape_cast %18 : vector<2x8xf32> to vector<2x8x1xf32>
    %20 = vector.broadcast %19 : vector<2x8x1xf32> to vector<2x8x8xf32>
    %21 = arith.subf %17, %20 : vector<2x8x8xf32>
    %22 = math.exp %21 : vector<2x8x8xf32>
    %cst_18 = arith.constant dense<0.000000e+00> : vector<2x8xf32>
    %23 = vector.multi_reduction <add>, %22, %cst_18 [2] : vector<2x8x8xf32> to vector<2x8xf32>
    %24 = vector.shape_cast %23 : vector<2x8xf32> to vector<2x8x1xf32>
    %25 = tpu.reciprocal %24 {approx = true} : vector<2x8x1xf32> -> vector<2x8x1xf32>
    %26 = vector.broadcast %25 : vector<2x8x1xf32> to vector<2x8x8xf32>
    %27 = arith.mulf %22, %26 : vector<2x8x8xf32>
    %28 = arith.truncf %27 : vector<2x8x8xf32> to vector<2x8x8xbf16>
    "tpu.trace_start"() <{level = 10 : i32, message = "hqk,hkd->hqd"}> : () -> ()
    %cst_19 = arith.constant dense<0.000000e+00> : vector<2x8x8xf32>
    %29 = tpu.matmul %28, %5, %cst_19 {dimension_numbers = #tpu.dot_dimension_numbers<[2], [1], [1], [2], [0, 0, 0, 1, 1, 2], [0], [0]>} : vector<2x8x8xbf16>, vector<2x8x8xbf16>, vector<2x8x8xf32> -> vector<2x8x8xf32>
    "tpu.trace_stop"() : () -> ()
    %30 = arith.truncf %29 : vector<2x8x8xf32> to vector<2x8x8xbf16>
    %c0_20 = arith.constant 0 : index
    %c0_21 = arith.constant 0 : index
    %c0_22 = arith.constant 0 : index
    %c0_23 = arith.constant 0 : index
    %31 = vector.load %arg6[%c0_20, %c0_21, %c0_22, %c0_23] : memref<1x2x8x8xbf16, #tpu.memory_space<vmem>>, vector<1x2x8x8xbf16>
    %32 = vector.shape_cast %31 : vector<1x2x8x8xbf16> to vector<2x8x8xbf16>
    %33 = vector.shape_cast %30 : vector<2x8x8xbf16> to vector<1x2x8x8xbf16>
    tpu.vector_store %arg6[%c0_20, %c0_21, %c0_22, %c0_23], %33 {strides = array<i32>} : memref<1x2x8x8xbf16, #tpu.memory_space<vmem>>, vector<1x2x8x8xbf16>,
    %c0_24 = arith.constant 0 : index
    %c0_25 = arith.constant 0 : index
    %c0_26 = arith.constant 0 : index
    %c0_27 = arith.constant 0 : index
    %34 = vector.load %arg7[%c0_24, %c0_25, %c0_26, %c0_27] : memref<1x2x8x8xf32, #tpu.memory_space<vmem>>, vector<1x2x8x8xf32>
    %35 = vector.shape_cast %34 : vector<1x2x8x8xf32> to vector<2x8x8xf32>
    %36 = vector.shape_cast %27 : vector<2x8x8xf32> to vector<1x2x8x8xf32>
    tpu.vector_store %arg7[%c0_24, %c0_25, %c0_26, %c0_27], %36 {strides = array<i32>} : memref<1x2x8x8xf32, #tpu.memory_space<vmem>>, vector<1x2x8x8xf32>,
    return
  }
  func.func @transform_0(%arg0: i32, %arg1: i32) -> (i32, i32, i32, i32) {
    %c0_i32 = arith.constant 0 : i32
    %c0_i32_0 = arith.constant 0 : i32
    %c0_i32_1 = arith.constant 0 : i32
    return %arg0, %arg1, %c0_i32, %c0_i32_0 : i32, i32, i32, i32
  }
  func.func @transform_1(%arg0: i32, %arg1: i32) -> (i32, i32, i32, i32) {
    %c0_i32 = arith.constant 0 : i32
    %c0_i32_0 = arith.constant 0 : i32
    %c0_i32_1 = arith.constant 0 : i32
    return %arg0, %arg1, %c0_i32, %c0_i32_0 : i32, i32, i32, i32
  }
  func.func @transform_2(%arg0: i32, %arg1: i32) -> (i32, i32, i32, i32) {
    %c0_i32 = arith.constant 0 : i32
    %c0_i32_0 = arith.constant 0 : i32
    %c0_i32_1 = arith.constant 0 : i32
    return %arg0, %arg1, %c0_i32, %c0_i32_0 : i32, i32, i32, i32
  }
  func.func @transform_3(%arg0: i32, %arg1: i32) -> (i32, i32, i32) {
    %c0_i32 = arith.constant 0 : i32
    %c0_i32_0 = arith.constant 0 : i32
    %c0_i32_1 = arith.constant 0 : i32
    return %arg0, %c0_i32, %c0_i32_0 : i32, i32, i32
  }
  func.func @transform_4(%arg0: i32, %arg1: i32) -> (i32, i32, i32, i32) {
    %c0_i32 = arith.constant 0 : i32
    %c0_i32_0 = arith.constant 0 : i32
    %c0_i32_1 = arith.constant 0 : i32
    return %arg0, %arg1, %c0_i32, %c0_i32_0 : i32, i32, i32, i32
  }
  func.func @transform_5(%arg0: i32, %arg1: i32) -> (i32, i32, i32, i32) {
    %c0_i32 = arith.constant 0 : i32
    %c0_i32_0 = arith.constant 0 : i32
    %c0_i32_1 = arith.constant 0 : i32
    return %arg0, %arg1, %c0_i32, %c0_i32_0 : i32, i32, i32, i32
  }
}

module attributes {stable_mosaic.version = 11 : i64} {
  func.func @_o_add_ln_kernel(%arg0: i32, %arg1: memref<16x16xbf16, #tpu.memory_space<vmem>>, %arg2: memref<16x32xbf16, #tpu.memory_space<vmem>>, %arg3: memref<1x32xf32, #tpu.memory_space<vmem>>, %arg4: memref<16x32xf32, #tpu.memory_space<vmem>>, %arg5: memref<16x32xf32, #tpu.memory_space<vmem>>) attributes {dimension_semantics = [#tpu.dimension_semantics<parallel>], iteration_bounds = array<i64: 1>, scalar_prefetch = 0 : i64, scratch_operands = 0 : i64, tpu.core_type = #tpu.core_type<tc>, window_params = [{transform_indices = @transform_0, window_bounds = array<i64: 16, 16>}, {pipeline_mode = #tpu.pipeline_mode<synchronous>, transform_indices = @transform_1, window_bounds = array<i64: 16, 32>}, {pipeline_mode = #tpu.pipeline_mode<synchronous>, transform_indices = @transform_2, window_bounds = array<i64: 1, 32>}, {transform_indices = @transform_3, window_bounds = array<i64: 16, 32>}, {transform_indices = @transform_4, window_bounds = array<i64: 16, 32>}]} {
    %c0 = arith.constant 0 : index
    %c0_0 = arith.constant 0 : index
    %0 = vector.load %arg1[%c0, %c0_0] : memref<16x16xbf16, #tpu.memory_space<vmem>>, vector<16x16xbf16>
    %c0_1 = arith.constant 0 : index
    %c0_2 = arith.constant 0 : index
    %1 = vector.load %arg2[%c0_1, %c0_2] : memref<16x32xbf16, #tpu.memory_space<vmem>>, vector<16x32xbf16>
    %cst = arith.constant dense<0.000000e+00> : vector<16x32xf32>
    %2 = tpu.matmul %0, %1, %cst {dimension_numbers = #tpu.dot_dimension_numbers<[1], [0], [0], [1], [0, 0, 1, 1], [], []>} : vector<16x16xbf16>, vector<16x32xbf16>, vector<16x32xf32> -> vector<16x32xf32>
    %c0_3 = arith.constant 0 : index
    %c0_4 = arith.constant 0 : index
    %3 = vector.load %arg3[%c0_3, %c0_4] : memref<1x32xf32, #tpu.memory_space<vmem>>, vector<1x32xf32>
    %4 = vector.broadcast %3 : vector<1x32xf32> to vector<16x32xf32>
    %5 = arith.addf %2, %4 : vector<16x32xf32>
    %c0_5 = arith.constant 0 : index
    %c0_6 = arith.constant 0 : index
    %6 = vector.load %arg4[%c0_5, %c0_6] : memref<16x32xf32, #tpu.memory_space<vmem>>, vector<16x32xf32>
    %7 = arith.addf %5, %6 : vector<16x32xf32>
    %cst_7 = arith.constant dense<0.000000e+00> : vector<16xf32>
    %8 = vector.multi_reduction <add>, %7, %cst_7 [1] : vector<16x32xf32> to vector<16xf32>
    %9 = vector.shape_cast %8 : vector<16xf32> to vector<16x1xf32>
    %cst_8 = arith.constant 3.200000e+01 : f32
    %10 = vector.broadcast %cst_8 : f32 to vector<16x1xf32>
    %11 = arith.divf %9, %10 : vector<16x1xf32>
    %12 = vector.broadcast %11 : vector<16x1xf32> to vector<16x32xf32>
    %13 = arith.subf %7, %12 : vector<16x32xf32>
    %14 = arith.mulf %13, %13 : vector<16x32xf32>
    %cst_9 = arith.constant dense<0.000000e+00> : vector<16xf32>
    %15 = vector.multi_reduction <add>, %14, %cst_9 [1] : vector<16x32xf32> to vector<16xf32>
    %16 = vector.shape_cast %15 : vector<16xf32> to vector<16x1xf32>
    %cst_10 = arith.constant 3.200000e+01 : f32
    %17 = vector.broadcast %cst_10 : f32 to vector<16x1xf32>
    %18 = arith.divf %16, %17 : vector<16x1xf32>
    %19 = vector.broadcast %11 : vector<16x1xf32> to vector<16x32xf32>
    %20 = arith.subf %7, %19 : vector<16x32xf32>
    %cst_11 = arith.constant 9.99999974E-6 : f32
    %21 = vector.broadcast %cst_11 : f32 to vector<16x1xf32>
    %22 = arith.addf %18, %21 : vector<16x1xf32>
    %23 = math.rsqrt %22 : vector<16x1xf32>
    %24 = vector.broadcast %23 : vector<16x1xf32> to vector<16x32xf32>
    %25 = arith.mulf %20, %24 : vector<16x32xf32>
    %c0_12 = arith.constant 0 : index
    %c0_13 = arith.constant 0 : index
    %26 = vector.load %arg5[%c0_12, %c0_13] : memref<16x32xf32, #tpu.memory_space<vmem>>, vector<16x32xf32>
    tpu.vector_store %arg5[%c0_12, %c0_13], %25 {strides = array<i32>} : memref<16x32xf32, #tpu.memory_space<vmem>>, vector<16x32xf32>,
    return
  }
  func.func @transform_0(%arg0: i32) -> (i32, i32) {
    %c0_i32 = arith.constant 0 : i32
    %c0_i32_0 = arith.constant 0 : i32
    return %arg0, %c0_i32 : i32, i32
  }
  func.func @transform_1(%arg0: i32) -> (i32, i32) {
    %c0_i32 = arith.constant 0 : i32
    %c0_i32_0 = arith.constant 0 : i32
    %c0_i32_1 = arith.constant 0 : i32
    return %c0_i32, %c0_i32_0 : i32, i32
  }
  func.func @transform_2(%arg0: i32) -> (i32, i32) {
    %c0_i32 = arith.constant 0 : i32
    %c0_i32_0 = arith.constant 0 : i32
    %c0_i32_1 = arith.constant 0 : i32
    return %c0_i32, %c0_i32_0 : i32, i32
  }
  func.func @transform_3(%arg0: i32) -> (i32, i32) {
    %c0_i32 = arith.constant 0 : i32
    %c0_i32_0 = arith.constant 0 : i32
    return %arg0, %c0_i32 : i32, i32
  }
  func.func @transform_4(%arg0: i32) -> (i32, i32) {
    %c0_i32 = arith.constant 0 : i32
    %c0_i32_0 = arith.constant 0 : i32
    return %arg0, %c0_i32 : i32, i32
  }
}

module attributes {stable_mosaic.version = 11 : i64} {
  func.func @_linear_kernel(%arg0: i32, %arg1: i32, %arg2: i32, %arg3: memref<16x32xf32, #tpu.memory_space<vmem>>, %arg4: memref<32x16xbf16, #tpu.memory_space<vmem>>, %arg5: memref<1x16xf32, #tpu.memory_space<vmem>>, %arg6: memref<16x16xbf16, #tpu.memory_space<vmem>>, %arg7: memref<16x16xf32, #tpu.memory_space<vmem>>) attributes {dimension_semantics = [#tpu.dimension_semantics<parallel>, #tpu.dimension_semantics<parallel>, #tpu.dimension_semantics<arbitrary>], iteration_bounds = array<i64: 1, 1, 1>, scalar_prefetch = 0 : i64, scratch_operands = 1 : i64, tpu.core_type = #tpu.core_type<tc>, window_params = [{transform_indices = @transform_0, window_bounds = array<i64: 16, 32>}, {transform_indices = @transform_1, window_bounds = array<i64: 32, 16>}, {transform_indices = @transform_2, window_bounds = array<i64: 1, 16>}, {transform_indices = @transform_3, window_bounds = array<i64: 16, 16>}]} {
    %c0_i32 = arith.constant 0 : i32
    %0 = arith.cmpi eq, %arg2, %c0_i32 : i32
    %1 = arith.extui %0 : i1 to i32
    %c0_i32_0 = arith.constant 0 : i32
    %2 = arith.cmpi ne, %1, %c0_i32_0 : i32
    scf.if %2 {
      %cst_10 = arith.constant 0.000000e+00 : f32
      %13 = vector.broadcast %cst_10 : f32 to vector<16x16xf32>
      %c0_11 = arith.constant 0 : index
      %c0_12 = arith.constant 0 : index
      %14 = vector.load %arg7[%c0_11, %c0_12] : memref<16x16xf32, #tpu.memory_space<vmem>>, vector<16x16xf32>
      tpu.vector_store %arg7[%c0_11, %c0_12], %13 {strides = array<i32>} : memref<16x16xf32, #tpu.memory_space<vmem>>, vector<16x16xf32>,
    } else {
    }
    %c0 = arith.constant 0 : index
    %c0_1 = arith.constant 0 : index
    %3 = vector.load %arg7[%c0, %c0_1] : memref<16x16xf32, #tpu.memory_space<vmem>>, vector<16x16xf32>
    %c0_2 = arith.constant 0 : index
    %c0_3 = arith.constant 0 : index
    %4 = vector.load %arg3[%c0_2, %c0_3] : memref<16x32xf32, #tpu.memory_space<vmem>>, vector<16x32xf32>
    %5 = arith.truncf %4 : vector<16x32xf32> to vector<16x32xbf16>
    %c0_4 = arith.constant 0 : index
    %c0_5 = arith.constant 0 : index
    %6 = vector.load %arg4[%c0_4, %c0_5] : memref<32x16xbf16, #tpu.memory_space<vmem>>, vector<32x16xbf16>
    %cst = arith.constant dense<0.000000e+00> : vector<16x16xf32>
    %7 = tpu.matmul %5, %6, %cst {dimension_numbers = #tpu.dot_dimension_numbers<[1], [0], [0], [1], [0, 0, 1, 1], [], []>} : vector<16x32xbf16>, vector<32x16xbf16>, vector<16x16xf32> -> vector<16x16xf32>
    %8 = arith.addf %3, %7 : vector<16x16xf32>
    %c0_6 = arith.constant 0 : index
    %c0_7 = arith.constant 0 : index
    %9 = vector.load %arg7[%c0_6, %c0_7] : memref<16x16xf32, #tpu.memory_space<vmem>>, vector<16x16xf32>
    tpu.vector_store %arg7[%c0_6, %c0_7], %8 {strides = array<i32>} : memref<16x16xf32, #tpu.memory_space<vmem>>, vector<16x16xf32>,
    %c0_i32_8 = arith.constant 0 : i32
    %10 = arith.cmpi eq, %arg2, %c0_i32_8 : i32
    %11 = arith.extui %10 : i1 to i32
    %c0_i32_9 = arith.constant 0 : i32
    %12 = arith.cmpi ne, %11, %c0_i32_9 : i32
    scf.if %12 {
      %c0_10 = arith.constant 0 : index
      %c0_11 = arith.constant 0 : index
      %13 = vector.load %arg7[%c0_10, %c0_11] : memref<16x16xf32, #tpu.memory_space<vmem>>, vector<16x16xf32>
      %c0_12 = arith.constant 0 : index
      %c0_13 = arith.constant 0 : index
      %14 = vector.load %arg5[%c0_12, %c0_13] : memref<1x16xf32, #tpu.memory_space<vmem>>, vector<1x16xf32>
      %15 = vector.broadcast %14 : vector<1x16xf32> to vector<16x16xf32>
      %16 = arith.addf %13, %15 : vector<16x16xf32>
      %17 = arith.truncf %16 : vector<16x16xf32> to vector<16x16xbf16>
      %c0_14 = arith.constant 0 : index
      %c0_15 = arith.constant 0 : index
      %18 = vector.load %arg6[%c0_14, %c0_15] : memref<16x16xbf16, #tpu.memory_space<vmem>>, vector<16x16xbf16>
      tpu.vector_store %arg6[%c0_14, %c0_15], %17 {strides = array<i32>} : memref<16x16xbf16, #tpu.memory_space<vmem>>, vector<16x16xbf16>,
    } else {
    }
    return
  }
  func.func @transform_0(%arg0: i32, %arg1: i32, %arg2: i32) -> (i32, i32) {
    %c0_i32 = arith.constant 0 : i32
    return %arg0, %arg2 : i32, i32
  }
  func.func @transform_1(%arg0: i32, %arg1: i32, %arg2: i32) -> (i32, i32) {
    %c0_i32 = arith.constant 0 : i32
    return %arg2, %arg1 : i32, i32
  }
  func.func @transform_2(%arg0: i32, %arg1: i32, %arg2: i32) -> (i32, i32) {
    %c0_i32 = arith.constant 0 : i32
    %c0_i32_0 = arith.constant 0 : i32
    return %c0_i32, %arg1 : i32, i32
  }
  func.func @transform_3(%arg0: i32, %arg1: i32, %arg2: i32) -> (i32, i32) {
    %c0_i32 = arith.constant 0 : i32
    return %arg0, %arg1 : i32, i32
  }
}

module attributes {stable_mosaic.version = 11 : i64} {
  func.func @_linear_kernel(%arg0: i32, %arg1: i32, %arg2: i32, %arg3: memref<32x32xf32, #tpu.memory_space<vmem>>, %arg4: memref<32x48xbf16, #tpu.memory_space<vmem>>, %arg5: memref<1x48xf32, #tpu.memory_space<vmem>>, %arg6: memref<32x48xbf16, #tpu.memory_space<vmem>>, %arg7: memref<32x48xf32, #tpu.memory_space<vmem>>) attributes {dimension_semantics = [#tpu.dimension_semantics<parallel>, #tpu.dimension_semantics<parallel>, #tpu.dimension_semantics<arbitrary>], iteration_bounds = array<i64: 1, 1, 1>, scalar_prefetch = 0 : i64, scratch_operands = 1 : i64, tpu.core_type = #tpu.core_type<tc>, window_params = [{transform_indices = @transform_0, window_bounds = array<i64: 32, 32>}, {transform_indices = @transform_1, window_bounds = array<i64: 32, 48>}, {transform_indices = @transform_2, window_bounds = array<i64: 1, 48>}, {transform_indices = @transform_3, window_bounds = array<i64: 32, 48>}]} {
    %c0_i32 = arith.constant 0 : i32
    %0 = arith.cmpi eq, %arg2, %c0_i32 : i32
    %1 = arith.extui %0 : i1 to i32
    %c0_i32_0 = arith.constant 0 : i32
    %2 = arith.cmpi ne, %1, %c0_i32_0 : i32
    scf.if %2 {
      %cst_10 = arith.constant 0.000000e+00 : f32
      %13 = vector.broadcast %cst_10 : f32 to vector<32x48xf32>
      %c0_11 = arith.constant 0 : index
      %c0_12 = arith.constant 0 : index
      %14 = vector.load %arg7[%c0_11, %c0_12] : memref<32x48xf32, #tpu.memory_space<vmem>>, vector<32x48xf32>
      tpu.vector_store %arg7[%c0_11, %c0_12], %13 {strides = array<i32>} : memref<32x48xf32, #tpu.memory_space<vmem>>, vector<32x48xf32>,
    } else {
    }
    %c0 = arith.constant 0 : index
    %c0_1 = arith.constant 0 : index
    %3 = vector.load %arg7[%c0, %c0_1] : memref<32x48xf32, #tpu.memory_space<vmem>>, vector<32x48xf32>
    %c0_2 = arith.constant 0 : index
    %c0_3 = arith.constant 0 : index
    %4 = vector.load %arg3[%c0_2, %c0_3] : memref<32x32xf32, #tpu.memory_space<vmem>>, vector<32x32xf32>
    %5 = arith.truncf %4 : vector<32x32xf32> to vector<32x32xbf16>
    %c0_4 = arith.constant 0 : index
    %c0_5 = arith.constant 0 : index
    %6 = vector.load %arg4[%c0_4, %c0_5] : memref<32x48xbf16, #tpu.memory_space<vmem>>, vector<32x48xbf16>
    %cst = arith.constant dense<0.000000e+00> : vector<32x48xf32>
    %7 = tpu.matmul %5, %6, %cst {dimension_numbers = #tpu.dot_dimension_numbers<[1], [0], [0], [1], [0, 0, 1, 1], [], []>} : vector<32x32xbf16>, vector<32x48xbf16>, vector<32x48xf32> -> vector<32x48xf32>
    %8 = arith.addf %3, %7 : vector<32x48xf32>
    %c0_6 = arith.constant 0 : index
    %c0_7 = arith.constant 0 : index
    %9 = vector.load %arg7[%c0_6, %c0_7] : memref<32x48xf32, #tpu.memory_space<vmem>>, vector<32x48xf32>
    tpu.vector_store %arg7[%c0_6, %c0_7], %8 {strides = array<i32>} : memref<32x48xf32, #tpu.memory_space<vmem>>, vector<32x48xf32>,
    %c0_i32_8 = arith.constant 0 : i32
    %10 = arith.cmpi eq, %arg2, %c0_i32_8 : i32
    %11 = arith.extui %10 : i1 to i32
    %c0_i32_9 = arith.constant 0 : i32
    %12 = arith.cmpi ne, %11, %c0_i32_9 : i32
    scf.if %12 {
      %c0_10 = arith.constant 0 : index
      %c0_11 = arith.constant 0 : index
      %13 = vector.load %arg7[%c0_10, %c0_11] : memref<32x48xf32, #tpu.memory_space<vmem>>, vector<32x48xf32>
      %c0_12 = arith.constant 0 : index
      %c0_13 = arith.constant 0 : index
      %14 = vector.load %arg5[%c0_12, %c0_13] : memref<1x48xf32, #tpu.memory_space<vmem>>, vector<1x48xf32>
      %15 = vector.broadcast %14 : vector<1x48xf32> to vector<32x48xf32>
      %16 = arith.addf %13, %15 : vector<32x48xf32>
      %17 = arith.truncf %16 : vector<32x48xf32> to vector<32x48xbf16>
      %c0_14 = arith.constant 0 : index
      %c0_15 = arith.constant 0 : index
      %18 = vector.load %arg6[%c0_14, %c0_15] : memref<32x48xbf16, #tpu.memory_space<vmem>>, vector<32x48xbf16>
      tpu.vector_store %arg6[%c0_14, %c0_15], %17 {strides = array<i32>} : memref<32x48xbf16, #tpu.memory_space<vmem>>, vector<32x48xbf16>,
    } else {
    }
    return
  }
  func.func @transform_0(%arg0: i32, %arg1: i32, %arg2: i32) -> (i32, i32) {
    %c0_i32 = arith.constant 0 : i32
    return %arg0, %arg2 : i32, i32
  }
  func.func @transform_1(%arg0: i32, %arg1: i32, %arg2: i32) -> (i32, i32) {
    %c0_i32 = arith.constant 0 : i32
    return %arg2, %arg1 : i32, i32
  }
  func.func @transform_2(%arg0: i32, %arg1: i32, %arg2: i32) -> (i32, i32) {
    %c0_i32 = arith.constant 0 : i32
    %c0_i32_0 = arith.constant 0 : i32
    return %c0_i32, %arg1 : i32, i32
  }
  func.func @transform_3(%arg0: i32, %arg1: i32, %arg2: i32) -> (i32, i32) {
    %c0_i32 = arith.constant 0 : i32
    return %arg0, %arg1 : i32, i32
  }
}

module attributes {stable_mosaic.version = 11 : i64} {
  func.func @_attention_kernel(%arg0: i32, %arg1: i32, %arg2: memref<1x2x16x8xbf16, #tpu.memory_space<vmem>>, %arg3: memref<1x2x16x8xbf16, #tpu.memory_space<vmem>>, %arg4: memref<1x2x16x8xbf16, #tpu.memory_space<vmem>>, %arg5: memref<1x2x16x8xbf16, #tpu.memory_space<vmem>>, %arg6: memref<1x2x16x16xf32, #tpu.memory_space<vmem>>) attributes {dimension_semantics = [#tpu.dimension_semantics<parallel>, #tpu.dimension_semantics<parallel>], iteration_bounds = array<i64: 2, 1>, scalar_prefetch = 0 : i64, scratch_operands = 0 : i64, tpu.core_type = #tpu.core_type<tc>, window_params = [{transform_indices = @transform_0, window_bounds = array<i64: 1, 2, 16, 8>}, {transform_indices = @transform_1, window_bounds = array<i64: 1, 2, 16, 8>}, {transform_indices = @transform_2, window_bounds = array<i64: 1, 2, 16, 8>}, {transform_indices = @transform_3, window_bounds = array<i64: 1, 2, 16, 8>}, {transform_indices = @transform_4, window_bounds = array<i64: 1, 2, 16, 16>}]} {
    %c0 = arith.constant 0 : index
    %c0_0 = arith.constant 0 : index
    %c0_1 = arith.constant 0 : index
    %c0_2 = arith.constant 0 : index
    %0 = vector.load %arg2[%c0, %c0_0, %c0_1, %c0_2] : memref<1x2x16x8xbf16, #tpu.memory_space<vmem>>, vector<1x2x16x8xbf16>
    %1 = vector.shape_cast %0 : vector<1x2x16x8xbf16> to vector<2x16x8xbf16>
    %c0_3 = arith.constant 0 : index
    %c0_4 = arith.constant 0 : index
    %c0_5 = arith.constant 0 : index
    %c0_6 = arith.constant 0 : index
    %2 = vector.load %arg3[%c0_3, %c0_4, %c0_5, %c0_6] : memref<1x2x16x8xbf16, #tpu.memory_space<vmem>>, vector<1x2x16x8xbf16>
    %3 = vector.shape_cast %2 : vector<1x2x16x8xbf16> to vector<2x16x8xbf16>
    %c0_7 = arith.constant 0 : index
    %c0_8 = arith.constant 0 : index
    %c0_9 = arith.constant 0 : index
    %c0_10 = arith.constant 0 : index
    %4 = vector.load %arg4[%c0_7, %c0_8, %c0_9, %c0_10] : memref<1x2x16x8xbf16, #tpu.memory_space<vmem>>, vector<1x2x16x8xbf16>
    %5 = vector.shape_cast %4 : vector<1x2x16x8xbf16> to vector<2x16x8xbf16>
    "tpu.trace_start"() <{level = 10 : i32, message = "hqd,hkd->hqk"}> : () -> ()
    %cst = arith.constant dense<0.000000e+00> : vector<2x16x16xf32>
    %6 = tpu.matmul %1, %3, %cst {dimension_numbers = #tpu.dot_dimension_numbers<[2], [2], [1], [1], [0, 0, 0, 1, 1, 1], [0], [0]>} : vector<2x16x8xbf16>, vector<2x16x8xbf16>, vector<2x16x16xf32> -> vector<2x16x16xf32>
    "tpu.trace_stop"() : () -> ()
    %cst_11 = arith.constant 0.353553385 : f32
    %7 = vector.broadcast %cst_11 : f32 to vector<2x16x16xf32>
    %8 = arith.mulf %6, %7 : vector<2x16x16xf32>
    %cst_12 = arith.constant dense<0xFF800000> : vector<2x16xf32>
    %9 = vector.multi_reduction <maximumf>, %8, %cst_12 [2] : vector<2x16x16xf32> to vector<2x16xf32>
    %10 = vector.shape_cast %9 : vector<2x16xf32> to vector<2x16x1xf32>
    %11 = vector.broadcast %10 : vector<2x16x1xf32> to vector<2x16x16xf32>
    %12 = arith.subf %8, %11 : vector<2x16x16xf32>
    %13 = math.exp %12 : vector<2x16x16xf32>
    %cst_13 = arith.constant dense<0.000000e+00> : vector<2x16xf32>
    %14 = vector.multi_reduction <add>, %13, %cst_13 [2] : vector<2x16x16xf32> to vector<2x16xf32>
    %15 = vector.shape_cast %14 : vector<2x16xf32> to vector<2x16x1xf32>
    %16 = tpu.reciprocal %15 {approx = true} : vector<2x16x1xf32> -> vector<2x16x1xf32>
    %17 = vector.broadcast %16 : vector<2x16x1xf32> to vector<2x16x16xf32>
    %18 = arith.mulf %13, %17 : vector<2x16x16xf32>
    %19 = arith.truncf %18 : vector<2x16x16xf32> to vector<2x16x16xbf16>
    "tpu.trace_start"() <{level = 10 : i32, message = "hqk,hkd->hqd"}> : () -> ()
    %cst_14 = arith.constant dense<0.000000e+00> : vector<2x16x8xf32>
    %20 = tpu.matmul %19, %5, %cst_14 {dimension_numbers = #tpu.dot_dimension_numbers<[2], [1], [1], [2], [0, 0, 0, 1, 1, 2], [0], [0]>} : vector<2x16x16xbf16>, vector<2x16x8xbf16>, vector<2x16x8xf32> -> vector<2x16x8xf32>
    "tpu.trace_stop"() : () -> ()
    %21 = arith.truncf %20 : vector<2x16x8xf32> to vector<2x16x8xbf16>
    %c0_15 = arith.constant 0 : index
    %c0_16 = arith.constant 0 : index
    %c0_17 = arith.constant 0 : index
    %c0_18 = arith.constant 0 : index
    %22 = vector.load %arg5[%c0_15, %c0_16, %c0_17, %c0_18] : memref<1x2x16x8xbf16, #tpu.memory_space<vmem>>, vector<1x2x16x8xbf16>
    %23 = vector.shape_cast %22 : vector<1x2x16x8xbf16> to vector<2x16x8xbf16>
    %24 = vector.shape_cast %21 : vector<2x16x8xbf16> to vector<1x2x16x8xbf16>
    tpu.vector_store %arg5[%c0_15, %c0_16, %c0_17, %c0_18], %24 {strides = array<i32>} : memref<1x2x16x8xbf16, #tpu.memory_space<vmem>>, vector<1x2x16x8xbf16>,
    %c0_19 = arith.constant 0 : index
    %c0_20 = arith.constant 0 : index
    %c0_21 = arith.constant 0 : index
    %c0_22 = arith.constant 0 : index
    %25 = vector.load %arg6[%c0_19, %c0_20, %c0_21, %c0_22] : memref<1x2x16x16xf32, #tpu.memory_space<vmem>>, vector<1x2x16x16xf32>
    %26 = vector.shape_cast %25 : vector<1x2x16x16xf32> to vector<2x16x16xf32>
    %27 = vector.shape_cast %18 : vector<2x16x16xf32> to vector<1x2x16x16xf32>
    tpu.vector_store %arg6[%c0_19, %c0_20, %c0_21, %c0_22], %27 {strides = array<i32>} : memref<1x2x16x16xf32, #tpu.memory_space<vmem>>, vector<1x2x16x16xf32>,
    return
  }
  func.func @transform_0(%arg0: i32, %arg1: i32) -> (i32, i32, i32, i32) {
    %c0_i32 = arith.constant 0 : i32
    %c0_i32_0 = arith.constant 0 : i32
    %c0_i32_1 = arith.constant 0 : i32
    return %arg0, %arg1, %c0_i32, %c0_i32_0 : i32, i32, i32, i32
  }
  func.func @transform_1(%arg0: i32, %arg1: i32) -> (i32, i32, i32, i32) {
    %c0_i32 = arith.constant 0 : i32
    %c0_i32_0 = arith.constant 0 : i32
    %c0_i32_1 = arith.constant 0 : i32
    return %arg0, %arg1, %c0_i32, %c0_i32_0 : i32, i32, i32, i32
  }
  func.func @transform_2(%arg0: i32, %arg1: i32) -> (i32, i32, i32, i32) {
    %c0_i32 = arith.constant 0 : i32
    %c0_i32_0 = arith.constant 0 : i32
    %c0_i32_1 = arith.constant 0 : i32
    return %arg0, %arg1, %c0_i32, %c0_i32_0 : i32, i32, i32, i32
  }
  func.func @transform_3(%arg0: i32, %arg1: i32) -> (i32, i32, i32, i32) {
    %c0_i32 = arith.constant 0 : i32
    %c0_i32_0 = arith.constant 0 : i32
    %c0_i32_1 = arith.constant 0 : i32
    return %arg0, %arg1, %c0_i32, %c0_i32_0 : i32, i32, i32, i32
  }
  func.func @transform_4(%arg0: i32, %arg1: i32) -> (i32, i32, i32, i32) {
    %c0_i32 = arith.constant 0 : i32
    %c0_i32_0 = arith.constant 0 : i32
    %c0_i32_1 = arith.constant 0 : i32
    return %arg0, %arg1, %c0_i32, %c0_i32_0 : i32, i32, i32, i32
  }
}

module attributes {stable_mosaic.version = 11 : i64} {
  func.func @_o_add_ln_kernel(%arg0: i32, %arg1: memref<32x16xbf16, #tpu.memory_space<vmem>>, %arg2: memref<16x32xbf16, #tpu.memory_space<vmem>>, %arg3: memref<1x32xf32, #tpu.memory_space<vmem>>, %arg4: memref<32x32xf32, #tpu.memory_space<vmem>>, %arg5: memref<32x32xf32, #tpu.memory_space<vmem>>) attributes {dimension_semantics = [#tpu.dimension_semantics<parallel>], iteration_bounds = array<i64: 1>, scalar_prefetch = 0 : i64, scratch_operands = 0 : i64, tpu.core_type = #tpu.core_type<tc>, window_params = [{transform_indices = @transform_0, window_bounds = array<i64: 32, 16>}, {pipeline_mode = #tpu.pipeline_mode<synchronous>, transform_indices = @transform_1, window_bounds = array<i64: 16, 32>}, {pipeline_mode = #tpu.pipeline_mode<synchronous>, transform_indices = @transform_2, window_bounds = array<i64: 1, 32>}, {transform_indices = @transform_3, window_bounds = array<i64: 32, 32>}, {transform_indices = @transform_4, window_bounds = array<i64: 32, 32>}]} {
    %c0 = arith.constant 0 : index
    %c0_0 = arith.constant 0 : index
    %0 = vector.load %arg1[%c0, %c0_0] : memref<32x16xbf16, #tpu.memory_space<vmem>>, vector<32x16xbf16>
    %c0_1 = arith.constant 0 : index
    %c0_2 = arith.constant 0 : index
    %1 = vector.load %arg2[%c0_1, %c0_2] : memref<16x32xbf16, #tpu.memory_space<vmem>>, vector<16x32xbf16>
    %cst = arith.constant dense<0.000000e+00> : vector<32x32xf32>
    %2 = tpu.matmul %0, %1, %cst {dimension_numbers = #tpu.dot_dimension_numbers<[1], [0], [0], [1], [0, 0, 1, 1], [], []>} : vector<32x16xbf16>, vector<16x32xbf16>, vector<32x32xf32> -> vector<32x32xf32>
    %c0_3 = arith.constant 0 : index
    %c0_4 = arith.constant 0 : index
    %3 = vector.load %arg3[%c0_3, %c0_4] : memref<1x32xf32, #tpu.memory_space<vmem>>, vector<1x32xf32>
    %4 = vector.broadcast %3 : vector<1x32xf32> to vector<32x32xf32>
    %5 = arith.addf %2, %4 : vector<32x32xf32>
    %c0_5 = arith.constant 0 : index
    %c0_6 = arith.constant 0 : index
    %6 = vector.load %arg4[%c0_5, %c0_6] : memref<32x32xf32, #tpu.memory_space<vmem>>, vector<32x32xf32>
    %7 = arith.addf %5, %6 : vector<32x32xf32>
    %cst_7 = arith.constant dense<0.000000e+00> : vector<32xf32>
    %8 = vector.multi_reduction <add>, %7, %cst_7 [1] : vector<32x32xf32> to vector<32xf32>
    %9 = vector.shape_cast %8 : vector<32xf32> to vector<32x1xf32>
    %cst_8 = arith.constant 3.200000e+01 : f32
    %10 = vector.broadcast %cst_8 : f32 to vector<32x1xf32>
    %11 = arith.divf %9, %10 : vector<32x1xf32>
    %12 = vector.broadcast %11 : vector<32x1xf32> to vector<32x32xf32>
    %13 = arith.subf %7, %12 : vector<32x32xf32>
    %14 = arith.mulf %13, %13 : vector<32x32xf32>
    %cst_9 = arith.constant dense<0.000000e+00> : vector<32xf32>
    %15 = vector.multi_reduction <add>, %14, %cst_9 [1] : vector<32x32xf32> to vector<32xf32>
    %16 = vector.shape_cast %15 : vector<32xf32> to vector<32x1xf32>
    %cst_10 = arith.constant 3.200000e+01 : f32
    %17 = vector.broadcast %cst_10 : f32 to vector<32x1xf32>
    %18 = arith.divf %16, %17 : vector<32x1xf32>
    %19 = vector.broadcast %11 : vector<32x1xf32> to vector<32x32xf32>
    %20 = arith.subf %7, %19 : vector<32x32xf32>
    %cst_11 = arith.constant 9.99999974E-6 : f32
    %21 = vector.broadcast %cst_11 : f32 to vector<32x1xf32>
    %22 = arith.addf %18, %21 : vector<32x1xf32>
    %23 = math.rsqrt %22 : vector<32x1xf32>
    %24 = vector.broadcast %23 : vector<32x1xf32> to vector<32x32xf32>
    %25 = arith.mulf %20, %24 : vector<32x32xf32>
    %c0_12 = arith.constant 0 : index
    %c0_13 = arith.constant 0 : index
    %26 = vector.load %arg5[%c0_12, %c0_13] : memref<32x32xf32, #tpu.memory_space<vmem>>, vector<32x32xf32>
    tpu.vector_store %arg5[%c0_12, %c0_13], %25 {strides = array<i32>} : memref<32x32xf32, #tpu.memory_space<vmem>>, vector<32x32xf32>,
    return
  }
  func.func @transform_0(%arg0: i32) -> (i32, i32) {
    %c0_i32 = arith.constant 0 : i32
    %c0_i32_0 = arith.constant 0 : i32
    return %arg0, %c0_i32 : i32, i32
  }
  func.func @transform_1(%arg0: i32) -> (i32, i32) {
    %c0_i32 = arith.constant 0 : i32
    %c0_i32_0 = arith.constant 0 : i32
    %c0_i32_1 = arith.constant 0 : i32
    return %c0_i32, %c0_i32_0 : i32, i32
  }
  func.func @transform_2(%arg0: i32) -> (i32, i32) {
    %c0_i32 = arith.constant 0 : i32
    %c0_i32_0 = arith.constant 0 : i32
    %c0_i32_1 = arith.constant 0 : i32
    return %c0_i32, %c0_i32_0 : i32, i32
  }
  func.func @transform_3(%arg0: i32) -> (i32, i32) {
    %c0_i32 = arith.constant 0 : i32
    %c0_i32_0 = arith.constant 0 : i32
    return %arg0, %c0_i32 : i32, i32
  }
  func.func @transform_4(%arg0: i32) -> (i32, i32) {
    %c0_i32 = arith.constant 0 : i32
    %c0_i32_0 = arith.constant 0 : i32
    return %arg0, %c0_i32 : i32, i32
  }
}

module attributes {stable_mosaic.version = 11 : i64} {
  func.func @_ffn_kernel(%arg0: i32, %arg1: i32, %arg2: memref<32x32xf32, #tpu.memory_space<vmem>>, %arg3: memref<32x64xbf16, #tpu.memory_space<vmem>>, %arg4: memref<1x64xf32, #tpu.memory_space<vmem>>, %arg5: memref<64x32xbf16, #tpu.memory_space<vmem>>, %arg6: memref<1x32xf32, #tpu.memory_space<vmem>>, %arg7: memref<32x32xf32, #tpu.memory_space<vmem>>, %arg8: memref<32x32xf32, #tpu.memory_space<vmem>>) attributes {dimension_semantics = [#tpu.dimension_semantics<parallel>, #tpu.dimension_semantics<arbitrary>], iteration_bounds = array<i64: 1, 1>, scalar_prefetch = 0 : i64, scratch_operands = 1 : i64, tpu.core_type = #tpu.core_type<tc>, window_params = [{transform_indices = @transform_0, window_bounds = array<i64: 32, 32>}, {transform_indices = @transform_1, window_bounds = array<i64: 32, 64>}, {transform_indices = @transform_2, window_bounds = array<i64: 1, 64>}, {transform_indices = @transform_3, window_bounds = array<i64: 64, 32>}, {pipeline_mode = #tpu.pipeline_mode<synchronous>, transform_indices = @transform_4, window_bounds = array<i64: 1, 32>}, {transform_indices = @transform_5, window_bounds = array<i64: 32, 32>}]} {
    %c0_i32 = arith.constant 0 : i32
    %0 = arith.cmpi eq, %arg1, %c0_i32 : i32
    %1 = arith.extui %0 : i1 to i32
    %c0_i32_0 = arith.constant 0 : i32
    %2 = arith.cmpi ne, %1, %c0_i32_0 : i32
    scf.if %2 {
      %cst_16 = arith.constant 0.000000e+00 : f32
      %21 = vector.broadcast %cst_16 : f32 to vector<32x32xf32>
      %c0_17 = arith.constant 0 : index
      %c0_18 = arith.constant 0 : index
      %22 = vector.load %arg8[%c0_17, %c0_18] : memref<32x32xf32, #tpu.memory_space<vmem>>, vector<32x32xf32>
      tpu.vector_store %arg8[%c0_17, %c0_18], %21 {strides = array<i32>} : memref<32x32xf32, #tpu.memory_space<vmem>>, vector<32x32xf32>,
    } else {
    }
    %c0 = arith.constant 0 : index
    %c0_1 = arith.constant 0 : index
    %3 = vector.load %arg2[%c0, %c0_1] : memref<32x32xf32, #tpu.memory_space<vmem>>, vector<32x32xf32>
    %4 = arith.truncf %3 : vector<32x32xf32> to vector<32x32xbf16>
    %c0_2 = arith.constant 0 : index
    %c0_3 = arith.constant 0 : index
    %5 = vector.load %arg3[%c0_2, %c0_3] : memref<32x64xbf16, #tpu.memory_space<vmem>>, vector<32x64xbf16>
    %cst = arith.constant dense<0.000000e+00> : vector<32x64xf32>
    %6 = tpu.matmul %4, %5, %cst {dimension_numbers = #tpu.dot_dimension_numbers<[1], [0], [0], [1], [0, 0, 1, 1], [], []>} : vector<32x32xbf16>, vector<32x64xbf16>, vector<32x64xf32> -> vector<32x64xf32>
    %c0_4 = arith.constant 0 : index
    %c0_5 = arith.constant 0 : index
    %7 = vector.load %arg4[%c0_4, %c0_5] : memref<1x64xf32, #tpu.memory_space<vmem>>, vector<1x64xf32>
    %8 = vector.broadcast %7 : vector<1x64xf32> to vector<32x64xf32>
    %9 = arith.addf %6, %8 : vector<32x64xf32>
    %cst_6 = arith.constant 0.000000e+00 : f32
    %10 = vector.broadcast %cst_6 : f32 to vector<32x64xf32>
    %11 = arith.maximumf %9, %10 : vector<32x64xf32>
    %12 = arith.truncf %11 : vector<32x64xf32> to vector<32x64xbf16>
    %c0_7 = arith.constant 0 : index
    %c0_8 = arith.constant 0 : index
    %13 = vector.load %arg8[%c0_7, %c0_8] : memref<32x32xf32, #tpu.memory_space<vmem>>, vector<32x32xf32>
    %c0_9 = arith.constant 0 : index
    %c0_10 = arith.constant 0 : index
    %14 = vector.load %arg5[%c0_9, %c0_10] : memref<64x32xbf16, #tpu.memory_space<vmem>>, vector<64x32xbf16>
    %cst_11 = arith.constant dense<0.000000e+00> : vector<32x32xf32>
    %15 = tpu.matmul %12, %14, %cst_11 {dimension_numbers = #tpu.dot_dimension_numbers<[1], [0], [0], [1], [0, 0, 1, 1], [], []>} : vector<32x64xbf16>, vector<64x32xbf16>, vector<32x32xf32> -> vector<32x32xf32>
    %16 = arith.addf %13, %15 : vector<32x32xf32>
    %c0_12 = arith.constant 0 : index
    %c0_13 = arith.constant 0 : index
    %17 = vector.load %arg8[%c0_12, %c0_13] : memref<32x32xf32, #tpu.memory_space<vmem>>, vector<32x32xf32>
    tpu.vector_store %arg8[%c0_12, %c0_13], %16 {strides = array<i32>} : memref<32x32xf32, #tpu.memory_space<vmem>>, vector<32x32xf32>,
    %c0_i32_14 = arith.constant 0 : i32
    %18 = arith.cmpi eq, %arg1, %c0_i32_14 : i32
    %19 = arith.extui %18 : i1 to i32
    %c0_i32_15 = arith.constant 0 : i32
    %20 = arith.cmpi ne, %19, %c0_i32_15 : i32
    scf.if %20 {
      %c0_16 = arith.constant 0 : index
      %c0_17 = arith.constant 0 : index
      %21 = vector.load %arg8[%c0_16, %c0_17] : memref<32x32xf32, #tpu.memory_space<vmem>>, vector<32x32xf32>
      %c0_18 = arith.constant 0 : index
      %c0_19 = arith.constant 0 : index
      %22 = vector.load %arg6[%c0_18, %c0_19] : memref<1x32xf32, #tpu.memory_space<vmem>>, vector<1x32xf32>
      %23 = vector.broadcast %22 : vector<1x32xf32> to vector<32x32xf32>
      %24 = arith.addf %21, %23 : vector<32x32xf32>
      %25 = arith.addf %24, %3 : vector<32x32xf32>
      %cst_20 = arith.constant dense<0.000000e+00> : vector<32xf32>
      %26 = vector.multi_reduction <add>, %25, %cst_20 [1] : vector<32x32xf32> to vector<32xf32>
      %27 = vector.shape_cast %26 : vector<32xf32> to vector<32x1xf32>
      %cst_21 = arith.constant 3.200000e+01 : f32
      %28 = vector.broadcast %cst_21 : f32 to vector<32x1xf32>
      %29 = arith.divf %27, %28 : vector<32x1xf32>
      %30 = vector.broadcast %29 : vector<32x1xf32> to vector<32x32xf32>
      %31 = arith.subf %25, %30 : vector<32x32xf32>
      %32 = arith.mulf %31, %31 : vector<32x32xf32>
      %cst_22 = arith.constant dense<0.000000e+00> : vector<32xf32>
      %33 = vector.multi_reduction <add>, %32, %cst_22 [1] : vector<32x32xf32> to vector<32xf32>
      %34 = vector.shape_cast %33 : vector<32xf32> to vector<32x1xf32>
      %cst_23 = arith.constant 3.200000e+01 : f32
      %35 = vector.broadcast %cst_23 : f32 to vector<32x1xf32>
      %36 = arith.divf %34, %35 : vector<32x1xf32>
      %37 = vector.broadcast %29 : vector<32x1xf32> to vector<32x32xf32>
      %38 = arith.subf %25, %37 : vector<32x32xf32>
      %cst_24 = arith.constant 9.99999974E-6 : f32
      %39 = vector.broadcast %cst_24 : f32 to vector<32x1xf32>
      %40 = arith.addf %36, %39 : vector<32x1xf32>
      %41 = math.rsqrt %40 : vector<32x1xf32>
      %42 = vector.broadcast %41 : vector<32x1xf32> to vector<32x32xf32>
      %43 = arith.mulf %38, %42 : vector<32x32xf32>
      %c0_25 = arith.constant 0 : index
      %c0_26 = arith.constant 0 : index
      %44 = vector.load %arg7[%c0_25, %c0_26] : memref<32x32xf32, #tpu.memory_space<vmem>>, vector<32x32xf32>
      tpu.vector_store %arg7[%c0_25, %c0_26], %43 {strides = array<i32>} : memref<32x32xf32, #tpu.memory_space<vmem>>, vector<32x32xf32>,
    } else {
    }
    return
  }
  func.func @transform_0(%arg0: i32, %arg1: i32) -> (i32, i32) {
    %c0_i32 = arith.constant 0 : i32
    %c0_i32_0 = arith.constant 0 : i32
    return %arg0, %c0_i32 : i32, i32
  }
  func.func @transform_1(%arg0: i32, %arg1: i32) -> (i32, i32) {
    %c0_i32 = arith.constant 0 : i32
    %c0_i32_0 = arith.constant 0 : i32
    return %c0_i32, %arg1 : i32, i32
  }
  func.func @transform_2(%arg0: i32, %arg1: i32) -> (i32, i32) {
    %c0_i32 = arith.constant 0 : i32
    %c0_i32_0 = arith.constant 0 : i32
    return %c0_i32, %arg1 : i32, i32
  }
  func.func @transform_3(%arg0: i32, %arg1: i32) -> (i32, i32) {
    %c0_i32 = arith.constant 0 : i32
    %c0_i32_0 = arith.constant 0 : i32
    return %arg1, %c0_i32 : i32, i32
  }
  func.func @transform_4(%arg0: i32, %arg1: i32) -> (i32, i32) {
    %c0_i32 = arith.constant 0 : i32
    %c0_i32_0 = arith.constant 0 : i32
    %c0_i32_1 = arith.constant 0 : i32
    return %c0_i32, %c0_i32_0 : i32, i32
  }
  func.func @transform_5(%arg0: i32, %arg1: i32) -> (i32, i32) {
    %c0_i32 = arith.constant 0 : i32
    %c0_i32_0 = arith.constant 0 : i32
    return %arg0, %c0_i32 : i32, i32
  }
}

module attributes {stable_mosaic.version = 11 : i64} {
  func.func @_linear_kernel(%arg0: i32, %arg1: i32, %arg2: i32, %arg3: memref<32x32xf32, #tpu.memory_space<vmem>>, %arg4: memref<32x32xbf16, #tpu.memory_space<vmem>>, %arg5: memref<1x32xf32, #tpu.memory_space<vmem>>, %arg6: memref<32x32xbf16, #tpu.memory_space<vmem>>, %arg7: memref<32x32xf32, #tpu.memory_space<vmem>>) attributes {dimension_semantics = [#tpu.dimension_semantics<parallel>, #tpu.dimension_semantics<parallel>, #tpu.dimension_semantics<arbitrary>], iteration_bounds = array<i64: 1, 1, 1>, scalar_prefetch = 0 : i64, scratch_operands = 1 : i64, tpu.core_type = #tpu.core_type<tc>, window_params = [{transform_indices = @transform_0, window_bounds = array<i64: 32, 32>}, {transform_indices = @transform_1, window_bounds = array<i64: 32, 32>}, {transform_indices = @transform_2, window_bounds = array<i64: 1, 32>}, {transform_indices = @transform_3, window_bounds = array<i64: 32, 32>}]} {
    %c0_i32 = arith.constant 0 : i32
    %0 = arith.cmpi eq, %arg2, %c0_i32 : i32
    %1 = arith.extui %0 : i1 to i32
    %c0_i32_0 = arith.constant 0 : i32
    %2 = arith.cmpi ne, %1, %c0_i32_0 : i32
    scf.if %2 {
      %cst_10 = arith.constant 0.000000e+00 : f32
      %13 = vector.broadcast %cst_10 : f32 to vector<32x32xf32>
      %c0_11 = arith.constant 0 : index
      %c0_12 = arith.constant 0 : index
      %14 = vector.load %arg7[%c0_11, %c0_12] : memref<32x32xf32, #tpu.memory_space<vmem>>, vector<32x32xf32>
      tpu.vector_store %arg7[%c0_11, %c0_12], %13 {strides = array<i32>} : memref<32x32xf32, #tpu.memory_space<vmem>>, vector<32x32xf32>,
    } else {
    }
    %c0 = arith.constant 0 : index
    %c0_1 = arith.constant 0 : index
    %3 = vector.load %arg7[%c0, %c0_1] : memref<32x32xf32, #tpu.memory_space<vmem>>, vector<32x32xf32>
    %c0_2 = arith.constant 0 : index
    %c0_3 = arith.constant 0 : index
    %4 = vector.load %arg3[%c0_2, %c0_3] : memref<32x32xf32, #tpu.memory_space<vmem>>, vector<32x32xf32>
    %5 = arith.truncf %4 : vector<32x32xf32> to vector<32x32xbf16>
    %c0_4 = arith.constant 0 : index
    %c0_5 = arith.constant 0 : index
    %6 = vector.load %arg4[%c0_4, %c0_5] : memref<32x32xbf16, #tpu.memory_space<vmem>>, vector<32x32xbf16>
    %cst = arith.constant dense<0.000000e+00> : vector<32x32xf32>
    %7 = tpu.matmul %5, %6, %cst {dimension_numbers = #tpu.dot_dimension_numbers<[1], [0], [0], [1], [0, 0, 1, 1], [], []>} : vector<32x32xbf16>, vector<32x32xbf16>, vector<32x32xf32> -> vector<32x32xf32>
    %8 = arith.addf %3, %7 : vector<32x32xf32>
    %c0_6 = arith.constant 0 : index
    %c0_7 = arith.constant 0 : index
    %9 = vector.load %arg7[%c0_6, %c0_7] : memref<32x32xf32, #tpu.memory_space<vmem>>, vector<32x32xf32>
    tpu.vector_store %arg7[%c0_6, %c0_7], %8 {strides = array<i32>} : memref<32x32xf32, #tpu.memory_space<vmem>>, vector<32x32xf32>,
    %c0_i32_8 = arith.constant 0 : i32
    %10 = arith.cmpi eq, %arg2, %c0_i32_8 : i32
    %11 = arith.extui %10 : i1 to i32
    %c0_i32_9 = arith.constant 0 : i32
    %12 = arith.cmpi ne, %11, %c0_i32_9 : i32
    scf.if %12 {
      %c0_10 = arith.constant 0 : index
      %c0_11 = arith.constant 0 : index
      %13 = vector.load %arg7[%c0_10, %c0_11] : memref<32x32xf32, #tpu.memory_space<vmem>>, vector<32x32xf32>
      %c0_12 = arith.constant 0 : index
      %c0_13 = arith.constant 0 : index
      %14 = vector.load %arg5[%c0_12, %c0_13] : memref<1x32xf32, #tpu.memory_space<vmem>>, vector<1x32xf32>
      %15 = vector.broadcast %14 : vector<1x32xf32> to vector<32x32xf32>
      %16 = arith.addf %13, %15 : vector<32x32xf32>
      %17 = arith.truncf %16 : vector<32x32xf32> to vector<32x32xbf16>
      %c0_14 = arith.constant 0 : index
      %c0_15 = arith.constant 0 : index
      %18 = vector.load %arg6[%c0_14, %c0_15] : memref<32x32xbf16, #tpu.memory_space<vmem>>, vector<32x32xbf16>
      tpu.vector_store %arg6[%c0_14, %c0_15], %17 {strides = array<i32>} : memref<32x32xbf16, #tpu.memory_space<vmem>>, vector<32x32xbf16>,
    } else {
    }
    return
  }
  func.func @transform_0(%arg0: i32, %arg1: i32, %arg2: i32) -> (i32, i32) {
    %c0_i32 = arith.constant 0 : i32
    return %arg0, %arg2 : i32, i32
  }
  func.func @transform_1(%arg0: i32, %arg1: i32, %arg2: i32) -> (i32, i32) {
    %c0_i32 = arith.constant 0 : i32
    return %arg2, %arg1 : i32, i32
  }
  func.func @transform_2(%arg0: i32, %arg1: i32, %arg2: i32) -> (i32, i32) {
    %c0_i32 = arith.constant 0 : i32
    %c0_i32_0 = arith.constant 0 : i32
    return %c0_i32, %arg1 : i32, i32
  }
  func.func @transform_3(%arg0: i32, %arg1: i32, %arg2: i32) -> (i32, i32) {
    %c0_i32 = arith.constant 0 : i32
    return %arg0, %arg1 : i32, i32
  }
}

module attributes {stable_mosaic.version = 11 : i64} {
  func.func @_ffn_kernel(%arg0: i32, %arg1: i32, %arg2: memref<16x32xf32, #tpu.memory_space<vmem>>, %arg3: memref<32x64xbf16, #tpu.memory_space<vmem>>, %arg4: memref<1x64xf32, #tpu.memory_space<vmem>>, %arg5: memref<64x32xbf16, #tpu.memory_space<vmem>>, %arg6: memref<1x32xf32, #tpu.memory_space<vmem>>, %arg7: memref<16x32xf32, #tpu.memory_space<vmem>>, %arg8: memref<16x32xf32, #tpu.memory_space<vmem>>) attributes {dimension_semantics = [#tpu.dimension_semantics<parallel>, #tpu.dimension_semantics<arbitrary>], iteration_bounds = array<i64: 1, 1>, scalar_prefetch = 0 : i64, scratch_operands = 1 : i64, tpu.core_type = #tpu.core_type<tc>, window_params = [{transform_indices = @transform_0, window_bounds = array<i64: 16, 32>}, {transform_indices = @transform_1, window_bounds = array<i64: 32, 64>}, {transform_indices = @transform_2, window_bounds = array<i64: 1, 64>}, {transform_indices = @transform_3, window_bounds = array<i64: 64, 32>}, {pipeline_mode = #tpu.pipeline_mode<synchronous>, transform_indices = @transform_4, window_bounds = array<i64: 1, 32>}, {transform_indices = @transform_5, window_bounds = array<i64: 16, 32>}]} {
    %c0_i32 = arith.constant 0 : i32
    %0 = arith.cmpi eq, %arg1, %c0_i32 : i32
    %1 = arith.extui %0 : i1 to i32
    %c0_i32_0 = arith.constant 0 : i32
    %2 = arith.cmpi ne, %1, %c0_i32_0 : i32
    scf.if %2 {
      %cst_16 = arith.constant 0.000000e+00 : f32
      %21 = vector.broadcast %cst_16 : f32 to vector<16x32xf32>
      %c0_17 = arith.constant 0 : index
      %c0_18 = arith.constant 0 : index
      %22 = vector.load %arg8[%c0_17, %c0_18] : memref<16x32xf32, #tpu.memory_space<vmem>>, vector<16x32xf32>
      tpu.vector_store %arg8[%c0_17, %c0_18], %21 {strides = array<i32>} : memref<16x32xf32, #tpu.memory_space<vmem>>, vector<16x32xf32>,
    } else {
    }
    %c0 = arith.constant 0 : index
    %c0_1 = arith.constant 0 : index
    %3 = vector.load %arg2[%c0, %c0_1] : memref<16x32xf32, #tpu.memory_space<vmem>>, vector<16x32xf32>
    %4 = arith.truncf %3 : vector<16x32xf32> to vector<16x32xbf16>
    %c0_2 = arith.constant 0 : index
    %c0_3 = arith.constant 0 : index
    %5 = vector.load %arg3[%c0_2, %c0_3] : memref<32x64xbf16, #tpu.memory_space<vmem>>, vector<32x64xbf16>
    %cst = arith.constant dense<0.000000e+00> : vector<16x64xf32>
    %6 = tpu.matmul %4, %5, %cst {dimension_numbers = #tpu.dot_dimension_numbers<[1], [0], [0], [1], [0, 0, 1, 1], [], []>} : vector<16x32xbf16>, vector<32x64xbf16>, vector<16x64xf32> -> vector<16x64xf32>
    %c0_4 = arith.constant 0 : index
    %c0_5 = arith.constant 0 : index
    %7 = vector.load %arg4[%c0_4, %c0_5] : memref<1x64xf32, #tpu.memory_space<vmem>>, vector<1x64xf32>
    %8 = vector.broadcast %7 : vector<1x64xf32> to vector<16x64xf32>
    %9 = arith.addf %6, %8 : vector<16x64xf32>
    %cst_6 = arith.constant 0.000000e+00 : f32
    %10 = vector.broadcast %cst_6 : f32 to vector<16x64xf32>
    %11 = arith.maximumf %9, %10 : vector<16x64xf32>
    %12 = arith.truncf %11 : vector<16x64xf32> to vector<16x64xbf16>
    %c0_7 = arith.constant 0 : index
    %c0_8 = arith.constant 0 : index
    %13 = vector.load %arg8[%c0_7, %c0_8] : memref<16x32xf32, #tpu.memory_space<vmem>>, vector<16x32xf32>
    %c0_9 = arith.constant 0 : index
    %c0_10 = arith.constant 0 : index
    %14 = vector.load %arg5[%c0_9, %c0_10] : memref<64x32xbf16, #tpu.memory_space<vmem>>, vector<64x32xbf16>
    %cst_11 = arith.constant dense<0.000000e+00> : vector<16x32xf32>
    %15 = tpu.matmul %12, %14, %cst_11 {dimension_numbers = #tpu.dot_dimension_numbers<[1], [0], [0], [1], [0, 0, 1, 1], [], []>} : vector<16x64xbf16>, vector<64x32xbf16>, vector<16x32xf32> -> vector<16x32xf32>
    %16 = arith.addf %13, %15 : vector<16x32xf32>
    %c0_12 = arith.constant 0 : index
    %c0_13 = arith.constant 0 : index
    %17 = vector.load %arg8[%c0_12, %c0_13] : memref<16x32xf32, #tpu.memory_space<vmem>>, vector<16x32xf32>
    tpu.vector_store %arg8[%c0_12, %c0_13], %16 {strides = array<i32>} : memref<16x32xf32, #tpu.memory_space<vmem>>, vector<16x32xf32>,
    %c0_i32_14 = arith.constant 0 : i32
    %18 = arith.cmpi eq, %arg1, %c0_i32_14 : i32
    %19 = arith.extui %18 : i1 to i32
    %c0_i32_15 = arith.constant 0 : i32
    %20 = arith.cmpi ne, %19, %c0_i32_15 : i32
    scf.if %20 {
      %c0_16 = arith.constant 0 : index
      %c0_17 = arith.constant 0 : index
      %21 = vector.load %arg8[%c0_16, %c0_17] : memref<16x32xf32, #tpu.memory_space<vmem>>, vector<16x32xf32>
      %c0_18 = arith.constant 0 : index
      %c0_19 = arith.constant 0 : index
      %22 = vector.load %arg6[%c0_18, %c0_19] : memref<1x32xf32, #tpu.memory_space<vmem>>, vector<1x32xf32>
      %23 = vector.broadcast %22 : vector<1x32xf32> to vector<16x32xf32>
      %24 = arith.addf %21, %23 : vector<16x32xf32>
      %25 = arith.addf %24, %3 : vector<16x32xf32>
      %cst_20 = arith.constant dense<0.000000e+00> : vector<16xf32>
      %26 = vector.multi_reduction <add>, %25, %cst_20 [1] : vector<16x32xf32> to vector<16xf32>
      %27 = vector.shape_cast %26 : vector<16xf32> to vector<16x1xf32>
      %cst_21 = arith.constant 3.200000e+01 : f32
      %28 = vector.broadcast %cst_21 : f32 to vector<16x1xf32>
      %29 = arith.divf %27, %28 : vector<16x1xf32>
      %30 = vector.broadcast %29 : vector<16x1xf32> to vector<16x32xf32>
      %31 = arith.subf %25, %30 : vector<16x32xf32>
      %32 = arith.mulf %31, %31 : vector<16x32xf32>
      %cst_22 = arith.constant dense<0.000000e+00> : vector<16xf32>
      %33 = vector.multi_reduction <add>, %32, %cst_22 [1] : vector<16x32xf32> to vector<16xf32>
      %34 = vector.shape_cast %33 : vector<16xf32> to vector<16x1xf32>
      %cst_23 = arith.constant 3.200000e+01 : f32
      %35 = vector.broadcast %cst_23 : f32 to vector<16x1xf32>
      %36 = arith.divf %34, %35 : vector<16x1xf32>
      %37 = vector.broadcast %29 : vector<16x1xf32> to vector<16x32xf32>
      %38 = arith.subf %25, %37 : vector<16x32xf32>
      %cst_24 = arith.constant 9.99999974E-6 : f32
      %39 = vector.broadcast %cst_24 : f32 to vector<16x1xf32>
      %40 = arith.addf %36, %39 : vector<16x1xf32>
      %41 = math.rsqrt %40 : vector<16x1xf32>
      %42 = vector.broadcast %41 : vector<16x1xf32> to vector<16x32xf32>
      %43 = arith.mulf %38, %42 : vector<16x32xf32>
      %c0_25 = arith.constant 0 : index
      %c0_26 = arith.constant 0 : index
      %44 = vector.load %arg7[%c0_25, %c0_26] : memref<16x32xf32, #tpu.memory_space<vmem>>, vector<16x32xf32>
      tpu.vector_store %arg7[%c0_25, %c0_26], %43 {strides = array<i32>} : memref<16x32xf32, #tpu.memory_space<vmem>>, vector<16x32xf32>,
    } else {
    }
    return
  }
  func.func @transform_0(%arg0: i32, %arg1: i32) -> (i32, i32) {
    %c0_i32 = arith.constant 0 : i32
    %c0_i32_0 = arith.constant 0 : i32
    return %arg0, %c0_i32 : i32, i32
  }
  func.func @transform_1(%arg0: i32, %arg1: i32) -> (i32, i32) {
    %c0_i32 = arith.constant 0 : i32
    %c0_i32_0 = arith.constant 0 : i32
    return %c0_i32, %arg1 : i32, i32
  }
  func.func @transform_2(%arg0: i32, %arg1: i32) -> (i32, i32) {
    %c0_i32 = arith.constant 0 : i32
    %c0_i32_0 = arith.constant 0 : i32
    return %c0_i32, %arg1 : i32, i32
  }
  func.func @transform_3(%arg0: i32, %arg1: i32) -> (i32, i32) {
    %c0_i32 = arith.constant 0 : i32
    %c0_i32_0 = arith.constant 0 : i32
    return %arg1, %c0_i32 : i32, i32
  }
  func.func @transform_4(%arg0: i32, %arg1: i32) -> (i32, i32) {
    %c0_i32 = arith.constant 0 : i32
    %c0_i32_0 = arith.constant 0 : i32
    %c0_i32_1 = arith.constant 0 : i32
    return %c0_i32, %c0_i32_0 : i32, i32
  }
  func.func @transform_5(%arg0: i32, %arg1: i32) -> (i32, i32) {
    %c0_i32 = arith.constant 0 : i32
    %c0_i32_0 = arith.constant 0 : i32
    return %arg0, %c0_i32 : i32, i32
  }
}

module attributes {stable_mosaic.version = 11 : i64} {
  func.func @_linear_kernel(%arg0: i32, %arg1: i32, %arg2: i32, %arg3: memref<16x32xf32, #tpu.memory_space<vmem>>, %arg4: memref<32x512xbf16, #tpu.memory_space<vmem>>, %arg5: memref<16x512xf32, #tpu.memory_space<vmem>>, %arg6: memref<16x512xf32, #tpu.memory_space<vmem>>) attributes {dimension_semantics = [#tpu.dimension_semantics<parallel>, #tpu.dimension_semantics<parallel>, #tpu.dimension_semantics<arbitrary>], iteration_bounds = array<i64: 1, 1, 1>, scalar_prefetch = 0 : i64, scratch_operands = 1 : i64, tpu.core_type = #tpu.core_type<tc>, window_params = [{transform_indices = @transform_0, window_bounds = array<i64: 16, 32>}, {transform_indices = @transform_1, window_bounds = array<i64: 32, 512>}, {transform_indices = @transform_2, window_bounds = array<i64: 16, 512>}]} {
    %c0_i32 = arith.constant 0 : i32
    %0 = arith.cmpi eq, %arg2, %c0_i32 : i32
    %1 = arith.extui %0 : i1 to i32
    %c0_i32_0 = arith.constant 0 : i32
    %2 = arith.cmpi ne, %1, %c0_i32_0 : i32
    scf.if %2 {
      %cst_10 = arith.constant 0.000000e+00 : f32
      %13 = vector.broadcast %cst_10 : f32 to vector<16x512xf32>
      %c0_11 = arith.constant 0 : index
      %c0_12 = arith.constant 0 : index
      %14 = vector.load %arg6[%c0_11, %c0_12] : memref<16x512xf32, #tpu.memory_space<vmem>>, vector<16x512xf32>
      tpu.vector_store %arg6[%c0_11, %c0_12], %13 {strides = array<i32>} : memref<16x512xf32, #tpu.memory_space<vmem>>, vector<16x512xf32>,
    } else {
    }
    %c0 = arith.constant 0 : index
    %c0_1 = arith.constant 0 : index
    %3 = vector.load %arg6[%c0, %c0_1] : memref<16x512xf32, #tpu.memory_space<vmem>>, vector<16x512xf32>
    %c0_2 = arith.constant 0 : index
    %c0_3 = arith.constant 0 : index
    %4 = vector.load %arg3[%c0_2, %c0_3] : memref<16x32xf32, #tpu.memory_space<vmem>>, vector<16x32xf32>
    %5 = arith.truncf %4 : vector<16x32xf32> to vector<16x32xbf16>
    %c0_4 = arith.constant 0 : index
    %c0_5 = arith.constant 0 : index
    %6 = vector.load %arg4[%c0_4, %c0_5] : memref<32x512xbf16, #tpu.memory_space<vmem>>, vector<32x512xbf16>
    %cst = arith.constant dense<0.000000e+00> : vector<16x512xf32>
    %7 = tpu.matmul %5, %6, %cst {dimension_numbers = #tpu.dot_dimension_numbers<[1], [0], [0], [1], [0, 0, 1, 1], [], []>} : vector<16x32xbf16>, vector<32x512xbf16>, vector<16x512xf32> -> vector<16x512xf32>
    %8 = arith.addf %3, %7 : vector<16x512xf32>
    %c0_6 = arith.constant 0 : index
    %c0_7 = arith.constant 0 : index
    %9 = vector.load %arg6[%c0_6, %c0_7] : memref<16x512xf32, #tpu.memory_space<vmem>>, vector<16x512xf32>
    tpu.vector_store %arg6[%c0_6, %c0_7], %8 {strides = array<i32>} : memref<16x512xf32, #tpu.memory_space<vmem>>, vector<16x512xf32>,
    %c0_i32_8 = arith.constant 0 : i32
    %10 = arith.cmpi eq, %arg2, %c0_i32_8 : i32
    %11 = arith.extui %10 : i1 to i32
    %c0_i32_9 = arith.constant 0 : i32
    %12 = arith.cmpi ne, %11, %c0_i32_9 : i32
    scf.if %12 {
      %c0_10 = arith.constant 0 : index
      %c0_11 = arith.constant 0 : index
      %13 = vector.load %arg6[%c0_10, %c0_11] : memref<16x512xf32, #tpu.memory_space<vmem>>, vector<16x512xf32>
      %c0_12 = arith.constant 0 : index
      %c0_13 = arith.constant 0 : index
      %14 = vector.load %arg5[%c0_12, %c0_13] : memref<16x512xf32, #tpu.memory_space<vmem>>, vector<16x512xf32>
      tpu.vector_store %arg5[%c0_12, %c0_13], %13 {strides = array<i32>} : memref<16x512xf32, #tpu.memory_space<vmem>>, vector<16x512xf32>,
    } else {
    }
    return
  }
  func.func @transform_0(%arg0: i32, %arg1: i32, %arg2: i32) -> (i32, i32) {
    %c0_i32 = arith.constant 0 : i32
    return %arg0, %arg2 : i32, i32
  }
  func.func @transform_1(%arg0: i32, %arg1: i32, %arg2: i32) -> (i32, i32) {
    %c0_i32 = arith.constant 0 : i32
    return %arg2, %arg1 : i32, i32
  }
  func.func @transform_2(%arg0: i32, %arg1: i32, %arg2: i32) -> (i32, i32) {
    %c0_i32 = arith.constant 0 : i32
    return %arg0, %arg1 : i32, i32
  }
}

module attributes {stable_mosaic.version = 11 : i64} {
  func.func @_attention_kernel(%arg0: i32, %arg1: i32, %arg2: memref<1x2x8x8xbf16, #tpu.memory_space<vmem>>, %arg3: memref<1x2x16x8xbf16, #tpu.memory_space<vmem>>, %arg4: memref<1x2x16x8xbf16, #tpu.memory_space<vmem>>, %arg5: memref<1x2x8x8xbf16, #tpu.memory_space<vmem>>, %arg6: memref<1x2x8x16xf32, #tpu.memory_space<vmem>>) attributes {dimension_semantics = [#tpu.dimension_semantics<parallel>, #tpu.dimension_semantics<parallel>], iteration_bounds = array<i64: 2, 1>, scalar_prefetch = 0 : i64, scratch_operands = 0 : i64, tpu.core_type = #tpu.core_type<tc>, window_params = [{transform_indices = @transform_0, window_bounds = array<i64: 1, 2, 8, 8>}, {transform_indices = @transform_1, window_bounds = array<i64: 1, 2, 16, 8>}, {transform_indices = @transform_2, window_bounds = array<i64: 1, 2, 16, 8>}, {transform_indices = @transform_3, window_bounds = array<i64: 1, 2, 8, 8>}, {transform_indices = @transform_4, window_bounds = array<i64: 1, 2, 8, 16>}]} {
    %c0 = arith.constant 0 : index
    %c0_0 = arith.constant 0 : index
    %c0_1 = arith.constant 0 : index
    %c0_2 = arith.constant 0 : index
    %0 = vector.load %arg2[%c0, %c0_0, %c0_1, %c0_2] : memref<1x2x8x8xbf16, #tpu.memory_space<vmem>>, vector<1x2x8x8xbf16>
    %1 = vector.shape_cast %0 : vector<1x2x8x8xbf16> to vector<2x8x8xbf16>
    %c0_3 = arith.constant 0 : index
    %c0_4 = arith.constant 0 : index
    %c0_5 = arith.constant 0 : index
    %c0_6 = arith.constant 0 : index
    %2 = vector.load %arg3[%c0_3, %c0_4, %c0_5, %c0_6] : memref<1x2x16x8xbf16, #tpu.memory_space<vmem>>, vector<1x2x16x8xbf16>
    %3 = vector.shape_cast %2 : vector<1x2x16x8xbf16> to vector<2x16x8xbf16>
    %c0_7 = arith.constant 0 : index
    %c0_8 = arith.constant 0 : index
    %c0_9 = arith.constant 0 : index
    %c0_10 = arith.constant 0 : index
    %4 = vector.load %arg4[%c0_7, %c0_8, %c0_9, %c0_10] : memref<1x2x16x8xbf16, #tpu.memory_space<vmem>>, vector<1x2x16x8xbf16>
    %5 = vector.shape_cast %4 : vector<1x2x16x8xbf16> to vector<2x16x8xbf16>
    "tpu.trace_start"() <{level = 10 : i32, message = "hqd,hkd->hqk"}> : () -> ()
    %cst = arith.constant dense<0.000000e+00> : vector<2x8x16xf32>
    %6 = tpu.matmul %1, %3, %cst {dimension_numbers = #tpu.dot_dimension_numbers<[2], [2], [1], [1], [0, 0, 0, 1, 1, 1], [0], [0]>} : vector<2x8x8xbf16>, vector<2x16x8xbf16>, vector<2x8x16xf32> -> vector<2x8x16xf32>
    "tpu.trace_stop"() : () -> ()
    %cst_11 = arith.constant 0.353553385 : f32
    %7 = vector.broadcast %cst_11 : f32 to vector<2x8x16xf32>
    %8 = arith.mulf %6, %7 : vector<2x8x16xf32>
    %cst_12 = arith.constant dense<0xFF800000> : vector<2x8xf32>
    %9 = vector.multi_reduction <maximumf>, %8, %cst_12 [2] : vector<2x8x16xf32> to vector<2x8xf32>
    %10 = vector.shape_cast %9 : vector<2x8xf32> to vector<2x8x1xf32>
    %11 = vector.broadcast %10 : vector<2x8x1xf32> to vector<2x8x16xf32>
    %12 = arith.subf %8, %11 : vector<2x8x16xf32>
    %13 = math.exp %12 : vector<2x8x16xf32>
    %cst_13 = arith.constant dense<0.000000e+00> : vector<2x8xf32>
    %14 = vector.multi_reduction <add>, %13, %cst_13 [2] : vector<2x8x16xf32> to vector<2x8xf32>
    %15 = vector.shape_cast %14 : vector<2x8xf32> to vector<2x8x1xf32>
    %16 = tpu.reciprocal %15 {approx = true} : vector<2x8x1xf32> -> vector<2x8x1xf32>
    %17 = vector.broadcast %16 : vector<2x8x1xf32> to vector<2x8x16xf32>
    %18 = arith.mulf %13, %17 : vector<2x8x16xf32>
    %19 = arith.truncf %18 : vector<2x8x16xf32> to vector<2x8x16xbf16>
    "tpu.trace_start"() <{level = 10 : i32, message = "hqk,hkd->hqd"}> : () -> ()
    %cst_14 = arith.constant dense<0.000000e+00> : vector<2x8x8xf32>
    %20 = tpu.matmul %19, %5, %cst_14 {dimension_numbers = #tpu.dot_dimension_numbers<[2], [1], [1], [2], [0, 0, 0, 1, 1, 2], [0], [0]>} : vector<2x8x16xbf16>, vector<2x16x8xbf16>, vector<2x8x8xf32> -> vector<2x8x8xf32>
    "tpu.trace_stop"() : () -> ()
    %21 = arith.truncf %20 : vector<2x8x8xf32> to vector<2x8x8xbf16>
    %c0_15 = arith.constant 0 : index
    %c0_16 = arith.constant 0 : index
    %c0_17 = arith.constant 0 : index
    %c0_18 = arith.constant 0 : index
    %22 = vector.load %arg5[%c0_15, %c0_16, %c0_17, %c0_18] : memref<1x2x8x8xbf16, #tpu.memory_space<vmem>>, vector<1x2x8x8xbf16>
    %23 = vector.shape_cast %22 : vector<1x2x8x8xbf16> to vector<2x8x8xbf16>
    %24 = vector.shape_cast %21 : vector<2x8x8xbf16> to vector<1x2x8x8xbf16>
    tpu.vector_store %arg5[%c0_15, %c0_16, %c0_17, %c0_18], %24 {strides = array<i32>} : memref<1x2x8x8xbf16, #tpu.memory_space<vmem>>, vector<1x2x8x8xbf16>,
    %c0_19 = arith.constant 0 : index
    %c0_20 = arith.constant 0 : index
    %c0_21 = arith.constant 0 : index
    %c0_22 = arith.constant 0 : index
    %25 = vector.load %arg6[%c0_19, %c0_20, %c0_21, %c0_22] : memref<1x2x8x16xf32, #tpu.memory_space<vmem>>, vector<1x2x8x16xf32>
    %26 = vector.shape_cast %25 : vector<1x2x8x16xf32> to vector<2x8x16xf32>
    %27 = vector.shape_cast %18 : vector<2x8x16xf32> to vector<1x2x8x16xf32>
    tpu.vector_store %arg6[%c0_19, %c0_20, %c0_21, %c0_22], %27 {strides = array<i32>} : memref<1x2x8x16xf32, #tpu.memory_space<vmem>>, vector<1x2x8x16xf32>,
    return
  }
  func.func @transform_0(%arg0: i32, %arg1: i32) -> (i32, i32, i32, i32) {
    %c0_i32 = arith.constant 0 : i32
    %c0_i32_0 = arith.constant 0 : i32
    %c0_i32_1 = arith.constant 0 : i32
    return %arg0, %arg1, %c0_i32, %c0_i32_0 : i32, i32, i32, i32
  }
  func.func @transform_1(%arg0: i32, %arg1: i32) -> (i32, i32, i32, i32) {
    %c0_i32 = arith.constant 0 : i32
    %c0_i32_0 = arith.constant 0 : i32
    %c0_i32_1 = arith.constant 0 : i32
    return %arg0, %arg1, %c0_i32, %c0_i32_0 : i32, i32, i32, i32
  }
  func.func @transform_2(%arg0: i32, %arg1: i32) -> (i32, i32, i32, i32) {
    %c0_i32 = arith.constant 0 : i32
    %c0_i32_0 = arith.constant 0 : i32
    %c0_i32_1 = arith.constant 0 : i32
    return %arg0, %arg1, %c0_i32, %c0_i32_0 : i32, i32, i32, i32
  }
  func.func @transform_3(%arg0: i32, %arg1: i32) -> (i32, i32, i32, i32) {
    %c0_i32 = arith.constant 0 : i32
    %c0_i32_0 = arith.constant 0 : i32
    %c0_i32_1 = arith.constant 0 : i32
    return %arg0, %arg1, %c0_i32, %c0_i32_0 : i32, i32, i32, i32
  }
  func.func @transform_4(%arg0: i32, %arg1: i32) -> (i32, i32, i32, i32) {
    %c0_i32 = arith.constant 0 : i32
    %c0_i32_0 = arith.constant 0 : i32
    %c0_i32_1 = arith.constant 0 : i32
    return %arg0, %arg1, %c0_i32, %c0_i32_0 : i32, i32, i32, i32
  }
}

</mosaic_0001>

<llo_original>
// kernel: transformer_forward.19
$region0: #{transformer_forward.19}
  #allocation0 [shape = 'u32[]', space=smem, size = 0x4, offset = 0x4, fixed_abs, tag = 'smem constant byte address 0x4 - core index']
  #allocation1 [shape = 'u32[72,128]{1,0:T(1,128)}', space=vmem, size = 0x9000, scoped, tag = 'internal scratch']
  %s0 = inlined_call_operand.vmem [shape: bf16[16,16], index: 0, kind: input, shape index: {}]
  %s1 = inlined_call_operand.vmem [shape: bf16[16,32], index: 1, kind: input, shape index: {}]
  %s2 = inlined_call_operand.vmem [shape: f32[1,32], index: 2, kind: input, shape index: {}]
  %s3 = inlined_call_operand.vmem [shape: f32[16,32], index: 3, kind: input, shape index: {}]
  %s4 = inlined_call_operand.vmem [shape: f32[16,32], index: 4, kind: output, shape index: {}]
  %s5 = sld [smem:[#allocation0]]
  $region26: #{transformer_forward.19} parent=0
    _
  %s7 = ssub.s32 1, %s5
  %s8 = scalar_select 0, %s7, %s5
  // Predicated region
  $region2: #{transformer_forward.19} parent=0 // pred_check
    _
  $region3: #{transformer_forward.19} parent=0 // pred_check_branch
    %10 = sbr.rel (0) target = $region5
  $region4: #{transformer_forward.19} parent=0 // pred_region
    _
  $region5: #{transformer_forward.19} parent=0 // pred_fallthru
    _
  // Predicated region
  $region6: #{transformer_forward.19} parent=0 // pred_check
    _
  $region7: #{transformer_forward.19} parent=0 // pred_check_branch
    %12 = sbr.rel (0) target = $region9
  $region8: #{transformer_forward.19} parent=0 // pred_region
    _
  $region9: #{transformer_forward.19} parent=0 // pred_fallthru
    _
  // Predicated region
  $region10: #{transformer_forward.19} parent=0 // pred_check
    _
  $region11: #{transformer_forward.19} parent=0 // pred_check_branch
    %14 = sbr.rel (0) target = $region13
  $region12: #{transformer_forward.19} parent=0 // pred_region
    _
  $region13: #{transformer_forward.19} parent=0 // pred_fallthru
    _
  // Predicated region
  $region14: #{transformer_forward.19} parent=0 // pred_check
    _
  $region15: #{transformer_forward.19} parent=0 // pred_check_branch
    %16 = sbr.rel (0) target = $region17
  $region16: #{transformer_forward.19} parent=0 // pred_region
    _
  $region17: #{transformer_forward.19} parent=0 // pred_fallthru
    _
  %v18 = vld [vmem:[%s0] sm:$0xf]
  %v19 = vld [vmem:[%s0 + $0x4] sm:$0xf]
  %v20 = vld [vmem:[%s1] sm:$0xf]
  %v21 = vld [vmem:[%s1 + $0x4] sm:$0xf]
  %v22 = vld [vmem:[%s2] sm:$0x1]
  %v24 = vperm.slane %v22, 0
  %v28 = vunpack.c.l.b16 %v18
  %v29 = vunpack.c.l.b16 %v19
  %v30 = vpack.c.b16 %v29, %v28
  %v33 = vunpack.c.l.b16 %v20
  %v34 = vunpack.c.l.b16 %v21
  %v35 = vpack.c.b16 %v34, %v33
  %vm37 = vcmask 130048
  %v39 = vsel %vm37, %v30, 0
  %41 = vmatpush.bf16.msra.mxu0 0
  %42 = vmatpush.bf16.msra.mxu0 0
  %43 = vmatpush.bf16.msra.mxu0 0
  %44 = vmatpush.bf16.msra.mxu0 0
  %45 = vmatpush.bf16.msra.mxu0 0
  %46 = vmatpush.bf16.msra.mxu0 0
  %47 = vmatpush.bf16.msra.mxu0 0
  %48 = vmatpush.bf16.msra.mxu0 %v35
  %49 = vmatmul.bf16.gmra.mxu0 %v39
  %v50 = vpop.f32.mrf.mxu0
  %v51 = vadd.f32 %v24, %v50
  %v52 = vpop.f32.mrf.mxu0
  %v53 = vadd.f32 %v24, %v52
  %54 = vdwg.mxu0
  %v55 = vld [vmem:[%s3] sm:$0xff]
  %v56 = vld [vmem:[%s3 + $0x8] sm:$0xff]
  %v57 = vadd.f32 %v51, %v55
  %v58 = vadd.f32 %v53, %v56
  %vm59 = vcmask 261120
  %v60 = vsel %vm59, %v57, 0.0
  %61 = vadd.xlane.f32.xlu0 %v60
  %v62 = vpop.xlane.xlu0 %61
  %v63 = vsel %vm59, %v58, 0.0
  %64 = vadd.xlane.f32.xlu0 %v63
  %v65 = vpop.xlane.xlu0 %64
  %v66 = vrcp.pop 32.0
  %v67 = vmul.f32 32.0, %v66
  %v68 = vsub.f32 1.0, %v67
  %v69 = vmul.f32 %v66, %v68
  %v70 = vadd.f32 %v66, %v69
  %vm71 = vweird.f32 %v66
  %v72 = vsel %vm71, %v66, %v70
  %v73 = vmul.f32 %v62, %v72
  %v74 = vmul.f32 %v65, %v72
  %v75 = vsub.f32 %v57, %v73
  %v76 = vsub.f32 %v58, %v74
  %v77 = vmul.f32 %v75, %v75
  %v78 = vmul.f32 %v76, %v76
  %v79 = vsel %vm59, %v77, 0.0
  %80 = vadd.xlane.f32.xlu0 %v79
  %v81 = vpop.xlane.xlu0 %80
  %v82 = vsel %vm59, %v78, 0.0
  %83 = vadd.xlane.f32.xlu0 %v82
  %v84 = vpop.xlane.xlu0 %83
  %v85 = vmul.f32 %v81, %v72
  %v86 = vmul.f32 %v84, %v72
  %v87 = vadd.f32 %v85, 1e-05
  %v88 = vadd.f32 %v86, 1e-05
  %v89 = vrsqrt.pop %v87
  %v90 = vmul.f32 %v89, %v87
  %v91 = vmul.f32 %v90, %v89
  %v92 = vmul.f32 0.5, %v91
  %v93 = vsub.f32 1.5, %v92
  %v94 = vmul.f32 %v89, %v93
  %vm95 = vweird.f32 %v87
  %vm96 = vweird.f32 %v89
  %vm97 = vmor %vm95, %vm96
  %v98 = vsel %vm97, %v89, %v94
  %v99 = vrsqrt.pop %v88
  %v100 = vmul.f32 %v99, %v88
  %v101 = vmul.f32 %v100, %v99
  %v102 = vmul.f32 0.5, %v101
  %v103 = vsub.f32 1.5, %v102
  %v104 = vmul.f32 %v99, %v103
  %vm105 = vweird.f32 %v88
  %vm106 = vweird.f32 %v99
  %vm107 = vmor %vm105, %vm106
  %v108 = vsel %vm107, %v99, %v104
  %v109 = vmul.f32 %v75, %v98
  %v110 = vmul.f32 %v76, %v108
  %111 = vst.msk [vmem:[%s4] sm:$0xff] %vm59, %v109
  %112 = vst.msk [vmem:[%s4 + $0x8] sm:$0xff] %vm59, %v110
  // Predicated region
  $region18: #{transformer_forward.19} parent=0 // pred_check
    _
  $region19: #{transformer_forward.19} parent=0 // pred_check_branch
    %114 = sbr.rel (0) target = $region21
  $region20: #{transformer_forward.19} parent=0 // pred_region
    _
  $region21: #{transformer_forward.19} parent=0 // pred_fallthru
    _
  // Predicated region
  $region22: #{transformer_forward.19} parent=0 // pred_check
    _
  $region23: #{transformer_forward.19} parent=0 // pred_check_branch
    %116 = sbr.rel (0) target = $region25
  $region24: #{transformer_forward.19} parent=0 // pred_region
    _
  $region25: #{transformer_forward.19} parent=0 // pred_fallthru
    _

// kernel: transformer_forward.17
$region0: #{transformer_forward.17}
  #allocation0 [shape = 'u32[]', space=smem, size = 0x4, offset = 0x4, fixed_abs, tag = 'smem constant byte address 0x4 - core index']
  #allocation1 [shape = 'u32[72,128]{1,0:T(1,128)}', space=vmem, size = 0x9000, scoped, tag = 'internal scratch']
  #allocation2 [shape = 'f32[16,48]{1,0:T(8,128)}', space=vmem, size = 0x2000, scoped, tag = 'scratch operand']
  %s0 = inlined_call_operand.vmem [shape: f32[16,32], index: 0, kind: input, shape index: {}]
  %s1 = inlined_call_operand.vmem [shape: bf16[32,48], index: 1, kind: input, shape index: {}]
  %s2 = inlined_call_operand.vmem [shape: f32[1,48], index: 2, kind: input, shape index: {}]
  %s3 = inlined_call_operand.vmem [shape: bf16[16,48], index: 3, kind: output, shape index: {}]
  %s4 = sld [smem:[#allocation0]]
  $region30: #{transformer_forward.17} parent=0
    _
  %s6 = ssub.s32 1, %s4
  %s7 = scalar_select 0, %s6, %s4
  // Predicated region
  $region2: #{transformer_forward.17} parent=0 // pred_check
    _
  $region3: #{transformer_forward.17} parent=0 // pred_check_branch
    %9 = sbr.rel (0) target = $region5
  $region4: #{transformer_forward.17} parent=0 // pred_region
    _
  $region5: #{transformer_forward.17} parent=0 // pred_fallthru
    _
  // Predicated region
  $region6: #{transformer_forward.17} parent=0 // pred_check
    _
  $region7: #{transformer_forward.17} parent=0 // pred_check_branch
    %11 = sbr.rel (0) target = $region9
  $region8: #{transformer_forward.17} parent=0 // pred_region
    _
  $region9: #{transformer_forward.17} parent=0 // pred_fallthru
    _
  // Predicated region
  $region10: #{transformer_forward.17} parent=0 // pred_check
    _
  $region11: #{transformer_forward.17} parent=0 // pred_check_branch
    %13 = sbr.rel (0) target = $region13
  $region12: #{transformer_forward.17} parent=0 // pred_region
    _
  $region13: #{transformer_forward.17} parent=0 // pred_fallthru
    _
  %p15 = scmp.eq.s32.totalorder 0, 0
  // Predicated region
  $region14: #{transformer_forward.17} parent=0 // pred_check
    %p16 = pneg %p15
  $region15: #{transformer_forward.17} parent=0 // pred_check_branch
    %18 = sbr.rel (%p16) target = $region17
  $region16: #{transformer_forward.17} parent=0 // pred_region
    %vm19 = vcmask 392192
    %20 = vst.msk [vmem:[#allocation2] sm:$0xff] %vm19, 0.0
    %21 = vst.msk [vmem:[#allocation2 + $0x8] sm:$0xff] %vm19, 0.0
  $region17: #{transformer_forward.17} parent=0 // pred_fallthru
    _
  %v22 = vld [vmem:[#allocation2] sm:$0xff]
  %v23 = vld [vmem:[#allocation2 + $0x8] sm:$0xff]
  %v24 = vld [vmem:[%s0] sm:$0xff]
  %v25 = vld [vmem:[%s0 + $0x8] sm:$0xff]
  %v26 = vpack.c.bf16 %v25, %v24
  %v27 = vld [vmem:[%s1] sm:$0xf]
  %v28 = vld [vmem:[%s1 + $0x4] sm:$0xf]
  %v29 = vld [vmem:[%s1 + $0x8] sm:$0xf]
  %v30 = vld [vmem:[%s1 + $0xc] sm:$0xf]
  %v35 = vunpack.c.l.b16 %v27
  %v36 = vunpack.c.l.b16 %v28
  %v37 = vunpack.c.l.b16 %v29
  %v38 = vunpack.c.l.b16 %v30
  %v39 = vpack.c.b16 %v36, %v35
  %v40 = vpack.c.b16 %v38, %v37
  %vm43 = vcmask 261120
  %v45 = vsel %vm43, %v26, 0
  %47 = vmatpush.bf16.msra.mxu0 0
  %48 = vmatpush.bf16.msra.mxu0 0
  %49 = vmatpush.bf16.msra.mxu0 0
  %50 = vmatpush.bf16.msra.mxu0 0
  %51 = vmatpush.bf16.msra.mxu0 0
  %52 = vmatpush.bf16.msra.mxu0 0
  %53 = vmatpush.bf16.msra.mxu0 %v40
  %54 = vmatpush.bf16.msra.mxu0 %v39
  %55 = vmatmul.bf16.gmra.mxu0 %v45
  %v56 = vpop.f32.mrf.mxu0
  %v57 = vadd.f32 0.0, %v56
  %v58 = vpop.f32.mrf.mxu0
  %v59 = vadd.f32 0.0, %v58
  %60 = vdwg.mxu0
  %v61 = vadd.f32 %v22, %v57
  %v62 = vadd.f32 %v23, %v59
  %vm63 = vcmask 392192
  %64 = vst.msk [vmem:[#allocation2] sm:$0xff] %vm63, %v61
  %65 = vst.msk [vmem:[#allocation2 + $0x8] sm:$0xff] %vm63, %v62
  // Predicated region
  $region18: #{transformer_forward.17} parent=0 // pred_check
    %p66 = pneg %p15
  $region19: #{transformer_forward.17} parent=0 // pred_check_branch
    %68 = sbr.rel (%p66) target = $region21
  $region20: #{transformer_forward.17} parent=0 // pred_region
    %v69 = vld [vmem:[#allocation2] sm:$0xff]
    %v70 = vld [vmem:[#allocation2 + $0x8] sm:$0xff]
    %v71 = vld [vmem:[%s2] sm:$0x1]
    %v73 = vperm.slane %v71, 0
    %v75 = vadd.f32 %v69, %v73
    %v76 = vadd.f32 %v70, %v73
    %v77 = vpack.c.bf16 %v75, %v75
    %v78 = vpack.c.bf16 %v76, %v76
    %vm79 = vcmask 388096
    %80 = vst.msk [vmem:[%s3] sm:$0xf] %vm79, %v77
    %81 = vst.msk [vmem:[%s3 + $0x4] sm:$0xf] %vm79, %v78
  $region21: #{transformer_forward.17} parent=0 // pred_fallthru
    _
  // Predicated region
  $region22: #{transformer_forward.17} parent=0 // pred_check
    _
  $region23: #{transformer_forward.17} parent=0 // pred_check_branch
    %83 = sbr.rel (0) target = $region25
  $region24: #{transformer_forward.17} parent=0 // pred_region
    _
  $region25: #{transformer_forward.17} parent=0 // pred_fallthru
    _
  // Predicated region
  $region26: #{transformer_forward.17} parent=0 // pred_check
    _
  $region27: #{transformer_forward.17} parent=0 // pred_check_branch
    %85 = sbr.rel (0) target = $region29
  $region28: #{transformer_forward.17} parent=0 // pred_region
    _
  $region29: #{transformer_forward.17} parent=0 // pred_fallthru
    _

// kernel: transformer_forward.20
$region0: #{transformer_forward.20}
  #allocation0 [shape = 'u32[]', space=smem, size = 0x4, offset = 0x4, fixed_abs, tag = 'smem constant byte address 0x4 - core index']
  #allocation1 [shape = 'u32[72,128]{1,0:T(1,128)}', space=vmem, size = 0x9000, scoped, tag = 'internal scratch']
  #allocation2 [shape = 'f32[16,16]{1,0:T(8,128)}', space=vmem, size = 0x2000, scoped, tag = 'scratch operand']
  %s0 = inlined_call_operand.vmem [shape: f32[16,32], index: 0, kind: input, shape index: {}]
  %s1 = inlined_call_operand.vmem [shape: bf16[32,16], index: 1, kind: input, shape index: {}]
  %s2 = inlined_call_operand.vmem [shape: f32[1,16], index: 2, kind: input, shape index: {}]
  %s3 = inlined_call_operand.vmem [shape: bf16[16,16], index: 3, kind: output, shape index: {}]
  %s4 = sld [smem:[#allocation0]]
  $region30: #{transformer_forward.20} parent=0
    _
  %s6 = ssub.s32 1, %s4
  %s7 = scalar_select 0, %s6, %s4
  // Predicated region
  $region2: #{transformer_forward.20} parent=0 // pred_check
    _
  $region3: #{transformer_forward.20} parent=0 // pred_check_branch
    %9 = sbr.rel (0) target = $region5
  $region4: #{transformer_forward.20} parent=0 // pred_region
    _
  $region5: #{transformer_forward.20} parent=0 // pred_fallthru
    _
  // Predicated region
  $region6: #{transformer_forward.20} parent=0 // pred_check
    _
  $region7: #{transformer_forward.20} parent=0 // pred_check_branch
    %11 = sbr.rel (0) target = $region9
  $region8: #{transformer_forward.20} parent=0 // pred_region
    _
  $region9: #{transformer_forward.20} parent=0 // pred_fallthru
    _
  // Predicated region
  $region10: #{transformer_forward.20} parent=0 // pred_check
    _
  $region11: #{transformer_forward.20} parent=0 // pred_check_branch
    %13 = sbr.rel (0) target = $region13
  $region12: #{transformer_forward.20} parent=0 // pred_region
    _
  $region13: #{transformer_forward.20} parent=0 // pred_fallthru
    _
  %p15 = scmp.eq.s32.totalorder 0, 0
  // Predicated region
  $region14: #{transformer_forward.20} parent=0 // pred_check
    %p16 = pneg %p15
  $region15: #{transformer_forward.20} parent=0 // pred_check_branch
    %18 = sbr.rel (%p16) target = $region17
  $region16: #{transformer_forward.20} parent=0 // pred_region
    %vm19 = vcmask 130048
    %20 = vst.msk [vmem:[#allocation2] sm:$0xff] %vm19, 0.0
    %21 = vst.msk [vmem:[#allocation2 + $0x8] sm:$0xff] %vm19, 0.0
  $region17: #{transformer_forward.20} parent=0 // pred_fallthru
    _
  %v22 = vld [vmem:[#allocation2] sm:$0xff]
  %v23 = vld [vmem:[#allocation2 + $0x8] sm:$0xff]
  %v24 = vld [vmem:[%s0] sm:$0xff]
  %v25 = vld [vmem:[%s0 + $0x8] sm:$0xff]
  %v26 = vpack.c.bf16 %v25, %v24
  %v27 = vld [vmem:[%s1] sm:$0xf]
  %v28 = vld [vmem:[%s1 + $0x4] sm:$0xf]
  %v29 = vld [vmem:[%s1 + $0x8] sm:$0xf]
  %v30 = vld [vmem:[%s1 + $0xc] sm:$0xf]
  %v35 = vunpack.c.l.b16 %v27
  %v36 = vunpack.c.l.b16 %v28
  %v37 = vunpack.c.l.b16 %v29
  %v38 = vunpack.c.l.b16 %v30
  %v39 = vpack.c.b16 %v36, %v35
  %v40 = vpack.c.b16 %v38, %v37
  %vm43 = vcmask 261120
  %v45 = vsel %vm43, %v26, 0
  %47 = vmatpush.bf16.msra.mxu0 0
  %48 = vmatpush.bf16.msra.mxu0 0
  %49 = vmatpush.bf16.msra.mxu0 0
  %50 = vmatpush.bf16.msra.mxu0 0
  %51 = vmatpush.bf16.msra.mxu0 0
  %52 = vmatpush.bf16.msra.mxu0 0
  %53 = vmatpush.bf16.msra.mxu0 %v40
  %54 = vmatpush.bf16.msra.mxu0 %v39
  %55 = vmatmul.bf16.gmra.mxu0 %v45
  %v56 = vpop.f32.mrf.mxu0
  %v57 = vadd.f32 0.0, %v56
  %v58 = vpop.f32.mrf.mxu0
  %v59 = vadd.f32 0.0, %v58
  %60 = vdwg.mxu0
  %v61 = vadd.f32 %v22, %v57
  %v62 = vadd.f32 %v23, %v59
  %vm63 = vcmask 130048
  %64 = vst.msk [vmem:[#allocation2] sm:$0xff] %vm63, %v61
  %65 = vst.msk [vmem:[#allocation2 + $0x8] sm:$0xff] %vm63, %v62
  // Predicated region
  $region18: #{transformer_forward.20} parent=0 // pred_check
    %p66 = pneg %p15
  $region19: #{transformer_forward.20} parent=0 // pred_check_branch
    %68 = sbr.rel (%p66) target = $region21
  $region20: #{transformer_forward.20} parent=0 // pred_region
    %v69 = vld [vmem:[#allocation2] sm:$0xff]
    %v70 = vld [vmem:[#allocation2 + $0x8] sm:$0xff]
    %v71 = vld [vmem:[%s2] sm:$0x1]
    %v73 = vperm.slane %v71, 0
    %v75 = vadd.f32 %v69, %v73
    %v76 = vadd.f32 %v70, %v73
    %v77 = vpack.c.bf16 %v75, %v75
    %v78 = vpack.c.bf16 %v76, %v76
    %vm79 = vcmask 125952
    %80 = vst.msk [vmem:[%s3] sm:$0xf] %vm79, %v77
    %81 = vst.msk [vmem:[%s3 + $0x4] sm:$0xf] %vm79, %v78
  $region21: #{transformer_forward.20} parent=0 // pred_fallthru
    _
  // Predicated region
  $region22: #{transformer_forward.20} parent=0 // pred_check
    _
  $region23: #{transformer_forward.20} parent=0 // pred_check_branch
    %83 = sbr.rel (0) target = $region25
  $region24: #{transformer_forward.20} parent=0 // pred_region
    _
  $region25: #{transformer_forward.20} parent=0 // pred_fallthru
    _
  // Predicated region
  $region26: #{transformer_forward.20} parent=0 // pred_check
    _
  $region27: #{transformer_forward.20} parent=0 // pred_check_branch
    %85 = sbr.rel (0) target = $region29
  $region28: #{transformer_forward.20} parent=0 // pred_region
    _
  $region29: #{transformer_forward.20} parent=0 // pred_fallthru
    _

// kernel: transformer_forward.18
$region0: #{transformer_forward.18}
  #allocation0 [shape = 'u32[]', space=smem, size = 0x4, offset = 0x4, fixed_abs, tag = 'smem constant byte address 0x4 - core index']
  #allocation1 [shape = 'u32[72,128]{1,0:T(1,128)}', space=vmem, size = 0x9000, scoped, tag = 'internal scratch']
  %s0 = inlined_call_operand.vmem [shape: bf16[2,2,8,8], index: 0, kind: input, shape index: {}]
  %s1 = inlined_call_operand.vmem [shape: bf16[2,2,8,8], index: 1, kind: input, shape index: {}]
  %s2 = inlined_call_operand.vmem [shape: bf16[2,2,8,8], index: 2, kind: input, shape index: {}]
  %s3 = inlined_call_operand.vmem [shape: f32[2,8,8], index: 3, kind: input, shape index: {}]
  %s4 = inlined_call_operand.vmem [shape: bf16[2,2,8,8], index: 4, kind: output, shape index: {0}]
  %s5 = inlined_call_operand.hbm [shape: f32[2,2,8,8], index: 5, kind: output, shape index: {1}]
  %6 = xla_tuple %s4, %s5
  %s7 = sld [smem:[#allocation0]]
  $region57: #{transformer_forward.18} parent=0
    _
  %s9 = ssub.s32 1, %s7
  %s10 = scalar_select 0, %s9, %s7
  $region1: #{transformer_forward.18} parent=0
    #allocation2 [shape = 'u8[16384]{0}', space=vmem, size = 0x4000, scoped, tag = 'output window, operand 1']
    #allocation3 [shape = 's32[2]{0}', space=sflag, size = 0x8, scoped, tag = 'scoped memory for transformer_forward.18']
    %11 = vsyncpa [#allocation3], 0
    %s12 = scalar_lea.sflag [#allocation3], 1
    %13 = vsyncpa %s12, 0
    loop: start=0, step=1, limit=4
    $region2: #{transformer_forward.18} parent=1 // loop_pre_header
      _
    $region3: #{transformer_forward.18} parent=1 // loop_header
      %s15 = sphi 0, %s19
      %p16 = scmp.ge.s32.totalorder %s15, 4
      %s22 = sphi 0, %s34
      %s23 = sphi 0, %s30
      %s24 = sphi 0, %s22
      %s25 = sphi 0, %s23
      %s26 = sphi 0, %s24
      %s27 = sphi 0, %s25
      %s39 = sphi 0, %s41
      %s42 = sphi 0, %s39
      %s43 = sphi 0, %s42
      %s59 = sphi 0, %s43
      %s67 = sphi 0, %s69
      %s70 = sphi 0, %s67
      %s71 = sphi 0, %s70
      %s87 = sphi 0, %s71
      %s95 = sphi 0, %s97
      %s98 = sphi 0, %s95
      %s99 = sphi 0, %s98
      %s115 = sphi 0, %s99
      %s121 = sphi 0, %s123
      %s124 = sphi 0, %s121
      %s125 = sphi 0, %s124
      %s141 = sphi 0, %s125
      %s149 = sphi 0, %s151
      %s152 = sphi 0, %s149
      %s153 = sphi 0, %s152
      %s169 = sphi 0, %s153
      %s177 = sphi 0, %s179
      %s180 = sphi 0, %s177
      %s181 = sphi 0, %s180
      %s197 = sphi 0, %s181
    $region4: #{transformer_forward.18} parent=1 // loop_header_branch
      %18 = sbr.rel (%p16) target = $region8
    $region5: #{transformer_forward.18} parent=1 // loop_body
      %s20 = ssub.s32 %s15, 1
      %s21 = ssub.s32 %s15, 2
      %s28 = sadd.s32 1, %s23
      %p29 = scmp.ge.s32.totalorder %s28, 1
      %s30 = scalar_select %p29, 0, %s28
      %s31 = sadd.s32 1, %s22
      %s32 = scalar_select %p29, %s31, %s22
      %p33 = scmp.ge.s32.totalorder %s32, 2
      %s34 = scalar_select %p33, 0, %s32
      %s35 = ssub.s32 %s22, %s34
      %s36 = ssub.s32 %s23, %s30
      %s37 = sor.u32 %s35, %s36
      %p38 = scmp.eq.s32.totalorder %s37, 0
      %s40 = sadd.s32 %s39, 1
      %s41 = scalar_select %p38, %s39, %s40
      %p44 = pneg %p38
      %p45 = scmp.eq.s32.totalorder %s15, 1
      %p46 = por %p44, %p45
      %p47 = scmp.ne.s32.totalorder %s39, %s42
      %p48 = scmp.eq.s32.totalorder %s15, 0
      %p49 = por %p47, %p48
      %p50 = scmp.ne.s32.totalorder %s39, %s42
      %p51 = scmp.eq.s32.totalorder %s20, 1
      %p52 = por %p50, %p51
      %p53 = scmp.ne.s32.totalorder %s42, %s43
      %p54 = scmp.eq.s32.totalorder %s20, 0
      %p55 = por %p53, %p54
      %p56 = scmp.ne.s32.totalorder %s42, %s43
      %p57 = scmp.eq.s32.totalorder %s21, 1
      %p58 = por %p56, %p57
      %p60 = scmp.ne.s32.totalorder %s43, %s59
      %p61 = scmp.eq.s32.totalorder %s21, 0
      %p62 = por %p60, %p61
      %s63 = ssub.s32 %s22, %s34
      %s64 = ssub.s32 %s23, %s30
      %s65 = sor.u32 %s63, %s64
      %p66 = scmp.eq.s32.totalorder %s65, 0
      %s68 = sadd.s32 %s67, 1
      %s69 = scalar_select %p66, %s67, %s68
      %p72 = pneg %p66
      %p73 = scmp.eq.s32.totalorder %s15, 1
      %p74 = por %p72, %p73
      %p75 = scmp.ne.s32.totalorder %s67, %s70
      %p76 = scmp.eq.s32.totalorder %s15, 0
      %p77 = por %p75, %p76
      %p78 = scmp.ne.s32.totalorder %s67, %s70
      %p79 = scmp.eq.s32.totalorder %s20, 1
      %p80 = por %p78, %p79
      %p81 = scmp.ne.s32.totalorder %s70, %s71
      %p82 = scmp.eq.s32.totalorder %s20, 0
      %p83 = por %p81, %p82
      %p84 = scmp.ne.s32.totalorder %s70, %s71
      %p85 = scmp.eq.s32.totalorder %s21, 1
      %p86 = por %p84, %p85
      %p88 = scmp.ne.s32.totalorder %s71, %s87
      %p89 = scmp.eq.s32.totalorder %s21, 0
      %p90 = por %p88, %p89
      %s91 = ssub.s32 %s22, %s34
      %s92 = ssub.s32 %s23, %s30
      %s93 = sor.u32 %s91, %s92
      %p94 = scmp.eq.s32.totalorder %s93, 0
      %s96 = sadd.s32 %s95, 1
      %s97 = scalar_select %p94, %s95, %s96
      %p100 = pneg %p94
      %p101 = scmp.eq.s32.totalorder %s15, 1
      %p102 = por %p100, %p101
      %p103 = scmp.ne.s32.totalorder %s95, %s98
      %p104 = scmp.eq.s32.totalorder %s15, 0
      %p105 = por %p103, %p104
      %p106 = scmp.ne.s32.totalorder %s95, %s98
      %p107 = scmp.eq.s32.totalorder %s20, 1
      %p108 = por %p106, %p107
      %p109 = scmp.ne.s32.totalorder %s98, %s99
      %p110 = scmp.eq.s32.totalorder %s20, 0
      %p111 = por %p109, %p110
      %p112 = scmp.ne.s32.totalorder %s98, %s99
      %p113 = scmp.eq.s32.totalorder %s21, 1
      %p114 = por %p112, %p113
      %p116 = scmp.ne.s32.totalorder %s99, %s115
      %p117 = scmp.eq.s32.totalorder %s21, 0
      %p118 = por %p116, %p117
      %s119 = ssub.s32 %s22, %s34
      %p120 = scmp.eq.s32.totalorder %s119, 0
      %s122 = sadd.s32 %s121, 1
      %s123 = scalar_select %p120, %s121, %s122
      %p126 = pneg %p120
      %p127 = scmp.eq.s32.totalorder %s15, 1
      %p128 = por %p126, %p127
      %p129 = scmp.ne.s32.totalorder %s121, %s124
      %p130 = scmp.eq.s32.totalorder %s15, 0
      %p131 = por %p129, %p130
      %p132 = scmp.ne.s32.totalorder %s121, %s124
      %p133 = scmp.eq.s32.totalorder %s20, 1
      %p134 = por %p132, %p133
      %p135 = scmp.ne.s32.totalorder %s124, %s125
      %p136 = scmp.eq.s32.totalorder %s20, 0
      %p137 = por %p135, %p136
      %p138 = scmp.ne.s32.totalorder %s124, %s125
      %p139 = scmp.eq.s32.totalorder %s21, 1
      %p140 = por %p138, %p139
      %p142 = scmp.ne.s32.totalorder %s125, %s141
      %p143 = scmp.eq.s32.totalorder %s21, 0
      %p144 = por %p142, %p143
      %s145 = ssub.s32 %s22, %s34
      %s146 = ssub.s32 %s23, %s30
      %s147 = sor.u32 %s145, %s146
      %p148 = scmp.eq.s32.totalorder %s147, 0
      %s150 = sadd.s32 %s149, 1
      %s151 = scalar_select %p148, %s149, %s150
      %p154 = pneg %p148
      %p155 = scmp.eq.s32.totalorder %s15, 1
      %p156 = por %p154, %p155
      %p157 = scmp.ne.s32.totalorder %s149, %s152
      %p158 = scmp.eq.s32.totalorder %s15, 0
      %p159 = por %p157, %p158
      %p160 = scmp.ne.s32.totalorder %s149, %s152
      %p161 = scmp.eq.s32.totalorder %s20, 1
      %p162 = por %p160, %p161
      %p163 = scmp.ne.s32.totalorder %s152, %s153
      %p164 = scmp.eq.s32.totalorder %s20, 0
      %p165 = por %p163, %p164
      %p166 = scmp.ne.s32.totalorder %s152, %s153
      %p167 = scmp.eq.s32.totalorder %s21, 1
      %p168 = por %p166, %p167
      %p170 = scmp.ne.s32.totalorder %s153, %s169
      %p171 = scmp.eq.s32.totalorder %s21, 0
      %p172 = por %p170, %p171
      %s173 = ssub.s32 %s22, %s34
      %s174 = ssub.s32 %s23, %s30
      %s175 = sor.u32 %s173, %s174
      %p176 = scmp.eq.s32.totalorder %s175, 0
      %s178 = sadd.s32 %s177, 1
      %s179 = scalar_select %p176, %s177, %s178
      %p182 = pneg %p176
      %p183 = scmp.eq.s32.totalorder %s15, 1
      %p184 = por %p182, %p183
      %p185 = scmp.ne.s32.totalorder %s177, %s180
      %p186 = scmp.eq.s32.totalorder %s15, 0
      %p187 = por %p185, %p186
      %p188 = scmp.ne.s32.totalorder %s177, %s180
      %p189 = scmp.eq.s32.totalorder %s20, 1
      %p190 = por %p188, %p189
      %p191 = scmp.ne.s32.totalorder %s180, %s181
      %p192 = scmp.eq.s32.totalorder %s20, 0
      %p193 = por %p191, %p192
      %p194 = scmp.ne.s32.totalorder %s180, %s181
      %p195 = scmp.eq.s32.totalorder %s21, 1
      %p196 = por %p194, %p195
      %p198 = scmp.ne.s32.totalorder %s181, %s197
      %p199 = scmp.eq.s32.totalorder %s21, 0
      %p200 = por %p198, %p199
      %p201 = scmp.le.s32.totalorder 1, %s15
      %p202 = scmp.lt.s32.totalorder %s15, 3
      %p203 = pnand %p201, %p202
      %p204 = pneg %p203
      // Predicated region
      $region9: #{transformer_forward.18} parent=5 // pred_check
        _
      $region10: #{transformer_forward.18} parent=5 // pred_check_branch
        %206 = sbr.rel (%p203) target = $region12
      $region11: #{transformer_forward.18} parent=5 // pred_region
        %s207 = ssub.s32 %s15, 1
      $region12: #{transformer_forward.18} parent=5 // pred_fallthru
        _
      %p208 = scmp.lt.s32.totalorder %s15, 2
      // Predicated region
      $region13: #{transformer_forward.18} parent=5 // pred_check
        %p209 = pneg %p208
      $region14: #{transformer_forward.18} parent=5 // pred_check_branch
        %211 = sbr.rel (%p209) target = $region16
      $region15: #{transformer_forward.18} parent=5 // pred_region
        // Predicated region
        $region17: #{transformer_forward.18} parent=15 // pred_check
          %p212 = pneg %p49
        $region18: #{transformer_forward.18} parent=15 // pred_check_branch
          %214 = sbr.rel (%p212) target = $region20
        $region19: #{transformer_forward.18} parent=15 // pred_region
          %s215 = smul.u32 2, %s23
          %p216 = scmp.lt.s32.totalorder %s22, 1
          %s217 = scalar_select %p216, %s22, 1
          %p218 = scmp.lt.s32.totalorder %s215, 1
          %s219 = scalar_select %p218, %s215, 1
          %s220 = smul.addr %s217, 2
          %s221 = sadd.s32 %s219, %s220
          %s222 = smul.addr %s221, 4
          %s223 = scalar_lea.vmem %s0, %s222
          %s224 = smul.u32 2, %s23
        $region20: #{transformer_forward.18} parent=15 // pred_fallthru
          _
        // Predicated region
        $region21: #{transformer_forward.18} parent=15 // pred_check
          %p225 = pneg %p77
        $region22: #{transformer_forward.18} parent=15 // pred_check_branch
          %227 = sbr.rel (%p225) target = $region24
        $region23: #{transformer_forward.18} parent=15 // pred_region
          %s228 = smul.u32 2, %s23
          %p229 = scmp.lt.s32.totalorder %s22, 1
          %s230 = scalar_select %p229, %s22, 1
          %p231 = scmp.lt.s32.totalorder %s228, 1
          %s232 = scalar_select %p231, %s228, 1
          %s233 = smul.addr %s230, 2
          %s234 = sadd.s32 %s232, %s233
          %s235 = smul.addr %s234, 4
          %s236 = scalar_lea.vmem %s1, %s235
          %s237 = smul.u32 2, %s23
        $region24: #{transformer_forward.18} parent=15 // pred_fallthru
          _
        // Predicated region
        $region25: #{transformer_forward.18} parent=15 // pred_check
          %p238 = pneg %p105
        $region26: #{transformer_forward.18} parent=15 // pred_check_branch
          %240 = sbr.rel (%p238) target = $region28
        $region27: #{transformer_forward.18} parent=15 // pred_region
          %s241 = smul.u32 2, %s23
          %p242 = scmp.lt.s32.totalorder %s22, 1
          %s243 = scalar_select %p242, %s22, 1
          %p244 = scmp.lt.s32.totalorder %s241, 1
          %s245 = scalar_select %p244, %s241, 1
          %s246 = smul.addr %s243, 2
          %s247 = sadd.s32 %s245, %s246
          %s248 = smul.addr %s247, 4
          %s249 = scalar_lea.vmem %s2, %s248
          %s250 = smul.u32 2, %s23
        $region28: #{transformer_forward.18} parent=15 // pred_fallthru
          _
        // Predicated region
        $region29: #{transformer_forward.18} parent=15 // pred_check
          %p251 = pneg %p131
        $region30: #{transformer_forward.18} parent=15 // pred_check_branch
          %253 = sbr.rel (%p251) target = $region32
        $region31: #{transformer_forward.18} parent=15 // pred_region
          %p254 = scmp.lt.s32.totalorder %s22, 1
          %s255 = scalar_select %p254, %s22, 1
          %s256 = smul.addr %s255, 8
          %s257 = scalar_lea.vmem %s3, %s256
        $region32: #{transformer_forward.18} parent=15 // pred_fallthru
          _
      $region16: #{transformer_forward.18} parent=5 // pred_fallthru
        _
      %p258 = scmp.le.s32.totalorder 1, %s15
      %p259 = scmp.lt.s32.totalorder %s15, 3
      %p260 = pnand %p258, %p259
      %p261 = pneg %p260
      // Predicated region
      $region33: #{transformer_forward.18} parent=5 // pred_check
        _
      $region34: #{transformer_forward.18} parent=5 // pred_check_branch
        %263 = sbr.rel (%p260) target = $region36
      $region35: #{transformer_forward.18} parent=5 // pred_region
        %s264 = ssub.s32 %s15, 1
        %s265 = smul.u32 2, %s25
        %p266 = scmp.lt.s32.totalorder %s24, 1
        %s267 = scalar_select %p266, %s24, 1
        %p268 = scmp.lt.s32.totalorder %s265, 1
        %s269 = scalar_select %p268, %s265, 1
        %s270 = smul.addr %s267, 2
        %s271 = sadd.s32 %s269, %s270
        %s272 = smul.addr %s271, 4
        %s273 = scalar_lea.vmem %s0, %s272
        %p274 = pneg %p55
        %p275 = pneg %p52
        %s276 = smul.u32 2, %s25
        %p277 = scmp.lt.s32.totalorder %s24, 1
        %s278 = scalar_select %p277, %s24, 1
        %p279 = scmp.lt.s32.totalorder %s276, 1
        %s280 = scalar_select %p279, %s276, 1
        %s281 = smul.addr %s278, 2
        %s282 = sadd.s32 %s280, %s281
        %s283 = smul.addr %s282, 4
        %s284 = scalar_lea.vmem %s1, %s283
        %p285 = pneg %p83
        %p286 = pneg %p80
        %s287 = smul.u32 2, %s25
        %p288 = scmp.lt.s32.totalorder %s24, 1
        %s289 = scalar_select %p288, %s24, 1
        %p290 = scmp.lt.s32.totalorder %s287, 1
        %s291 = scalar_select %p290, %s287, 1
        %s292 = smul.addr %s289, 2
        %s293 = sadd.s32 %s291, %s292
        %s294 = smul.addr %s293, 4
        %s295 = scalar_lea.vmem %s2, %s294
        %p296 = pneg %p111
        %p297 = pneg %p108
        %p298 = scmp.lt.s32.totalorder %s24, 1
        %s299 = scalar_select %p298, %s24, 1
        %s300 = smul.addr %s299, 8
        %s301 = scalar_lea.vmem %s3, %s300
        %p302 = pneg %p137
        %p303 = pneg %p134
        %p304 = pneg %p165
        %p305 = pneg %p162
        %s306 = smul.u32 2, %s25
        %p307 = scmp.lt.s32.totalorder %s24, 1
        %s308 = scalar_select %p307, %s24, 1
        %p309 = scmp.lt.s32.totalorder %s306, 1
        %s310 = scalar_select %p309, %s306, 1
        %s311 = smul.addr %s308, 2
        %s312 = sadd.s32 %s310, %s311
        %s313 = smul.addr %s312, 4
        %s314 = scalar_lea.vmem %s4, %s313
        %p315 = pneg %p193
        %p316 = pneg %p190
        %s317 = sand.u32 %s180, 1
        %s318 = scalar_lea.sflag [#allocation3], %s317
        %s319 = sand.u32 %s180, 1
        %s320 = smul.addr %s319, 16
        %s321 = scalar_lea.vmem [#allocation2], %s320
        %s322 = smul.u32 2, %s25
        %p323 = scmp.lt.s32.totalorder %s24, 1
        %s324 = scalar_select %p323, %s24, 1
        %p325 = scmp.lt.s32.totalorder %s322, 1
        %s326 = scalar_select %p325, %s322, 1
        %s327 = smul.addr %s324, 2
        %s328 = sadd.s32 %s326, %s327
        %s329 = smul.addr %s328, 4
        %s330 = scalar_lea.vmem %s0, %s329
        %s331 = smul.u32 2, %s25
        %s332 = smul.u32 2, %s25
        %p333 = scmp.lt.s32.totalorder %s24, 1
        %s334 = scalar_select %p333, %s24, 1
        %p335 = scmp.lt.s32.totalorder %s332, 1
        %s336 = scalar_select %p335, %s332, 1
        %s337 = smul.addr %s334, 2
        %s338 = sadd.s32 %s336, %s337
        %s339 = smul.addr %s338, 4
        %s340 = scalar_lea.vmem %s1, %s339
        %s341 = smul.u32 2, %s25
        %s342 = smul.u32 2, %s25
        %p343 = scmp.lt.s32.totalorder %s24, 1
        %s344 = scalar_select %p343, %s24, 1
        %p345 = scmp.lt.s32.totalorder %s342, 1
        %s346 = scalar_select %p345, %s342, 1
        %s347 = smul.addr %s344, 2
        %s348 = sadd.s32 %s346, %s347
        %s349 = smul.addr %s348, 4
        %s350 = scalar_lea.vmem %s2, %s349
        %s351 = smul.u32 2, %s25
        %p352 = scmp.lt.s32.totalorder %s24, 1
        %s353 = scalar_select %p352, %s24, 1
        %s354 = smul.addr %s353, 8
        %s355 = scalar_lea.vmem %s3, %s354
        %s356 = smul.u32 2, %s25
        %p357 = scmp.lt.s32.totalorder %s24, 1
        %s358 = scalar_select %p357, %s24, 1
        %p359 = scmp.lt.s32.totalorder %s356, 1
        %s360 = scalar_select %p359, %s356, 1
        %s361 = smul.addr %s358, 2
        %s362 = sadd.s32 %s360, %s361
        %s363 = smul.addr %s362, 4
        %s364 = scalar_lea.vmem %s4, %s363
        %s365 = smul.u32 2, %s25
        %s366 = smul.u32 2, %s25
        %v368 = vld [vmem:[%s330] sm:$0xf]
        %v369 = vld [vmem:[%s330 + $0x4] sm:$0xf]
        %v370 = vld [vmem:[%s340] sm:$0xf]
        %v371 = vld [vmem:[%s340 + $0x4] sm:$0xf]
        %v372 = vld [vmem:[%s350] sm:$0xf]
        %v373 = vld [vmem:[%s350 + $0x4] sm:$0xf]
        %vm374 = vcmask 64512
        %v376 = vsel %vm374, %v368, 0
        %v379 = vsel %vm374, %v370, 0
        %381 = vmatpush.bf16.xpose.msra.mxu0 0
        %382 = vmatpush.bf16.xpose.msra.mxu0 0
        %383 = vmatpush.bf16.xpose.msra.mxu0 0
        %384 = vmatpush.bf16.xpose.msra.mxu0 0
        %385 = vmatpush.bf16.xpose.msra.mxu0 0
        %386 = vmatpush.bf16.xpose.msra.mxu0 0
        %387 = vmatpush.bf16.xpose.msra.mxu0 0
        %388 = vmatpush.bf16.xpose.msra.mxu0 %v379
        %389 = vmatmul.bf16.gmra.mxu0 %v376
        %v390 = vpop.f32.mrf.mxu0
        %v391 = vadd.f32 0.0, %v390
        %v392 = vpop.f32.mrf.mxu0
        %393 = vdwg.mxu0
        %v395 = vsel %vm374, %v369, 0
        %v398 = vsel %vm374, %v371, 0
        %400 = vmatpush.bf16.xpose.msra.mxu0 0
        %401 = vmatpush.bf16.xpose.msra.mxu0 0
        %402 = vmatpush.bf16.xpose.msra.mxu0 0
        %403 = vmatpush.bf16.xpose.msra.mxu0 0
        %404 = vmatpush.bf16.xpose.msra.mxu0 0
        %405 = vmatpush.bf16.xpose.msra.mxu0 0
        %406 = vmatpush.bf16.xpose.msra.mxu0 0
        %407 = vmatpush.bf16.xpose.msra.mxu0 %v398
        %408 = vmatmul.bf16.gmra.mxu0 %v395
        %v409 = vpop.f32.mrf.mxu0
        %v410 = vadd.f32 0.0, %v409
        %v411 = vpop.f32.mrf.mxu0
        %412 = vdwg.mxu0
        %v413 = vmul.f32 %v391, 0.35355338
        %v414 = vmul.f32 %v410, 0.35355338
        %v415 = vld [vmem:[%s355] sm:$0xff]
        %vm416 = vcmp.gt.f32.partialorder %v415, 0.5
        %v417 = vsel %vm416, 1, 0
        %vm418 = vcmp.eq.s32.totalorder %v417, 1
        %v419 = vsel %vm418, -1e+09, %v413
        %v420 = vsel %vm418, -1e+09, %v414
        %v421 = vsel %vm374, %v419, -inf
        %422 = vmax.xlane.f32.xlu0 %v421
        %v423 = vpop.xlane.xlu0 %422
        %v424 = vsel %vm374, %v420, -inf
        %425 = vmax.xlane.f32.xlu0 %v424
        %v426 = vpop.xlane.xlu0 %425
        %v427 = vsub.f32 %v419, %v423
        %v428 = vsub.f32 %v420, %v426
        %v429 = vmul.f32 %v427, 1.442695
        %v430 = vpow.pop %v429
        %v431 = vmul.f32 %v428, 1.442695
        %v432 = vpow.pop %v431
        %v433 = vsel %vm374, %v430, 0.0
        %434 = vadd.xlane.f32.xlu0 %v433
        %v435 = vpop.xlane.xlu0 %434
        %v436 = vsel %vm374, %v432, 0.0
        %437 = vadd.xlane.f32.xlu0 %v436
        %v438 = vpop.xlane.xlu0 %437
        %v439 = vrcp.pop %v435
        %v440 = vrcp.pop %v438
        %v441 = vmul.f32 %v430, %v439
        %v442 = vmul.f32 %v432, %v440
        %v443 = vpack.c.bf16 %v441, %v441
        %v444 = vpack.c.bf16 %v442, %v442
        %v446 = vsel %vm374, %v443, 0
        %vm448 = vcmask 1043456
        %v450 = vsel %vm448, %v372, 0
        %452 = vmatpush.bf16.msra.mxu0 0
        %453 = vmatpush.bf16.msra.mxu0 0
        %454 = vmatpush.bf16.msra.mxu0 0
        %455 = vmatpush.bf16.msra.mxu0 0
        %456 = vmatpush.bf16.msra.mxu0 0
        %457 = vmatpush.bf16.msra.mxu0 0
        %458 = vmatpush.bf16.msra.mxu0 0
        %459 = vmatpush.bf16.msra.mxu0 %v450
        %460 = vmatmul.bf16.gmra.mxu0 %v446
        %v461 = vpop.f32.mrf.mxu0
        %v462 = vadd.f32 0.0, %v461
        %v463 = vpop.f32.mrf.mxu0
        %464 = vdwg.mxu0
        %v466 = vsel %vm374, %v444, 0
        %v469 = vsel %vm448, %v373, 0
        %471 = vmatpush.bf16.msra.mxu0 0
        %472 = vmatpush.bf16.msra.mxu0 0
        %473 = vmatpush.bf16.msra.mxu0 0
        %474 = vmatpush.bf16.msra.mxu0 0
        %475 = vmatpush.bf16.msra.mxu0 0
        %476 = vmatpush.bf16.msra.mxu0 0
        %477 = vmatpush.bf16.msra.mxu0 0
        %478 = vmatpush.bf16.msra.mxu0 %v469
        %479 = vmatmul.bf16.gmra.mxu0 %v466
        %v480 = vpop.f32.mrf.mxu0
        %v481 = vadd.f32 0.0, %v480
        %v482 = vpop.f32.mrf.mxu0
        %483 = vdwg.mxu0
        %v484 = vpack.c.bf16 %v462, %v462
        %v485 = vpack.c.bf16 %v481, %v481
        %vm486 = vcmask 60416
        %487 = vst.msk [vmem:[%s364] sm:$0xf] %vm486, %v484
        %488 = vst.msk [vmem:[%s364 + $0x4] sm:$0xf] %vm486, %v485
        %489 = vst.msk [vmem:[%s321] sm:$0xff] %vm374, %v441
        %490 = vst.msk [vmem:[%s321 + $0x8] sm:$0xff] %vm374, %v442
        %s491 = smul.u32 2, %s25
        %p492 = scmp.lt.s32.totalorder %s24, 1
        %s493 = scalar_select %p492, %s24, 1
        %p494 = scmp.lt.s32.totalorder %s491, 1
        %s495 = scalar_select %p494, %s491, 1
        %s496 = smul.addr %s493, 2
        %s497 = sadd.s32 %s495, %s496
        %s498 = smul.addr %s497, 4
        %s499 = scalar_lea.vmem %s4, %s498
        %s500 = sand.u32 %s180, 1
        %s501 = scalar_lea.sflag [#allocation3], %s500
        %s502 = sand.u32 %s180, 1
        %s503 = smul.addr %s502, 16
        %s504 = scalar_lea.vmem [#allocation2], %s503
        // Predicated region
        $region37: #{transformer_forward.18} parent=35 // pred_check
          %p505 = pneg %p162
        $region38: #{transformer_forward.18} parent=35 // pred_check_branch
          %507 = sbr.rel (%p505) target = $region40
        $region39: #{transformer_forward.18} parent=35 // pred_region
          %s508 = smul.u32 2, %s25
        $region40: #{transformer_forward.18} parent=35 // pred_fallthru
          _
        // Predicated region
        $region41: #{transformer_forward.18} parent=35 // pred_check
          %p509 = pneg %p190
        $region42: #{transformer_forward.18} parent=35 // pred_check_branch
          %511 = sbr.rel (%p509) target = $region44
        $region43: #{transformer_forward.18} parent=35 // pred_region
          %s512 = smul.u32 2, %s25
          %514 = vsyncadd %s501, 0
          %s515 = smul.addr %s24, 2
          %s516 = sadd.s32 %s512, %s515
          %s517 = smul.addr %s516, 8
          %s518 = scalar_lea.hbm %s5, %s517
          %s519 = sshll.u32 %s504, 4
          %s520 = int_to_ptr.vmem [resolvable:$true] %s519
          %s521 = sshll.u32 %s518, 4
          %s522 = int_to_ptr.hbm [resolvable:$true] %s521
          %527 = dma.vmem_to_hbm [thread:$0]  %s520, 256, %s522, %s501, 128, 128, 8
        $region44: #{transformer_forward.18} parent=35 // pred_fallthru
          _
      $region36: #{transformer_forward.18} parent=5 // pred_fallthru
        _
      %p528 = scmp.le.s32.totalorder 2, %s15
      // Predicated region
      $region45: #{transformer_forward.18} parent=5 // pred_check
        %p529 = pneg %p528
      $region46: #{transformer_forward.18} parent=5 // pred_check_branch
        %531 = sbr.rel (%p529) target = $region48
      $region47: #{transformer_forward.18} parent=5 // pred_region
        %s532 = ssub.s32 %s15, 2
        // Predicated region
        $region49: #{transformer_forward.18} parent=47 // pred_check
          %p533 = pneg %p168
        $region50: #{transformer_forward.18} parent=47 // pred_check_branch
          %535 = sbr.rel (%p533) target = $region52
        $region51: #{transformer_forward.18} parent=47 // pred_region
          %s536 = smul.u32 2, %s27
          %p537 = scmp.lt.s32.totalorder %s26, 1
          %s538 = scalar_select %p537, %s26, 1
          %p539 = scmp.lt.s32.totalorder %s536, 1
          %s540 = scalar_select %p539, %s536, 1
          %s541 = smul.addr %s538, 2
          %s542 = sadd.s32 %s540, %s541
          %s543 = smul.addr %s542, 4
          %s544 = scalar_lea.vmem %s4, %s543
        $region52: #{transformer_forward.18} parent=47 // pred_fallthru
          _
        // Predicated region
        $region53: #{transformer_forward.18} parent=47 // pred_check
          %p545 = pneg %p196
        $region54: #{transformer_forward.18} parent=47 // pred_check_branch
          %547 = sbr.rel (%p545) target = $region56
        $region55: #{transformer_forward.18} parent=47 // pred_region
          %s548 = sand.u32 %s181, 1
          %s549 = scalar_lea.sflag [#allocation3], %s548
          %s550 = sand.u32 %s181, 1
          %s551 = smul.addr %s550, 16
          %s552 = scalar_lea.vmem [#allocation2], %s551
          %554 = dma.done %s549, 256
        $region56: #{transformer_forward.18} parent=47 // pred_fallthru
          _
      $region48: #{transformer_forward.18} parent=5 // pred_fallthru
        _
    $region6: #{transformer_forward.18} parent=1 // loop_footer
      %s19 = sadd.s32 1, %s15
    $region7: #{transformer_forward.18} parent=1 // loop_footer_branch
      %14 = sbr.rel target = $region3
    $region8: #{transformer_forward.18} parent=1 // loop_exit
      _
    %555 = vsyncpa [#allocation3], 1
    %s556 = scalar_lea.sflag [#allocation3], 1
    %557 = vsyncpa %s556, 1

// kernel: transformer_forward.13
$region0: #{transformer_forward.13}
  #allocation0 [shape = 'u32[]', space=smem, size = 0x4, offset = 0x4, fixed_abs, tag = 'smem constant byte address 0x4 - core index']
  #allocation1 [shape = 'u32[72,128]{1,0:T(1,128)}', space=vmem, size = 0x9000, scoped, tag = 'internal scratch']
  #allocation2 [shape = 'f32[32,48]{1,0:T(8,128)}', space=vmem, size = 0x4000, scoped, tag = 'scratch operand']
  %s0 = inlined_call_operand.vmem [shape: f32[32,32], index: 0, kind: input, shape index: {}]
  %s1 = inlined_call_operand.vmem [shape: bf16[32,48], index: 1, kind: input, shape index: {}]
  %s2 = inlined_call_operand.vmem [shape: f32[1,48], index: 2, kind: input, shape index: {}]
  %s3 = inlined_call_operand.vmem [shape: bf16[32,48], index: 3, kind: output, shape index: {}]
  %s4 = sld [smem:[#allocation0]]
  $region30: #{transformer_forward.13} parent=0
    _
  %s6 = ssub.s32 1, %s4
  %s7 = scalar_select 0, %s6, %s4
  // Predicated region
  $region2: #{transformer_forward.13} parent=0 // pred_check
    _
  $region3: #{transformer_forward.13} parent=0 // pred_check_branch
    %9 = sbr.rel (0) target = $region5
  $region4: #{transformer_forward.13} parent=0 // pred_region
    _
  $region5: #{transformer_forward.13} parent=0 // pred_fallthru
    _
  // Predicated region
  $region6: #{transformer_forward.13} parent=0 // pred_check
    _
  $region7: #{transformer_forward.13} parent=0 // pred_check_branch
    %11 = sbr.rel (0) target = $region9
  $region8: #{transformer_forward.13} parent=0 // pred_region
    _
  $region9: #{transformer_forward.13} parent=0 // pred_fallthru
    _
  // Predicated region
  $region10: #{transformer_forward.13} parent=0 // pred_check
    _
  $region11: #{transformer_forward.13} parent=0 // pred_check_branch
    %13 = sbr.rel (0) target = $region13
  $region12: #{transformer_forward.13} parent=0 // pred_region
    _
  $region13: #{transformer_forward.13} parent=0 // pred_fallthru
    _
  %p15 = scmp.eq.s32.totalorder 0, 0
  // Predicated region
  $region14: #{transformer_forward.13} parent=0 // pred_check
    %p16 = pneg %p15
  $region15: #{transformer_forward.13} parent=0 // pred_check_branch
    %18 = sbr.rel (%p16) target = $region17
  $region16: #{transformer_forward.13} parent=0 // pred_region
    %vm19 = vcmask 392192
    %20 = vst.msk [vmem:[#allocation2] sm:$0xff] %vm19, 0.0
    %21 = vst.msk [vmem:[#allocation2 + $0x8] sm:$0xff] %vm19, 0.0
    %22 = vst.msk [vmem:[#allocation2 + $0x10] sm:$0xff] %vm19, 0.0
    %23 = vst.msk [vmem:[#allocation2 + $0x18] sm:$0xff] %vm19, 0.0
  $region17: #{transformer_forward.13} parent=0 // pred_fallthru
    _
  %v24 = vld [vmem:[#allocation2] sm:$0xff]
  %v25 = vld [vmem:[#allocation2 + $0x8] sm:$0xff]
  %v26 = vld [vmem:[#allocation2 + $0x10] sm:$0xff]
  %v27 = vld [vmem:[#allocation2 + $0x18] sm:$0xff]
  %v28 = vld [vmem:[%s0] sm:$0xff]
  %v29 = vld [vmem:[%s0 + $0x8] sm:$0xff]
  %v30 = vld [vmem:[%s0 + $0x10] sm:$0xff]
  %v31 = vld [vmem:[%s0 + $0x18] sm:$0xff]
  %v32 = vpack.c.bf16 %v29, %v28
  %v33 = vpack.c.bf16 %v31, %v30
  %v34 = vld [vmem:[%s1] sm:$0xf]
  %v35 = vld [vmem:[%s1 + $0x4] sm:$0xf]
  %v36 = vld [vmem:[%s1 + $0x8] sm:$0xf]
  %v37 = vld [vmem:[%s1 + $0xc] sm:$0xf]
  %v42 = vunpack.c.l.b16 %v34
  %v43 = vunpack.c.l.b16 %v35
  %v44 = vunpack.c.l.b16 %v36
  %v45 = vunpack.c.l.b16 %v37
  %v46 = vpack.c.b16 %v43, %v42
  %v47 = vpack.c.b16 %v45, %v44
  %vm50 = vcmask 261120
  %v52 = vsel %vm50, %v32, 0
  %v55 = vsel %vm50, %v33, 0
  %57 = vmatpush.bf16.msra.mxu0 0
  %58 = vmatpush.bf16.msra.mxu0 0
  %59 = vmatpush.bf16.msra.mxu0 0
  %60 = vmatpush.bf16.msra.mxu0 0
  %61 = vmatpush.bf16.msra.mxu0 0
  %62 = vmatpush.bf16.msra.mxu0 0
  %63 = vmatpush.bf16.msra.mxu0 %v47
  %64 = vmatpush.bf16.msra.mxu0 %v46
  %65 = vmatmul.bf16.gmra.mxu0 %v52
  %v66 = vpop.f32.mrf.mxu0
  %v67 = vadd.f32 0.0, %v66
  %v68 = vpop.f32.mrf.mxu0
  %v69 = vadd.f32 0.0, %v68
  %70 = vmatmul.bf16.gmra.mxu0 %v55
  %v71 = vpop.f32.mrf.mxu0
  %v72 = vadd.f32 0.0, %v71
  %v73 = vpop.f32.mrf.mxu0
  %v74 = vadd.f32 0.0, %v73
  %75 = vdwg.mxu0
  %v76 = vadd.f32 %v24, %v67
  %v77 = vadd.f32 %v25, %v69
  %v78 = vadd.f32 %v26, %v72
  %v79 = vadd.f32 %v27, %v74
  %vm80 = vcmask 392192
  %81 = vst.msk [vmem:[#allocation2] sm:$0xff] %vm80, %v76
  %82 = vst.msk [vmem:[#allocation2 + $0x8] sm:$0xff] %vm80, %v77
  %83 = vst.msk [vmem:[#allocation2 + $0x10] sm:$0xff] %vm80, %v78
  %84 = vst.msk [vmem:[#allocation2 + $0x18] sm:$0xff] %vm80, %v79
  // Predicated region
  $region18: #{transformer_forward.13} parent=0 // pred_check
    %p85 = pneg %p15
  $region19: #{transformer_forward.13} parent=0 // pred_check_branch
    %87 = sbr.rel (%p85) target = $region21
  $region20: #{transformer_forward.13} parent=0 // pred_region
    %v88 = vld [vmem:[#allocation2] sm:$0xff]
    %v89 = vld [vmem:[#allocation2 + $0x8] sm:$0xff]
    %v90 = vld [vmem:[#allocation2 + $0x10] sm:$0xff]
    %v91 = vld [vmem:[#allocation2 + $0x18] sm:$0xff]
    %v92 = vld [vmem:[%s2] sm:$0x1]
    %v94 = vperm.slane %v92, 0
    %v96 = vadd.f32 %v88, %v94
    %v97 = vadd.f32 %v89, %v94
    %v98 = vadd.f32 %v90, %v94
    %v99 = vadd.f32 %v91, %v94
    %v100 = vpack.c.bf16 %v96, %v96
    %v101 = vpack.c.bf16 %v97, %v97
    %v102 = vpack.c.bf16 %v98, %v98
    %v103 = vpack.c.bf16 %v99, %v99
    %vm104 = vcmask 388096
    %105 = vst.msk [vmem:[%s3] sm:$0xf] %vm104, %v100
    %106 = vst.msk [vmem:[%s3 + $0x4] sm:$0xf] %vm104, %v101
    %107 = vst.msk [vmem:[%s3 + $0x8] sm:$0xf] %vm104, %v102
    %108 = vst.msk [vmem:[%s3 + $0xc] sm:$0xf] %vm104, %v103
  $region21: #{transformer_forward.13} parent=0 // pred_fallthru
    _
  // Predicated region
  $region22: #{transformer_forward.13} parent=0 // pred_check
    _
  $region23: #{transformer_forward.13} parent=0 // pred_check_branch
    %110 = sbr.rel (0) target = $region25
  $region24: #{transformer_forward.13} parent=0 // pred_region
    _
  $region25: #{transformer_forward.13} parent=0 // pred_fallthru
    _
  // Predicated region
  $region26: #{transformer_forward.13} parent=0 // pred_check
    _
  $region27: #{transformer_forward.13} parent=0 // pred_check_branch
    %112 = sbr.rel (0) target = $region29
  $region28: #{transformer_forward.13} parent=0 // pred_region
    _
  $region29: #{transformer_forward.13} parent=0 // pred_fallthru
    _

// kernel: transformer_forward.14
$region0: #{transformer_forward.14}
  #allocation0 [shape = 'u32[]', space=smem, size = 0x4, offset = 0x4, fixed_abs, tag = 'smem constant byte address 0x4 - core index']
  #allocation1 [shape = 'u32[72,128]{1,0:T(1,128)}', space=vmem, size = 0x9000, scoped, tag = 'internal scratch']
  %s0 = inlined_call_operand.vmem [shape: bf16[2,2,16,8], index: 0, kind: input, shape index: {}]
  %s1 = inlined_call_operand.vmem [shape: bf16[2,2,16,8], index: 1, kind: input, shape index: {}]
  %s2 = inlined_call_operand.vmem [shape: bf16[2,2,16,8], index: 2, kind: input, shape index: {}]
  %s3 = inlined_call_operand.vmem [shape: bf16[2,2,16,8], index: 3, kind: output, shape index: {0}]
  %s4 = inlined_call_operand.hbm [shape: f32[2,2,16,16], index: 4, kind: output, shape index: {1}]
  %5 = xla_tuple %s3, %s4
  %s6 = sld [smem:[#allocation0]]
  $region53: #{transformer_forward.14} parent=0
    _
  %s8 = ssub.s32 1, %s6
  %s9 = scalar_select 0, %s8, %s6
  $region1: #{transformer_forward.14} parent=0
    #allocation2 [shape = 'u8[32768]{0}', space=vmem, size = 0x8000, scoped, tag = 'output window, operand 1']
    #allocation3 [shape = 's32[2]{0}', space=sflag, size = 0x8, scoped, tag = 'scoped memory for transformer_forward.14']
    %10 = vsyncpa [#allocation3], 0
    %s11 = scalar_lea.sflag [#allocation3], 1
    %12 = vsyncpa %s11, 0
    loop: start=0, step=1, limit=4
    $region2: #{transformer_forward.14} parent=1 // loop_pre_header
      _
    $region3: #{transformer_forward.14} parent=1 // loop_header
      %s14 = sphi 0, %s18
      %p15 = scmp.ge.s32.totalorder %s14, 4
      %s21 = sphi 0, %s33
      %s22 = sphi 0, %s29
      %s23 = sphi 0, %s21
      %s24 = sphi 0, %s22
      %s25 = sphi 0, %s23
      %s26 = sphi 0, %s24
      %s38 = sphi 0, %s40
      %s41 = sphi 0, %s38
      %s42 = sphi 0, %s41
      %s58 = sphi 0, %s42
      %s66 = sphi 0, %s68
      %s69 = sphi 0, %s66
      %s70 = sphi 0, %s69
      %s86 = sphi 0, %s70
      %s94 = sphi 0, %s96
      %s97 = sphi 0, %s94
      %s98 = sphi 0, %s97
      %s114 = sphi 0, %s98
      %s122 = sphi 0, %s124
      %s125 = sphi 0, %s122
      %s126 = sphi 0, %s125
      %s142 = sphi 0, %s126
      %s150 = sphi 0, %s152
      %s153 = sphi 0, %s150
      %s154 = sphi 0, %s153
      %s170 = sphi 0, %s154
    $region4: #{transformer_forward.14} parent=1 // loop_header_branch
      %17 = sbr.rel (%p15) target = $region8
    $region5: #{transformer_forward.14} parent=1 // loop_body
      %s19 = ssub.s32 %s14, 1
      %s20 = ssub.s32 %s14, 2
      %s27 = sadd.s32 1, %s22
      %p28 = scmp.ge.s32.totalorder %s27, 1
      %s29 = scalar_select %p28, 0, %s27
      %s30 = sadd.s32 1, %s21
      %s31 = scalar_select %p28, %s30, %s21
      %p32 = scmp.ge.s32.totalorder %s31, 2
      %s33 = scalar_select %p32, 0, %s31
      %s34 = ssub.s32 %s21, %s33
      %s35 = ssub.s32 %s22, %s29
      %s36 = sor.u32 %s34, %s35
      %p37 = scmp.eq.s32.totalorder %s36, 0
      %s39 = sadd.s32 %s38, 1
      %s40 = scalar_select %p37, %s38, %s39
      %p43 = pneg %p37
      %p44 = scmp.eq.s32.totalorder %s14, 1
      %p45 = por %p43, %p44
      %p46 = scmp.ne.s32.totalorder %s38, %s41
      %p47 = scmp.eq.s32.totalorder %s14, 0
      %p48 = por %p46, %p47
      %p49 = scmp.ne.s32.totalorder %s38, %s41
      %p50 = scmp.eq.s32.totalorder %s19, 1
      %p51 = por %p49, %p50
      %p52 = scmp.ne.s32.totalorder %s41, %s42
      %p53 = scmp.eq.s32.totalorder %s19, 0
      %p54 = por %p52, %p53
      %p55 = scmp.ne.s32.totalorder %s41, %s42
      %p56 = scmp.eq.s32.totalorder %s20, 1
      %p57 = por %p55, %p56
      %p59 = scmp.ne.s32.totalorder %s42, %s58
      %p60 = scmp.eq.s32.totalorder %s20, 0
      %p61 = por %p59, %p60
      %s62 = ssub.s32 %s21, %s33
      %s63 = ssub.s32 %s22, %s29
      %s64 = sor.u32 %s62, %s63
      %p65 = scmp.eq.s32.totalorder %s64, 0
      %s67 = sadd.s32 %s66, 1
      %s68 = scalar_select %p65, %s66, %s67
      %p71 = pneg %p65
      %p72 = scmp.eq.s32.totalorder %s14, 1
      %p73 = por %p71, %p72
      %p74 = scmp.ne.s32.totalorder %s66, %s69
      %p75 = scmp.eq.s32.totalorder %s14, 0
      %p76 = por %p74, %p75
      %p77 = scmp.ne.s32.totalorder %s66, %s69
      %p78 = scmp.eq.s32.totalorder %s19, 1
      %p79 = por %p77, %p78
      %p80 = scmp.ne.s32.totalorder %s69, %s70
      %p81 = scmp.eq.s32.totalorder %s19, 0
      %p82 = por %p80, %p81
      %p83 = scmp.ne.s32.totalorder %s69, %s70
      %p84 = scmp.eq.s32.totalorder %s20, 1
      %p85 = por %p83, %p84
      %p87 = scmp.ne.s32.totalorder %s70, %s86
      %p88 = scmp.eq.s32.totalorder %s20, 0
      %p89 = por %p87, %p88
      %s90 = ssub.s32 %s21, %s33
      %s91 = ssub.s32 %s22, %s29
      %s92 = sor.u32 %s90, %s91
      %p93 = scmp.eq.s32.totalorder %s92, 0
      %s95 = sadd.s32 %s94, 1
      %s96 = scalar_select %p93, %s94, %s95
      %p99 = pneg %p93
      %p100 = scmp.eq.s32.totalorder %s14, 1
      %p101 = por %p99, %p100
      %p102 = scmp.ne.s32.totalorder %s94, %s97
      %p103 = scmp.eq.s32.totalorder %s14, 0
      %p104 = por %p102, %p103
      %p105 = scmp.ne.s32.totalorder %s94, %s97
      %p106 = scmp.eq.s32.totalorder %s19, 1
      %p107 = por %p105, %p106
      %p108 = scmp.ne.s32.totalorder %s97, %s98
      %p109 = scmp.eq.s32.totalorder %s19, 0
      %p110 = por %p108, %p109
      %p111 = scmp.ne.s32.totalorder %s97, %s98
      %p112 = scmp.eq.s32.totalorder %s20, 1
      %p113 = por %p111, %p112
      %p115 = scmp.ne.s32.totalorder %s98, %s114
      %p116 = scmp.eq.s32.totalorder %s20, 0
      %p117 = por %p115, %p116
      %s118 = ssub.s32 %s21, %s33
      %s119 = ssub.s32 %s22, %s29
      %s120 = sor.u32 %s118, %s119
      %p121 = scmp.eq.s32.totalorder %s120, 0
      %s123 = sadd.s32 %s122, 1
      %s124 = scalar_select %p121, %s122, %s123
      %p127 = pneg %p121
      %p128 = scmp.eq.s32.totalorder %s14, 1
      %p129 = por %p127, %p128
      %p130 = scmp.ne.s32.totalorder %s122, %s125
      %p131 = scmp.eq.s32.totalorder %s14, 0
      %p132 = por %p130, %p131
      %p133 = scmp.ne.s32.totalorder %s122, %s125
      %p134 = scmp.eq.s32.totalorder %s19, 1
      %p135 = por %p133, %p134
      %p136 = scmp.ne.s32.totalorder %s125, %s126
      %p137 = scmp.eq.s32.totalorder %s19, 0
      %p138 = por %p136, %p137
      %p139 = scmp.ne.s32.totalorder %s125, %s126
      %p140 = scmp.eq.s32.totalorder %s20, 1
      %p141 = por %p139, %p140
      %p143 = scmp.ne.s32.totalorder %s126, %s142
      %p144 = scmp.eq.s32.totalorder %s20, 0
      %p145 = por %p143, %p144
      %s146 = ssub.s32 %s21, %s33
      %s147 = ssub.s32 %s22, %s29
      %s148 = sor.u32 %s146, %s147
      %p149 = scmp.eq.s32.totalorder %s148, 0
      %s151 = sadd.s32 %s150, 1
      %s152 = scalar_select %p149, %s150, %s151
      %p155 = pneg %p149
      %p156 = scmp.eq.s32.totalorder %s14, 1
      %p157 = por %p155, %p156
      %p158 = scmp.ne.s32.totalorder %s150, %s153
      %p159 = scmp.eq.s32.totalorder %s14, 0
      %p160 = por %p158, %p159
      %p161 = scmp.ne.s32.totalorder %s150, %s153
      %p162 = scmp.eq.s32.totalorder %s19, 1
      %p163 = por %p161, %p162
      %p164 = scmp.ne.s32.totalorder %s153, %s154
      %p165 = scmp.eq.s32.totalorder %s19, 0
      %p166 = por %p164, %p165
      %p167 = scmp.ne.s32.totalorder %s153, %s154
      %p168 = scmp.eq.s32.totalorder %s20, 1
      %p169 = por %p167, %p168
      %p171 = scmp.ne.s32.totalorder %s154, %s170
      %p172 = scmp.eq.s32.totalorder %s20, 0
      %p173 = por %p171, %p172
      %p174 = scmp.le.s32.totalorder 1, %s14
      %p175 = scmp.lt.s32.totalorder %s14, 3
      %p176 = pnand %p174, %p175
      %p177 = pneg %p176
      // Predicated region
      $region9: #{transformer_forward.14} parent=5 // pred_check
        _
      $region10: #{transformer_forward.14} parent=5 // pred_check_branch
        %179 = sbr.rel (%p176) target = $region12
      $region11: #{transformer_forward.14} parent=5 // pred_region
        %s180 = ssub.s32 %s14, 1
      $region12: #{transformer_forward.14} parent=5 // pred_fallthru
        _
      %p181 = scmp.lt.s32.totalorder %s14, 2
      // Predicated region
      $region13: #{transformer_forward.14} parent=5 // pred_check
        %p182 = pneg %p181
      $region14: #{transformer_forward.14} parent=5 // pred_check_branch
        %184 = sbr.rel (%p182) target = $region16
      $region15: #{transformer_forward.14} parent=5 // pred_region
        // Predicated region
        $region17: #{transformer_forward.14} parent=15 // pred_check
          %p185 = pneg %p48
        $region18: #{transformer_forward.14} parent=15 // pred_check_branch
          %187 = sbr.rel (%p185) target = $region20
        $region19: #{transformer_forward.14} parent=15 // pred_region
          %s188 = smul.u32 2, %s22
          %p189 = scmp.lt.s32.totalorder %s21, 1
          %s190 = scalar_select %p189, %s21, 1
          %p191 = scmp.lt.s32.totalorder %s188, 1
          %s192 = scalar_select %p191, %s188, 1
          %s193 = smul.addr %s192, 2
          %s194 = smul.addr %s190, 4
          %s195 = sadd.s32 %s193, %s194
          %s196 = smul.addr %s195, 4
          %s197 = scalar_lea.vmem %s0, %s196
          %s198 = smul.u32 2, %s22
        $region20: #{transformer_forward.14} parent=15 // pred_fallthru
          _
        // Predicated region
        $region21: #{transformer_forward.14} parent=15 // pred_check
          %p199 = pneg %p76
        $region22: #{transformer_forward.14} parent=15 // pred_check_branch
          %201 = sbr.rel (%p199) target = $region24
        $region23: #{transformer_forward.14} parent=15 // pred_region
          %s202 = smul.u32 2, %s22
          %p203 = scmp.lt.s32.totalorder %s21, 1
          %s204 = scalar_select %p203, %s21, 1
          %p205 = scmp.lt.s32.totalorder %s202, 1
          %s206 = scalar_select %p205, %s202, 1
          %s207 = smul.addr %s206, 2
          %s208 = smul.addr %s204, 4
          %s209 = sadd.s32 %s207, %s208
          %s210 = smul.addr %s209, 4
          %s211 = scalar_lea.vmem %s1, %s210
          %s212 = smul.u32 2, %s22
        $region24: #{transformer_forward.14} parent=15 // pred_fallthru
          _
        // Predicated region
        $region25: #{transformer_forward.14} parent=15 // pred_check
          %p213 = pneg %p104
        $region26: #{transformer_forward.14} parent=15 // pred_check_branch
          %215 = sbr.rel (%p213) target = $region28
        $region27: #{transformer_forward.14} parent=15 // pred_region
          %s216 = smul.u32 2, %s22
          %p217 = scmp.lt.s32.totalorder %s21, 1
          %s218 = scalar_select %p217, %s21, 1
          %p219 = scmp.lt.s32.totalorder %s216, 1
          %s220 = scalar_select %p219, %s216, 1
          %s221 = smul.addr %s220, 2
          %s222 = smul.addr %s218, 4
          %s223 = sadd.s32 %s221, %s222
          %s224 = smul.addr %s223, 4
          %s225 = scalar_lea.vmem %s2, %s224
          %s226 = smul.u32 2, %s22
        $region28: #{transformer_forward.14} parent=15 // pred_fallthru
          _
      $region16: #{transformer_forward.14} parent=5 // pred_fallthru
        _
      %p227 = scmp.le.s32.totalorder 1, %s14
      %p228 = scmp.lt.s32.totalorder %s14, 3
      %p229 = pnand %p227, %p228
      %p230 = pneg %p229
      // Predicated region
      $region29: #{transformer_forward.14} parent=5 // pred_check
        _
      $region30: #{transformer_forward.14} parent=5 // pred_check_branch
        %232 = sbr.rel (%p229) target = $region32
      $region31: #{transformer_forward.14} parent=5 // pred_region
        %s233 = ssub.s32 %s14, 1
        %s234 = smul.u32 2, %s24
        %p235 = scmp.lt.s32.totalorder %s23, 1
        %s236 = scalar_select %p235, %s23, 1
        %p237 = scmp.lt.s32.totalorder %s234, 1
        %s238 = scalar_select %p237, %s234, 1
        %s239 = smul.addr %s238, 2
        %s240 = smul.addr %s236, 4
        %s241 = sadd.s32 %s239, %s240
        %s242 = smul.addr %s241, 4
        %s243 = scalar_lea.vmem %s0, %s242
        %p244 = pneg %p54
        %p245 = pneg %p51
        %s246 = smul.u32 2, %s24
        %p247 = scmp.lt.s32.totalorder %s23, 1
        %s248 = scalar_select %p247, %s23, 1
        %p249 = scmp.lt.s32.totalorder %s246, 1
        %s250 = scalar_select %p249, %s246, 1
        %s251 = smul.addr %s250, 2
        %s252 = smul.addr %s248, 4
        %s253 = sadd.s32 %s251, %s252
        %s254 = smul.addr %s253, 4
        %s255 = scalar_lea.vmem %s1, %s254
        %p256 = pneg %p82
        %p257 = pneg %p79
        %s258 = smul.u32 2, %s24
        %p259 = scmp.lt.s32.totalorder %s23, 1
        %s260 = scalar_select %p259, %s23, 1
        %p261 = scmp.lt.s32.totalorder %s258, 1
        %s262 = scalar_select %p261, %s258, 1
        %s263 = smul.addr %s262, 2
        %s264 = smul.addr %s260, 4
        %s265 = sadd.s32 %s263, %s264
        %s266 = smul.addr %s265, 4
        %s267 = scalar_lea.vmem %s2, %s266
        %p268 = pneg %p110
        %p269 = pneg %p107
        %p270 = pneg %p138
        %p271 = pneg %p135
        %s272 = smul.u32 2, %s24
        %p273 = scmp.lt.s32.totalorder %s23, 1
        %s274 = scalar_select %p273, %s23, 1
        %p275 = scmp.lt.s32.totalorder %s272, 1
        %s276 = scalar_select %p275, %s272, 1
        %s277 = smul.addr %s276, 2
        %s278 = smul.addr %s274, 4
        %s279 = sadd.s32 %s277, %s278
        %s280 = smul.addr %s279, 4
        %s281 = scalar_lea.vmem %s3, %s280
        %p282 = pneg %p166
        %p283 = pneg %p163
        %s284 = sand.u32 %s153, 1
        %s285 = scalar_lea.sflag [#allocation3], %s284
        %s286 = sand.u32 %s153, 1
        %s287 = smul.addr %s286, 32
        %s288 = scalar_lea.vmem [#allocation2], %s287
        %s289 = smul.u32 2, %s24
        %p290 = scmp.lt.s32.totalorder %s23, 1
        %s291 = scalar_select %p290, %s23, 1
        %p292 = scmp.lt.s32.totalorder %s289, 1
        %s293 = scalar_select %p292, %s289, 1
        %s294 = smul.addr %s293, 2
        %s295 = smul.addr %s291, 4
        %s296 = sadd.s32 %s294, %s295
        %s297 = smul.addr %s296, 4
        %s298 = scalar_lea.vmem %s0, %s297
        %s299 = smul.u32 2, %s24
        %s300 = smul.u32 2, %s24
        %p301 = scmp.lt.s32.totalorder %s23, 1
        %s302 = scalar_select %p301, %s23, 1
        %p303 = scmp.lt.s32.totalorder %s300, 1
        %s304 = scalar_select %p303, %s300, 1
        %s305 = smul.addr %s304, 2
        %s306 = smul.addr %s302, 4
        %s307 = sadd.s32 %s305, %s306
        %s308 = smul.addr %s307, 4
        %s309 = scalar_lea.vmem %s1, %s308
        %s310 = smul.u32 2, %s24
        %s311 = smul.u32 2, %s24
        %p312 = scmp.lt.s32.totalorder %s23, 1
        %s313 = scalar_select %p312, %s23, 1
        %p314 = scmp.lt.s32.totalorder %s311, 1
        %s315 = scalar_select %p314, %s311, 1
        %s316 = smul.addr %s315, 2
        %s317 = smul.addr %s313, 4
        %s318 = sadd.s32 %s316, %s317
        %s319 = smul.addr %s318, 4
        %s320 = scalar_lea.vmem %s2, %s319
        %s321 = smul.u32 2, %s24
        %s322 = smul.u32 2, %s24
        %p323 = scmp.lt.s32.totalorder %s23, 1
        %s324 = scalar_select %p323, %s23, 1
        %p325 = scmp.lt.s32.totalorder %s322, 1
        %s326 = scalar_select %p325, %s322, 1
        %s327 = smul.addr %s326, 2
        %s328 = smul.addr %s324, 4
        %s329 = sadd.s32 %s327, %s328
        %s330 = smul.addr %s329, 4
        %s331 = scalar_lea.vmem %s3, %s330
        %s332 = smul.u32 2, %s24
        %s333 = smul.u32 2, %s24
        %v335 = vld [vmem:[%s298] sm:$0xf]
        %v336 = vld [vmem:[%s298 + $0x4] sm:$0xf]
        %v337 = vld [vmem:[%s298 + $0x8] sm:$0xf]
        %v338 = vld [vmem:[%s298 + $0xc] sm:$0xf]
        %v339 = vld [vmem:[%s309] sm:$0xf]
        %v340 = vld [vmem:[%s309 + $0x4] sm:$0xf]
        %v341 = vld [vmem:[%s309 + $0x8] sm:$0xf]
        %v342 = vld [vmem:[%s309 + $0xc] sm:$0xf]
        %v343 = vld [vmem:[%s320] sm:$0xf]
        %v344 = vld [vmem:[%s320 + $0x4] sm:$0xf]
        %v345 = vld [vmem:[%s320 + $0x8] sm:$0xf]
        %v346 = vld [vmem:[%s320 + $0xc] sm:$0xf]
        %v349 = vunpack.c.l.b16 %v335
        %v350 = vunpack.c.l.b16 %v336
        %v351 = vpack.c.b16 %v350, %v349
        %v354 = vunpack.c.l.b16 %v339
        %v355 = vunpack.c.l.b16 %v340
        %v356 = vpack.c.b16 %v355, %v354
        %vm357 = vcmask 64512
        %v359 = vsel %vm357, %v351, 0
        %v362 = vsel %vm357, %v356, 0
        %364 = vmatpush.bf16.xpose.msra.mxu0 0
        %365 = vmatpush.bf16.xpose.msra.mxu0 0
        %366 = vmatpush.bf16.xpose.msra.mxu0 0
        %367 = vmatpush.bf16.xpose.msra.mxu0 0
        %368 = vmatpush.bf16.xpose.msra.mxu0 0
        %369 = vmatpush.bf16.xpose.msra.mxu0 0
        %370 = vmatpush.bf16.xpose.msra.mxu0 0
        %371 = vmatpush.bf16.xpose.msra.mxu0 %v362
        %372 = vmatmul.bf16.gmra.mxu0 %v359
        %v373 = vpop.f32.mrf.mxu0
        %v374 = vadd.f32 0.0, %v373
        %v375 = vpop.f32.mrf.mxu0
        %v376 = vadd.f32 0.0, %v375
        %377 = vdwg.mxu0
        %v380 = vunpack.c.l.b16 %v337
        %v381 = vunpack.c.l.b16 %v338
        %v382 = vpack.c.b16 %v381, %v380
        %v385 = vunpack.c.l.b16 %v341
        %v386 = vunpack.c.l.b16 %v342
        %v387 = vpack.c.b16 %v386, %v385
        %v389 = vsel %vm357, %v382, 0
        %v392 = vsel %vm357, %v387, 0
        %394 = vmatpush.bf16.xpose.msra.mxu0 0
        %395 = vmatpush.bf16.xpose.msra.mxu0 0
        %396 = vmatpush.bf16.xpose.msra.mxu0 0
        %397 = vmatpush.bf16.xpose.msra.mxu0 0
        %398 = vmatpush.bf16.xpose.msra.mxu0 0
        %399 = vmatpush.bf16.xpose.msra.mxu0 0
        %400 = vmatpush.bf16.xpose.msra.mxu0 0
        %401 = vmatpush.bf16.xpose.msra.mxu0 %v392
        %402 = vmatmul.bf16.gmra.mxu0 %v389
        %v403 = vpop.f32.mrf.mxu0
        %v404 = vadd.f32 0.0, %v403
        %v405 = vpop.f32.mrf.mxu0
        %v406 = vadd.f32 0.0, %v405
        %407 = vdwg.mxu0
        %v408 = vmul.f32 %v374, 0.35355338
        %v409 = vmul.f32 %v376, 0.35355338
        %v410 = vmul.f32 %v404, 0.35355338
        %v411 = vmul.f32 %v406, 0.35355338
        %vm412 = vcmask 130048
        %v413 = vsel %vm412, %v408, -inf
        %414 = vmax.xlane.f32.xlu0 %v413
        %v415 = vpop.xlane.xlu0 %414
        %v416 = vsel %vm412, %v409, -inf
        %417 = vmax.xlane.f32.xlu0 %v416
        %v418 = vpop.xlane.xlu0 %417
        %v419 = vsel %vm412, %v410, -inf
        %420 = vmax.xlane.f32.xlu0 %v419
        %v421 = vpop.xlane.xlu0 %420
        %v422 = vsel %vm412, %v411, -inf
        %423 = vmax.xlane.f32.xlu0 %v422
        %v424 = vpop.xlane.xlu0 %423
        %v425 = vsub.f32 %v408, %v415
        %v426 = vsub.f32 %v409, %v418
        %v427 = vsub.f32 %v410, %v421
        %v428 = vsub.f32 %v411, %v424
        %v429 = vmul.f32 %v425, 1.442695
        %v430 = vpow.pop %v429
        %v431 = vmul.f32 %v426, 1.442695
        %v432 = vpow.pop %v431
        %v433 = vmul.f32 %v427, 1.442695
        %v434 = vpow.pop %v433
        %v435 = vmul.f32 %v428, 1.442695
        %v436 = vpow.pop %v435
        %v437 = vsel %vm412, %v430, 0.0
        %438 = vadd.xlane.f32.xlu0 %v437
        %v439 = vpop.xlane.xlu0 %438
        %v440 = vsel %vm412, %v432, 0.0
        %441 = vadd.xlane.f32.xlu0 %v440
        %v442 = vpop.xlane.xlu0 %441
        %v443 = vsel %vm412, %v434, 0.0
        %444 = vadd.xlane.f32.xlu0 %v443
        %v445 = vpop.xlane.xlu0 %444
        %v446 = vsel %vm412, %v436, 0.0
        %447 = vadd.xlane.f32.xlu0 %v446
        %v448 = vpop.xlane.xlu0 %447
        %v449 = vrcp.pop %v439
        %v450 = vrcp.pop %v442
        %v451 = vrcp.pop %v445
        %v452 = vrcp.pop %v448
        %v453 = vmul.f32 %v430, %v449
        %v454 = vmul.f32 %v432, %v450
        %v455 = vmul.f32 %v434, %v451
        %v456 = vmul.f32 %v436, %v452
        %v457 = vpack.c.bf16 %v453, %v453
        %v458 = vpack.c.bf16 %v454, %v454
        %v459 = vpack.c.bf16 %v455, %v455
        %v460 = vpack.c.bf16 %v456, %v456
        %v463 = vunpack.c.l.b16 %v457
        %v464 = vunpack.c.l.b16 %v458
        %v465 = vpack.c.b16 %v464, %v463
        %v468 = vunpack.c.l.b16 %v343
        %v469 = vunpack.c.l.b16 %v344
        %v470 = vpack.c.b16 %v469, %v468
        %v473 = vsel %vm412, %v465, 0
        %475 = vmatpush.bf16.msra.mxu0 0
        %476 = vmatpush.bf16.msra.mxu0 0
        %477 = vmatpush.bf16.msra.mxu0 0
        %478 = vmatpush.bf16.msra.mxu0 0
        %479 = vmatpush.bf16.msra.mxu0 0
        %480 = vmatpush.bf16.msra.mxu0 0
        %481 = vmatpush.bf16.msra.mxu0 0
        %482 = vmatpush.bf16.msra.mxu0 %v470
        %483 = vmatmul.bf16.gmra.mxu0 %v473
        %v484 = vpop.f32.mrf.mxu0
        %v485 = vadd.f32 0.0, %v484
        %v486 = vpop.f32.mrf.mxu0
        %v487 = vadd.f32 0.0, %v486
        %488 = vdwg.mxu0
        %v491 = vunpack.c.l.b16 %v459
        %v492 = vunpack.c.l.b16 %v460
        %v493 = vpack.c.b16 %v492, %v491
        %v496 = vunpack.c.l.b16 %v345
        %v497 = vunpack.c.l.b16 %v346
        %v498 = vpack.c.b16 %v497, %v496
        %v501 = vsel %vm412, %v493, 0
        %503 = vmatpush.bf16.msra.mxu0 0
        %504 = vmatpush.bf16.msra.mxu0 0
        %505 = vmatpush.bf16.msra.mxu0 0
        %506 = vmatpush.bf16.msra.mxu0 0
        %507 = vmatpush.bf16.msra.mxu0 0
        %508 = vmatpush.bf16.msra.mxu0 0
        %509 = vmatpush.bf16.msra.mxu0 0
        %510 = vmatpush.bf16.msra.mxu0 %v498
        %511 = vmatmul.bf16.gmra.mxu0 %v501
        %v512 = vpop.f32.mrf.mxu0
        %v513 = vadd.f32 0.0, %v512
        %v514 = vpop.f32.mrf.mxu0
        %v515 = vadd.f32 0.0, %v514
        %516 = vdwg.mxu0
        %v517 = vpack.c.bf16 %v485, %v485
        %v518 = vpack.c.bf16 %v487, %v487
        %v519 = vpack.c.bf16 %v513, %v513
        %v520 = vpack.c.bf16 %v515, %v515
        %vm521 = vcmask 60416
        %522 = vst.msk [vmem:[%s331] sm:$0xf] %vm521, %v517
        %523 = vst.msk [vmem:[%s331 + $0x4] sm:$0xf] %vm521, %v518
        %524 = vst.msk [vmem:[%s331 + $0x8] sm:$0xf] %vm521, %v519
        %525 = vst.msk [vmem:[%s331 + $0xc] sm:$0xf] %vm521, %v520
        %526 = vst.msk [vmem:[%s288] sm:$0xff] %vm412, %v453
        %527 = vst.msk [vmem:[%s288 + $0x8] sm:$0xff] %vm412, %v454
        %528 = vst.msk [vmem:[%s288 + $0x10] sm:$0xff] %vm412, %v455
        %529 = vst.msk [vmem:[%s288 + $0x18] sm:$0xff] %vm412, %v456
        %s530 = smul.u32 2, %s24
        %p531 = scmp.lt.s32.totalorder %s23, 1
        %s532 = scalar_select %p531, %s23, 1
        %p533 = scmp.lt.s32.totalorder %s530, 1
        %s534 = scalar_select %p533, %s530, 1
        %s535 = smul.addr %s534, 2
        %s536 = smul.addr %s532, 4
        %s537 = sadd.s32 %s535, %s536
        %s538 = smul.addr %s537, 4
        %s539 = scalar_lea.vmem %s3, %s538
        %s540 = sand.u32 %s153, 1
        %s541 = scalar_lea.sflag [#allocation3], %s540
        %s542 = sand.u32 %s153, 1
        %s543 = smul.addr %s542, 32
        %s544 = scalar_lea.vmem [#allocation2], %s543
        // Predicated region
        $region33: #{transformer_forward.14} parent=31 // pred_check
          %p545 = pneg %p135
        $region34: #{transformer_forward.14} parent=31 // pred_check_branch
          %547 = sbr.rel (%p545) target = $region36
        $region35: #{transformer_forward.14} parent=31 // pred_region
          %s548 = smul.u32 2, %s24
        $region36: #{transformer_forward.14} parent=31 // pred_fallthru
          _
        // Predicated region
        $region37: #{transformer_forward.14} parent=31 // pred_check
          %p549 = pneg %p163
        $region38: #{transformer_forward.14} parent=31 // pred_check_branch
          %551 = sbr.rel (%p549) target = $region40
        $region39: #{transformer_forward.14} parent=31 // pred_region
          %s552 = smul.u32 2, %s24
          %554 = vsyncadd %s541, 0
          %s555 = smul.addr %s552, 2
          %s556 = smul.addr %s23, 4
          %s557 = sadd.s32 %s555, %s556
          %s558 = smul.addr %s557, 8
          %s559 = scalar_lea.hbm %s4, %s558
          %s560 = sshll.u32 %s544, 4
          %s561 = int_to_ptr.vmem [resolvable:$true] %s560
          %s562 = sshll.u32 %s559, 4
          %s563 = int_to_ptr.hbm [resolvable:$true] %s562
          %568 = dma.vmem_to_hbm [thread:$0]  %s561, 512, %s563, %s541, 128, 128, 8
        $region40: #{transformer_forward.14} parent=31 // pred_fallthru
          _
      $region32: #{transformer_forward.14} parent=5 // pred_fallthru
        _
      %p569 = scmp.le.s32.totalorder 2, %s14
      // Predicated region
      $region41: #{transformer_forward.14} parent=5 // pred_check
        %p570 = pneg %p569
      $region42: #{transformer_forward.14} parent=5 // pred_check_branch
        %572 = sbr.rel (%p570) target = $region44
      $region43: #{transformer_forward.14} parent=5 // pred_region
        %s573 = ssub.s32 %s14, 2
        // Predicated region
        $region45: #{transformer_forward.14} parent=43 // pred_check
          %p574 = pneg %p141
        $region46: #{transformer_forward.14} parent=43 // pred_check_branch
          %576 = sbr.rel (%p574) target = $region48
        $region47: #{transformer_forward.14} parent=43 // pred_region
          %s577 = smul.u32 2, %s26
          %p578 = scmp.lt.s32.totalorder %s25, 1
          %s579 = scalar_select %p578, %s25, 1
          %p580 = scmp.lt.s32.totalorder %s577, 1
          %s581 = scalar_select %p580, %s577, 1
          %s582 = smul.addr %s581, 2
          %s583 = smul.addr %s579, 4
          %s584 = sadd.s32 %s582, %s583
          %s585 = smul.addr %s584, 4
          %s586 = scalar_lea.vmem %s3, %s585
        $region48: #{transformer_forward.14} parent=43 // pred_fallthru
          _
        // Predicated region
        $region49: #{transformer_forward.14} parent=43 // pred_check
          %p587 = pneg %p169
        $region50: #{transformer_forward.14} parent=43 // pred_check_branch
          %589 = sbr.rel (%p587) target = $region52
        $region51: #{transformer_forward.14} parent=43 // pred_region
          %s590 = sand.u32 %s154, 1
          %s591 = scalar_lea.sflag [#allocation3], %s590
          %s592 = sand.u32 %s154, 1
          %s593 = smul.addr %s592, 32
          %s594 = scalar_lea.vmem [#allocation2], %s593
          %596 = dma.done %s591, 512
        $region52: #{transformer_forward.14} parent=43 // pred_fallthru
          _
      $region44: #{transformer_forward.14} parent=5 // pred_fallthru
        _
    $region6: #{transformer_forward.14} parent=1 // loop_footer
      %s18 = sadd.s32 1, %s14
    $region7: #{transformer_forward.14} parent=1 // loop_footer_branch
      %13 = sbr.rel target = $region3
    $region8: #{transformer_forward.14} parent=1 // loop_exit
      _
    %597 = vsyncpa [#allocation3], 1
    %s598 = scalar_lea.sflag [#allocation3], 1
    %599 = vsyncpa %s598, 1

// kernel: transformer_forward.15
$region0: #{transformer_forward.15}
  #allocation0 [shape = 'u32[]', space=smem, size = 0x4, offset = 0x4, fixed_abs, tag = 'smem constant byte address 0x4 - core index']
  #allocation1 [shape = 'u32[72,128]{1,0:T(1,128)}', space=vmem, size = 0x9000, scoped, tag = 'internal scratch']
  %s0 = inlined_call_operand.vmem [shape: bf16[32,16], index: 0, kind: input, shape index: {}]
  %s1 = inlined_call_operand.vmem [shape: bf16[16,32], index: 1, kind: input, shape index: {}]
  %s2 = inlined_call_operand.vmem [shape: f32[1,32], index: 2, kind: input, shape index: {}]
  %s3 = inlined_call_operand.vmem [shape: f32[32,32], index: 3, kind: input, shape index: {}]
  %s4 = inlined_call_operand.vmem [shape: f32[32,32], index: 4, kind: output, shape index: {}]
  %s5 = sld [smem:[#allocation0]]
  $region26: #{transformer_forward.15} parent=0
    _
  %s7 = ssub.s32 1, %s5
  %s8 = scalar_select 0, %s7, %s5
  // Predicated region
  $region2: #{transformer_forward.15} parent=0 // pred_check
    _
  $region3: #{transformer_forward.15} parent=0 // pred_check_branch
    %10 = sbr.rel (0) target = $region5
  $region4: #{transformer_forward.15} parent=0 // pred_region
    _
  $region5: #{transformer_forward.15} parent=0 // pred_fallthru
    _
  // Predicated region
  $region6: #{transformer_forward.15} parent=0 // pred_check
    _
  $region7: #{transformer_forward.15} parent=0 // pred_check_branch
    %12 = sbr.rel (0) target = $region9
  $region8: #{transformer_forward.15} parent=0 // pred_region
    _
  $region9: #{transformer_forward.15} parent=0 // pred_fallthru
    _
  // Predicated region
  $region10: #{transformer_forward.15} parent=0 // pred_check
    _
  $region11: #{transformer_forward.15} parent=0 // pred_check_branch
    %14 = sbr.rel (0) target = $region13
  $region12: #{transformer_forward.15} parent=0 // pred_region
    _
  $region13: #{transformer_forward.15} parent=0 // pred_fallthru
    _
  // Predicated region
  $region14: #{transformer_forward.15} parent=0 // pred_check
    _
  $region15: #{transformer_forward.15} parent=0 // pred_check_branch
    %16 = sbr.rel (0) target = $region17
  $region16: #{transformer_forward.15} parent=0 // pred_region
    _
  $region17: #{transformer_forward.15} parent=0 // pred_fallthru
    _
  %v18 = vld [vmem:[%s0] sm:$0xf]
  %v19 = vld [vmem:[%s0 + $0x4] sm:$0xf]
  %v20 = vld [vmem:[%s0 + $0x8] sm:$0xf]
  %v21 = vld [vmem:[%s0 + $0xc] sm:$0xf]
  %v22 = vld [vmem:[%s1] sm:$0xf]
  %v23 = vld [vmem:[%s1 + $0x4] sm:$0xf]
  %v24 = vld [vmem:[%s2] sm:$0x1]
  %v26 = vperm.slane %v24, 0
  %v32 = vunpack.c.l.b16 %v18
  %v33 = vunpack.c.l.b16 %v19
  %v34 = vunpack.c.l.b16 %v20
  %v35 = vunpack.c.l.b16 %v21
  %v36 = vpack.c.b16 %v33, %v32
  %v37 = vpack.c.b16 %v35, %v34
  %v40 = vunpack.c.l.b16 %v22
  %v41 = vunpack.c.l.b16 %v23
  %v42 = vpack.c.b16 %v41, %v40
  %vm44 = vcmask 130048
  %v46 = vsel %vm44, %v36, 0
  %v49 = vsel %vm44, %v37, 0
  %51 = vmatpush.bf16.msra.mxu0 0
  %52 = vmatpush.bf16.msra.mxu0 0
  %53 = vmatpush.bf16.msra.mxu0 0
  %54 = vmatpush.bf16.msra.mxu0 0
  %55 = vmatpush.bf16.msra.mxu0 0
  %56 = vmatpush.bf16.msra.mxu0 0
  %57 = vmatpush.bf16.msra.mxu0 0
  %58 = vmatpush.bf16.msra.mxu0 %v42
  %59 = vmatmul.bf16.gmra.mxu0 %v46
  %v60 = vpop.f32.mrf.mxu0
  %v61 = vadd.f32 %v26, %v60
  %v62 = vpop.f32.mrf.mxu0
  %v63 = vadd.f32 %v26, %v62
  %64 = vmatmul.bf16.gmra.mxu0 %v49
  %v65 = vpop.f32.mrf.mxu0
  %v66 = vadd.f32 %v26, %v65
  %v67 = vpop.f32.mrf.mxu0
  %v68 = vadd.f32 %v26, %v67
  %69 = vdwg.mxu0
  %v70 = vld [vmem:[%s3] sm:$0xff]
  %v71 = vld [vmem:[%s3 + $0x8] sm:$0xff]
  %v72 = vld [vmem:[%s3 + $0x10] sm:$0xff]
  %v73 = vld [vmem:[%s3 + $0x18] sm:$0xff]
  %v74 = vadd.f32 %v61, %v70
  %v75 = vadd.f32 %v63, %v71
  %v76 = vadd.f32 %v66, %v72
  %v77 = vadd.f32 %v68, %v73
  %vm78 = vcmask 261120
  %v79 = vsel %vm78, %v74, 0.0
  %80 = vadd.xlane.f32.xlu0 %v79
  %v81 = vpop.xlane.xlu0 %80
  %v82 = vsel %vm78, %v75, 0.0
  %83 = vadd.xlane.f32.xlu0 %v82
  %v84 = vpop.xlane.xlu0 %83
  %v85 = vsel %vm78, %v76, 0.0
  %86 = vadd.xlane.f32.xlu0 %v85
  %v87 = vpop.xlane.xlu0 %86
  %v88 = vsel %vm78, %v77, 0.0
  %89 = vadd.xlane.f32.xlu0 %v88
  %v90 = vpop.xlane.xlu0 %89
  %v91 = vrcp.pop 32.0
  %v92 = vmul.f32 32.0, %v91
  %v93 = vsub.f32 1.0, %v92
  %v94 = vmul.f32 %v91, %v93
  %v95 = vadd.f32 %v91, %v94
  %vm96 = vweird.f32 %v91
  %v97 = vsel %vm96, %v91, %v95
  %v98 = vmul.f32 %v81, %v97
  %v99 = vmul.f32 %v84, %v97
  %v100 = vmul.f32 %v87, %v97
  %v101 = vmul.f32 %v90, %v97
  %v102 = vsub.f32 %v74, %v98
  %v103 = vsub.f32 %v75, %v99
  %v104 = vsub.f32 %v76, %v100
  %v105 = vsub.f32 %v77, %v101
  %v106 = vmul.f32 %v102, %v102
  %v107 = vmul.f32 %v103, %v103
  %v108 = vmul.f32 %v104, %v104
  %v109 = vmul.f32 %v105, %v105
  %v110 = vsel %vm78, %v106, 0.0
  %111 = vadd.xlane.f32.xlu0 %v110
  %v112 = vpop.xlane.xlu0 %111
  %v113 = vsel %vm78, %v107, 0.0
  %114 = vadd.xlane.f32.xlu0 %v113
  %v115 = vpop.xlane.xlu0 %114
  %v116 = vsel %vm78, %v108, 0.0
  %117 = vadd.xlane.f32.xlu0 %v116
  %v118 = vpop.xlane.xlu0 %117
  %v119 = vsel %vm78, %v109, 0.0
  %120 = vadd.xlane.f32.xlu0 %v119
  %v121 = vpop.xlane.xlu0 %120
  %v122 = vmul.f32 %v112, %v97
  %v123 = vmul.f32 %v115, %v97
  %v124 = vmul.f32 %v118, %v97
  %v125 = vmul.f32 %v121, %v97
  %v126 = vadd.f32 %v122, 1e-05
  %v127 = vadd.f32 %v123, 1e-05
  %v128 = vadd.f32 %v124, 1e-05
  %v129 = vadd.f32 %v125, 1e-05
  %v130 = vrsqrt.pop %v126
  %v131 = vmul.f32 %v130, %v126
  %v132 = vmul.f32 %v131, %v130
  %v133 = vmul.f32 0.5, %v132
  %v134 = vsub.f32 1.5, %v133
  %v135 = vmul.f32 %v130, %v134
  %vm136 = vweird.f32 %v126
  %vm137 = vweird.f32 %v130
  %vm138 = vmor %vm136, %vm137
  %v139 = vsel %vm138, %v130, %v135
  %v140 = vrsqrt.pop %v127
  %v141 = vmul.f32 %v140, %v127
  %v142 = vmul.f32 %v141, %v140
  %v143 = vmul.f32 0.5, %v142
  %v144 = vsub.f32 1.5, %v143
  %v145 = vmul.f32 %v140, %v144
  %vm146 = vweird.f32 %v127
  %vm147 = vweird.f32 %v140
  %vm148 = vmor %vm146, %vm147
  %v149 = vsel %vm148, %v140, %v145
  %v150 = vrsqrt.pop %v128
  %v151 = vmul.f32 %v150, %v128
  %v152 = vmul.f32 %v151, %v150
  %v153 = vmul.f32 0.5, %v152
  %v154 = vsub.f32 1.5, %v153
  %v155 = vmul.f32 %v150, %v154
  %vm156 = vweird.f32 %v128
  %vm157 = vweird.f32 %v150
  %vm158 = vmor %vm156, %vm157
  %v159 = vsel %vm158, %v150, %v155
  %v160 = vrsqrt.pop %v129
  %v161 = vmul.f32 %v160, %v129
  %v162 = vmul.f32 %v161, %v160
  %v163 = vmul.f32 0.5, %v162
  %v164 = vsub.f32 1.5, %v163
  %v165 = vmul.f32 %v160, %v164
  %vm166 = vweird.f32 %v129
  %vm167 = vweird.f32 %v160
  %vm168 = vmor %vm166, %vm167
  %v169 = vsel %vm168, %v160, %v165
  %v170 = vmul.f32 %v102, %v139
  %v171 = vmul.f32 %v103, %v149
  %v172 = vmul.f32 %v104, %v159
  %v173 = vmul.f32 %v105, %v169
  %174 = vst.msk [vmem:[%s4] sm:$0xff] %vm78, %v170
  %175 = vst.msk [vmem:[%s4 + $0x8] sm:$0xff] %vm78, %v171
  %176 = vst.msk [vmem:[%s4 + $0x10] sm:$0xff] %vm78, %v172
  %177 = vst.msk [vmem:[%s4 + $0x18] sm:$0xff] %vm78, %v173
  // Predicated region
  $region18: #{transformer_forward.15} parent=0 // pred_check
    _
  $region19: #{transformer_forward.15} parent=0 // pred_check_branch
    %179 = sbr.rel (0) target = $region21
  $region20: #{transformer_forward.15} parent=0 // pred_region
    _
  $region21: #{transformer_forward.15} parent=0 // pred_fallthru
    _
  // Predicated region
  $region22: #{transformer_forward.15} parent=0 // pred_check
    _
  $region23: #{transformer_forward.15} parent=0 // pred_check_branch
    %181 = sbr.rel (0) target = $region25
  $region24: #{transformer_forward.15} parent=0 // pred_region
    _
  $region25: #{transformer_forward.15} parent=0 // pred_fallthru
    _

// kernel: transformer_forward.21
$region0: #{transformer_forward.21}
  #allocation0 [shape = 'u32[]', space=smem, size = 0x4, offset = 0x4, fixed_abs, tag = 'smem constant byte address 0x4 - core index']
  #allocation1 [shape = 'u32[72,128]{1,0:T(1,128)}', space=vmem, size = 0x9000, scoped, tag = 'internal scratch']
  #allocation2 [shape = 'f32[32,32]{1,0:T(8,128)}', space=vmem, size = 0x4000, scoped, tag = 'scratch operand']
  %s0 = inlined_call_operand.vmem [shape: f32[32,32], index: 0, kind: input, shape index: {}]
  %s1 = inlined_call_operand.vmem [shape: bf16[32,32], index: 1, kind: input, shape index: {}]
  %s2 = inlined_call_operand.vmem [shape: f32[1,32], index: 2, kind: input, shape index: {}]
  %s3 = inlined_call_operand.vmem [shape: bf16[32,32], index: 3, kind: output, shape index: {}]
  %s4 = sld [smem:[#allocation0]]
  $region30: #{transformer_forward.21} parent=0
    _
  %s6 = ssub.s32 1, %s4
  %s7 = scalar_select 0, %s6, %s4
  // Predicated region
  $region2: #{transformer_forward.21} parent=0 // pred_check
    _
  $region3: #{transformer_forward.21} parent=0 // pred_check_branch
    %9 = sbr.rel (0) target = $region5
  $region4: #{transformer_forward.21} parent=0 // pred_region
    _
  $region5: #{transformer_forward.21} parent=0 // pred_fallthru
    _
  // Predicated region
  $region6: #{transformer_forward.21} parent=0 // pred_check
    _
  $region7: #{transformer_forward.21} parent=0 // pred_check_branch
    %11 = sbr.rel (0) target = $region9
  $region8: #{transformer_forward.21} parent=0 // pred_region
    _
  $region9: #{transformer_forward.21} parent=0 // pred_fallthru
    _
  // Predicated region
  $region10: #{transformer_forward.21} parent=0 // pred_check
    _
  $region11: #{transformer_forward.21} parent=0 // pred_check_branch
    %13 = sbr.rel (0) target = $region13
  $region12: #{transformer_forward.21} parent=0 // pred_region
    _
  $region13: #{transformer_forward.21} parent=0 // pred_fallthru
    _
  %p15 = scmp.eq.s32.totalorder 0, 0
  // Predicated region
  $region14: #{transformer_forward.21} parent=0 // pred_check
    %p16 = pneg %p15
  $region15: #{transformer_forward.21} parent=0 // pred_check_branch
    %18 = sbr.rel (%p16) target = $region17
  $region16: #{transformer_forward.21} parent=0 // pred_region
    %vm19 = vcmask 261120
    %20 = vst.msk [vmem:[#allocation2] sm:$0xff] %vm19, 0.0
    %21 = vst.msk [vmem:[#allocation2 + $0x8] sm:$0xff] %vm19, 0.0
    %22 = vst.msk [vmem:[#allocation2 + $0x10] sm:$0xff] %vm19, 0.0
    %23 = vst.msk [vmem:[#allocation2 + $0x18] sm:$0xff] %vm19, 0.0
  $region17: #{transformer_forward.21} parent=0 // pred_fallthru
    _
  %v24 = vld [vmem:[#allocation2] sm:$0xff]
  %v25 = vld [vmem:[#allocation2 + $0x8] sm:$0xff]
  %v26 = vld [vmem:[#allocation2 + $0x10] sm:$0xff]
  %v27 = vld [vmem:[#allocation2 + $0x18] sm:$0xff]
  %v28 = vld [vmem:[%s0] sm:$0xff]
  %v29 = vld [vmem:[%s0 + $0x8] sm:$0xff]
  %v30 = vld [vmem:[%s0 + $0x10] sm:$0xff]
  %v31 = vld [vmem:[%s0 + $0x18] sm:$0xff]
  %v32 = vpack.c.bf16 %v29, %v28
  %v33 = vpack.c.bf16 %v31, %v30
  %v34 = vld [vmem:[%s1] sm:$0xf]
  %v35 = vld [vmem:[%s1 + $0x4] sm:$0xf]
  %v36 = vld [vmem:[%s1 + $0x8] sm:$0xf]
  %v37 = vld [vmem:[%s1 + $0xc] sm:$0xf]
  %v42 = vunpack.c.l.b16 %v34
  %v43 = vunpack.c.l.b16 %v35
  %v44 = vunpack.c.l.b16 %v36
  %v45 = vunpack.c.l.b16 %v37
  %v46 = vpack.c.b16 %v43, %v42
  %v47 = vpack.c.b16 %v45, %v44
  %vm50 = vcmask 261120
  %v52 = vsel %vm50, %v32, 0
  %v55 = vsel %vm50, %v33, 0
  %57 = vmatpush.bf16.msra.mxu0 0
  %58 = vmatpush.bf16.msra.mxu0 0
  %59 = vmatpush.bf16.msra.mxu0 0
  %60 = vmatpush.bf16.msra.mxu0 0
  %61 = vmatpush.bf16.msra.mxu0 0
  %62 = vmatpush.bf16.msra.mxu0 0
  %63 = vmatpush.bf16.msra.mxu0 %v47
  %64 = vmatpush.bf16.msra.mxu0 %v46
  %65 = vmatmul.bf16.gmra.mxu0 %v52
  %v66 = vpop.f32.mrf.mxu0
  %v67 = vadd.f32 0.0, %v66
  %v68 = vpop.f32.mrf.mxu0
  %v69 = vadd.f32 0.0, %v68
  %70 = vmatmul.bf16.gmra.mxu0 %v55
  %v71 = vpop.f32.mrf.mxu0
  %v72 = vadd.f32 0.0, %v71
  %v73 = vpop.f32.mrf.mxu0
  %v74 = vadd.f32 0.0, %v73
  %75 = vdwg.mxu0
  %v76 = vadd.f32 %v24, %v67
  %v77 = vadd.f32 %v25, %v69
  %v78 = vadd.f32 %v26, %v72
  %v79 = vadd.f32 %v27, %v74
  %80 = vst.msk [vmem:[#allocation2] sm:$0xff] %vm50, %v76
  %81 = vst.msk [vmem:[#allocation2 + $0x8] sm:$0xff] %vm50, %v77
  %82 = vst.msk [vmem:[#allocation2 + $0x10] sm:$0xff] %vm50, %v78
  %83 = vst.msk [vmem:[#allocation2 + $0x18] sm:$0xff] %vm50, %v79
  // Predicated region
  $region18: #{transformer_forward.21} parent=0 // pred_check
    %p84 = pneg %p15
  $region19: #{transformer_forward.21} parent=0 // pred_check_branch
    %86 = sbr.rel (%p84) target = $region21
  $region20: #{transformer_forward.21} parent=0 // pred_region
    %v87 = vld [vmem:[#allocation2] sm:$0xff]
    %v88 = vld [vmem:[#allocation2 + $0x8] sm:$0xff]
    %v89 = vld [vmem:[#allocation2 + $0x10] sm:$0xff]
    %v90 = vld [vmem:[#allocation2 + $0x18] sm:$0xff]
    %v91 = vld [vmem:[%s2] sm:$0x1]
    %v93 = vperm.slane %v91, 0
    %v95 = vadd.f32 %v87, %v93
    %v96 = vadd.f32 %v88, %v93
    %v97 = vadd.f32 %v89, %v93
    %v98 = vadd.f32 %v90, %v93
    %v99 = vpack.c.bf16 %v95, %v95
    %v100 = vpack.c.bf16 %v96, %v96
    %v101 = vpack.c.bf16 %v97, %v97
    %v102 = vpack.c.bf16 %v98, %v98
    %vm103 = vcmask 257024
    %104 = vst.msk [vmem:[%s3] sm:$0xf] %vm103, %v99
    %105 = vst.msk [vmem:[%s3 + $0x4] sm:$0xf] %vm103, %v100
    %106 = vst.msk [vmem:[%s3 + $0x8] sm:$0xf] %vm103, %v101
    %107 = vst.msk [vmem:[%s3 + $0xc] sm:$0xf] %vm103, %v102
  $region21: #{transformer_forward.21} parent=0 // pred_fallthru
    _
  // Predicated region
  $region22: #{transformer_forward.21} parent=0 // pred_check
    _
  $region23: #{transformer_forward.21} parent=0 // pred_check_branch
    %109 = sbr.rel (0) target = $region25
  $region24: #{transformer_forward.21} parent=0 // pred_region
    _
  $region25: #{transformer_forward.21} parent=0 // pred_fallthru
    _
  // Predicated region
  $region26: #{transformer_forward.21} parent=0 // pred_check
    _
  $region27: #{transformer_forward.21} parent=0 // pred_check_branch
    %111 = sbr.rel (0) target = $region29
  $region28: #{transformer_forward.21} parent=0 // pred_region
    _
  $region29: #{transformer_forward.21} parent=0 // pred_fallthru
    _

// kernel: transformer_forward.16
$region0: #{transformer_forward.16}
  #allocation0 [shape = 'u32[]', space=smem, size = 0x4, offset = 0x4, fixed_abs, tag = 'smem constant byte address 0x4 - core index']
  #allocation1 [shape = 'u32[72,128]{1,0:T(1,128)}', space=vmem, size = 0x9000, scoped, tag = 'internal scratch']
  #allocation2 [shape = 'f32[32,32]{1,0:T(8,128)}', space=vmem, size = 0x4000, scoped, tag = 'scratch operand']
  %s0 = inlined_call_operand.vmem [shape: f32[32,32], index: 0, kind: input, shape index: {}]
  %s1 = inlined_call_operand.vmem [shape: bf16[32,64], index: 1, kind: input, shape index: {}]
  %s2 = inlined_call_operand.vmem [shape: f32[1,64], index: 2, kind: input, shape index: {}]
  %s3 = inlined_call_operand.vmem [shape: bf16[64,32], index: 3, kind: input, shape index: {}]
  %s4 = inlined_call_operand.vmem [shape: f32[1,32], index: 4, kind: input, shape index: {}]
  %s5 = inlined_call_operand.vmem [shape: f32[32,32], index: 5, kind: output, shape index: {}]
  %s6 = sld [smem:[#allocation0]]
  $region38: #{transformer_forward.16} parent=0
    _
  %s8 = ssub.s32 1, %s6
  %s9 = scalar_select 0, %s8, %s6
  // Predicated region
  $region2: #{transformer_forward.16} parent=0 // pred_check
    _
  $region3: #{transformer_forward.16} parent=0 // pred_check_branch
    %11 = sbr.rel (0) target = $region5
  $region4: #{transformer_forward.16} parent=0 // pred_region
    _
  $region5: #{transformer_forward.16} parent=0 // pred_fallthru
    _
  // Predicated region
  $region6: #{transformer_forward.16} parent=0 // pred_check
    _
  $region7: #{transformer_forward.16} parent=0 // pred_check_branch
    %13 = sbr.rel (0) target = $region9
  $region8: #{transformer_forward.16} parent=0 // pred_region
    _
  $region9: #{transformer_forward.16} parent=0 // pred_fallthru
    _
  // Predicated region
  $region10: #{transformer_forward.16} parent=0 // pred_check
    _
  $region11: #{transformer_forward.16} parent=0 // pred_check_branch
    %15 = sbr.rel (0) target = $region13
  $region12: #{transformer_forward.16} parent=0 // pred_region
    _
  $region13: #{transformer_forward.16} parent=0 // pred_fallthru
    _
  // Predicated region
  $region14: #{transformer_forward.16} parent=0 // pred_check
    _
  $region15: #{transformer_forward.16} parent=0 // pred_check_branch
    %17 = sbr.rel (0) target = $region17
  $region16: #{transformer_forward.16} parent=0 // pred_region
    _
  $region17: #{transformer_forward.16} parent=0 // pred_fallthru
    _
  // Predicated region
  $region18: #{transformer_forward.16} parent=0 // pred_check
    _
  $region19: #{transformer_forward.16} parent=0 // pred_check_branch
    %19 = sbr.rel (0) target = $region21
  $region20: #{transformer_forward.16} parent=0 // pred_region
    _
  $region21: #{transformer_forward.16} parent=0 // pred_fallthru
    _
  %p21 = scmp.eq.s32.totalorder 0, 0
  // Predicated region
  $region22: #{transformer_forward.16} parent=0 // pred_check
    %p22 = pneg %p21
  $region23: #{transformer_forward.16} parent=0 // pred_check_branch
    %24 = sbr.rel (%p22) target = $region25
  $region24: #{transformer_forward.16} parent=0 // pred_region
    %vm25 = vcmask 261120
    %26 = vst.msk [vmem:[#allocation2] sm:$0xff] %vm25, 0.0
    %27 = vst.msk [vmem:[#allocation2 + $0x8] sm:$0xff] %vm25, 0.0
    %28 = vst.msk [vmem:[#allocation2 + $0x10] sm:$0xff] %vm25, 0.0
    %29 = vst.msk [vmem:[#allocation2 + $0x18] sm:$0xff] %vm25, 0.0
  $region25: #{transformer_forward.16} parent=0 // pred_fallthru
    _
  %v30 = vld [vmem:[%s0] sm:$0xff]
  %v31 = vld [vmem:[%s0 + $0x8] sm:$0xff]
  %v32 = vld [vmem:[%s0 + $0x10] sm:$0xff]
  %v33 = vld [vmem:[%s0 + $0x18] sm:$0xff]
  %v34 = vpack.c.bf16 %v31, %v30
  %v35 = vpack.c.bf16 %v33, %v32
  %v36 = vld [vmem:[%s1] sm:$0xf]
  %v37 = vld [vmem:[%s1 + $0x4] sm:$0xf]
  %v38 = vld [vmem:[%s1 + $0x8] sm:$0xf]
  %v39 = vld [vmem:[%s1 + $0xc] sm:$0xf]
  %v40 = vld [vmem:[%s2] sm:$0x1]
  %v42 = vperm.slane %v40, 0
  %v48 = vunpack.c.l.b16 %v36
  %v49 = vunpack.c.l.b16 %v37
  %v50 = vunpack.c.l.b16 %v38
  %v51 = vunpack.c.l.b16 %v39
  %v52 = vpack.c.b16 %v49, %v48
  %v53 = vpack.c.b16 %v51, %v50
  %vm56 = vcmask 261120
  %v58 = vsel %vm56, %v34, 0
  %v61 = vsel %vm56, %v35, 0
  %63 = vmatpush.bf16.msra.mxu0 0
  %64 = vmatpush.bf16.msra.mxu0 0
  %65 = vmatpush.bf16.msra.mxu0 0
  %66 = vmatpush.bf16.msra.mxu0 0
  %67 = vmatpush.bf16.msra.mxu0 0
  %68 = vmatpush.bf16.msra.mxu0 0
  %69 = vmatpush.bf16.msra.mxu0 %v53
  %70 = vmatpush.bf16.msra.mxu0 %v52
  %71 = vmatmul.bf16.gmra.mxu0 %v58
  %v72 = vpop.f32.mrf.mxu0
  %v73 = vadd.f32 %v42, %v72
  %v74 = vpop.f32.mrf.mxu0
  %v75 = vadd.f32 %v42, %v74
  %76 = vmatmul.bf16.gmra.mxu0 %v61
  %v77 = vpop.f32.mrf.mxu0
  %v78 = vadd.f32 %v42, %v77
  %v79 = vpop.f32.mrf.mxu0
  %v80 = vadd.f32 %v42, %v79
  %81 = vdwg.mxu0
  %v82 = vmax.f32 %v73, 0.0
  %v83 = vmax.f32 %v75, 0.0
  %v84 = vmax.f32 %v78, 0.0
  %v85 = vmax.f32 %v80, 0.0
  %v86 = vpack.c.bf16 %v83, %v82
  %v87 = vpack.c.bf16 %v85, %v84
  %v88 = vld [vmem:[#allocation2] sm:$0xff]
  %v89 = vld [vmem:[#allocation2 + $0x8] sm:$0xff]
  %v90 = vld [vmem:[#allocation2 + $0x10] sm:$0xff]
  %v91 = vld [vmem:[#allocation2 + $0x18] sm:$0xff]
  %v92 = vld [vmem:[%s3] sm:$0xf]
  %v93 = vld [vmem:[%s3 + $0x4] sm:$0xf]
  %v94 = vld [vmem:[%s3 + $0x8] sm:$0xf]
  %v95 = vld [vmem:[%s3 + $0xc] sm:$0xf]
  %v96 = vld [vmem:[%s3 + $0x10] sm:$0xf]
  %v97 = vld [vmem:[%s3 + $0x14] sm:$0xf]
  %v98 = vld [vmem:[%s3 + $0x18] sm:$0xf]
  %v99 = vld [vmem:[%s3 + $0x1c] sm:$0xf]
  %v108 = vunpack.c.l.b16 %v92
  %v109 = vunpack.c.l.b16 %v93
  %v110 = vunpack.c.l.b16 %v94
  %v111 = vunpack.c.l.b16 %v95
  %v112 = vunpack.c.l.b16 %v96
  %v113 = vunpack.c.l.b16 %v97
  %v114 = vunpack.c.l.b16 %v98
  %v115 = vunpack.c.l.b16 %v99
  %v116 = vpack.c.b16 %v109, %v108
  %v117 = vpack.c.b16 %v111, %v110
  %v118 = vpack.c.b16 %v113, %v112
  %v119 = vpack.c.b16 %v115, %v114
  %vm124 = vcmask 523264
  %v126 = vsel %vm124, %v86, 0
  %v129 = vsel %vm124, %v87, 0
  %131 = vmatpush.bf16.msra.mxu0 0
  %132 = vmatpush.bf16.msra.mxu0 0
  %133 = vmatpush.bf16.msra.mxu0 0
  %134 = vmatpush.bf16.msra.mxu0 0
  %135 = vmatpush.bf16.msra.mxu0 %v119
  %136 = vmatpush.bf16.msra.mxu0 %v118
  %137 = vmatpush.bf16.msra.mxu0 %v117
  %138 = vmatpush.bf16.msra.mxu0 %v116
  %139 = vmatmul.bf16.gmra.mxu0 %v126
  %v140 = vpop.f32.mrf.mxu0
  %v141 = vadd.f32 0.0, %v140
  %v142 = vpop.f32.mrf.mxu0
  %v143 = vadd.f32 0.0, %v142
  %144 = vmatmul.bf16.gmra.mxu0 %v129
  %v145 = vpop.f32.mrf.mxu0
  %v146 = vadd.f32 0.0, %v145
  %v147 = vpop.f32.mrf.mxu0
  %v148 = vadd.f32 0.0, %v147
  %149 = vdwg.mxu0
  %v150 = vadd.f32 %v88, %v141
  %v151 = vadd.f32 %v89, %v143
  %v152 = vadd.f32 %v90, %v146
  %v153 = vadd.f32 %v91, %v148
  %154 = vst.msk [vmem:[#allocation2] sm:$0xff] %vm56, %v150
  %155 = vst.msk [vmem:[#allocation2 + $0x8] sm:$0xff] %vm56, %v151
  %156 = vst.msk [vmem:[#allocation2 + $0x10] sm:$0xff] %vm56, %v152
  %157 = vst.msk [vmem:[#allocation2 + $0x18] sm:$0xff] %vm56, %v153
  // Predicated region
  $region26: #{transformer_forward.16} parent=0 // pred_check
    %p158 = pneg %p21
  $region27: #{transformer_forward.16} parent=0 // pred_check_branch
    %160 = sbr.rel (%p158) target = $region29
  $region28: #{transformer_forward.16} parent=0 // pred_region
    %v161 = vld [vmem:[#allocation2] sm:$0xff]
    %v162 = vld [vmem:[#allocation2 + $0x8] sm:$0xff]
    %v163 = vld [vmem:[#allocation2 + $0x10] sm:$0xff]
    %v164 = vld [vmem:[#allocation2 + $0x18] sm:$0xff]
    %v165 = vld [vmem:[%s4] sm:$0x1]
    %v167 = vperm.slane %v165, 0
    %v169 = vadd.f32 %v161, %v167
    %v170 = vadd.f32 %v162, %v167
    %v171 = vadd.f32 %v163, %v167
    %v172 = vadd.f32 %v164, %v167
    %v173 = vadd.f32 %v169, %v30
    %v174 = vadd.f32 %v170, %v31
    %v175 = vadd.f32 %v171, %v32
    %v176 = vadd.f32 %v172, %v33
    %v177 = vsel %vm56, %v173, 0.0
    %178 = vadd.xlane.f32.xlu0 %v177
    %v179 = vpop.xlane.xlu0 %178
    %v180 = vsel %vm56, %v174, 0.0
    %181 = vadd.xlane.f32.xlu0 %v180
    %v182 = vpop.xlane.xlu0 %181
    %v183 = vsel %vm56, %v175, 0.0
    %184 = vadd.xlane.f32.xlu0 %v183
    %v185 = vpop.xlane.xlu0 %184
    %v186 = vsel %vm56, %v176, 0.0
    %187 = vadd.xlane.f32.xlu0 %v186
    %v188 = vpop.xlane.xlu0 %187
    %v189 = vrcp.pop 32.0
    %v190 = vmul.f32 32.0, %v189
    %v191 = vsub.f32 1.0, %v190
    %v192 = vmul.f32 %v189, %v191
    %v193 = vadd.f32 %v189, %v192
    %vm194 = vweird.f32 %v189
    %v195 = vsel %vm194, %v189, %v193
    %v196 = vmul.f32 %v179, %v195
    %v197 = vmul.f32 %v182, %v195
    %v198 = vmul.f32 %v185, %v195
    %v199 = vmul.f32 %v188, %v195
    %v200 = vsub.f32 %v173, %v196
    %v201 = vsub.f32 %v174, %v197
    %v202 = vsub.f32 %v175, %v198
    %v203 = vsub.f32 %v176, %v199
    %v204 = vmul.f32 %v200, %v200
    %v205 = vmul.f32 %v201, %v201
    %v206 = vmul.f32 %v202, %v202
    %v207 = vmul.f32 %v203, %v203
    %v208 = vsel %vm56, %v204, 0.0
    %209 = vadd.xlane.f32.xlu0 %v208
    %v210 = vpop.xlane.xlu0 %209
    %v211 = vsel %vm56, %v205, 0.0
    %212 = vadd.xlane.f32.xlu0 %v211
    %v213 = vpop.xlane.xlu0 %212
    %v214 = vsel %vm56, %v206, 0.0
    %215 = vadd.xlane.f32.xlu0 %v214
    %v216 = vpop.xlane.xlu0 %215
    %v217 = vsel %vm56, %v207, 0.0
    %218 = vadd.xlane.f32.xlu0 %v217
    %v219 = vpop.xlane.xlu0 %218
    %v220 = vmul.f32 %v210, %v195
    %v221 = vmul.f32 %v213, %v195
    %v222 = vmul.f32 %v216, %v195
    %v223 = vmul.f32 %v219, %v195
    %v224 = vadd.f32 %v220, 1e-05
    %v225 = vadd.f32 %v221, 1e-05
    %v226 = vadd.f32 %v222, 1e-05
    %v227 = vadd.f32 %v223, 1e-05
    %v228 = vrsqrt.pop %v224
    %v229 = vmul.f32 %v228, %v224
    %v230 = vmul.f32 %v229, %v228
    %v231 = vmul.f32 0.5, %v230
    %v232 = vsub.f32 1.5, %v231
    %v233 = vmul.f32 %v228, %v232
    %vm234 = vweird.f32 %v224
    %vm235 = vweird.f32 %v228
    %vm236 = vmor %vm234, %vm235
    %v237 = vsel %vm236, %v228, %v233
    %v238 = vrsqrt.pop %v225
    %v239 = vmul.f32 %v238, %v225
    %v240 = vmul.f32 %v239, %v238
    %v241 = vmul.f32 0.5, %v240
    %v242 = vsub.f32 1.5, %v241
    %v243 = vmul.f32 %v238, %v242
    %vm244 = vweird.f32 %v225
    %vm245 = vweird.f32 %v238
    %vm246 = vmor %vm244, %vm245
    %v247 = vsel %vm246, %v238, %v243
    %v248 = vrsqrt.pop %v226
    %v249 = vmul.f32 %v248, %v226
    %v250 = vmul.f32 %v249, %v248
    %v251 = vmul.f32 0.5, %v250
    %v252 = vsub.f32 1.5, %v251
    %v253 = vmul.f32 %v248, %v252
    %vm254 = vweird.f32 %v226
    %vm255 = vweird.f32 %v248
    %vm256 = vmor %vm254, %vm255
    %v257 = vsel %vm256, %v248, %v253
    %v258 = vrsqrt.pop %v227
    %v259 = vmul.f32 %v258, %v227
    %v260 = vmul.f32 %v259, %v258
    %v261 = vmul.f32 0.5, %v260
    %v262 = vsub.f32 1.5, %v261
    %v263 = vmul.f32 %v258, %v262
    %vm264 = vweird.f32 %v227
    %vm265 = vweird.f32 %v258
    %vm266 = vmor %vm264, %vm265
    %v267 = vsel %vm266, %v258, %v263
    %v268 = vmul.f32 %v200, %v237
    %v269 = vmul.f32 %v201, %v247
    %v270 = vmul.f32 %v202, %v257
    %v271 = vmul.f32 %v203, %v267
    %272 = vst.msk [vmem:[%s5] sm:$0xff] %vm56, %v268
    %273 = vst.msk [vmem:[%s5 + $0x8] sm:$0xff] %vm56, %v269
    %274 = vst.msk [vmem:[%s5 + $0x10] sm:$0xff] %vm56, %v270
    %275 = vst.msk [vmem:[%s5 + $0x18] sm:$0xff] %vm56, %v271
  $region29: #{transformer_forward.16} parent=0 // pred_fallthru
    _
  // Predicated region
  $region30: #{transformer_forward.16} parent=0 // pred_check
    _
  $region31: #{transformer_forward.16} parent=0 // pred_check_branch
    %277 = sbr.rel (0) target = $region33
  $region32: #{transformer_forward.16} parent=0 // pred_region
    _
  $region33: #{transformer_forward.16} parent=0 // pred_fallthru
    _
  // Predicated region
  $region34: #{transformer_forward.16} parent=0 // pred_check
    _
  $region35: #{transformer_forward.16} parent=0 // pred_check_branch
    %279 = sbr.rel (0) target = $region37
  $region36: #{transformer_forward.16} parent=0 // pred_region
    _
  $region37: #{transformer_forward.16} parent=0 // pred_fallthru
    _

// kernel: transformer_forward.25
$region0: #{transformer_forward.25}
  #allocation0 [shape = 'u32[]', space=smem, size = 0x4, offset = 0x4, fixed_abs, tag = 'smem constant byte address 0x4 - core index']
  #allocation1 [shape = 'u32[72,128]{1,0:T(1,128)}', space=vmem, size = 0x9000, scoped, tag = 'internal scratch']
  #allocation2 [shape = 'f32[16,512]{1,0:T(8,128)}', space=vmem, size = 0x8000, scoped, tag = 'scratch operand']
  %s0 = inlined_call_operand.vmem [shape: f32[16,32], index: 0, kind: input, shape index: {}]
  %s1 = inlined_call_operand.vmem [shape: bf16[32,512], index: 1, kind: input, shape index: {}]
  %s2 = inlined_call_operand.vmem [shape: f32[16,512], index: 2, kind: output, shape index: {}]
  %s3 = sld [smem:[#allocation0]]
  $region26: #{transformer_forward.25} parent=0
    _
  %s5 = ssub.s32 1, %s3
  %s6 = scalar_select 0, %s5, %s3
  // Predicated region
  $region2: #{transformer_forward.25} parent=0 // pred_check
    _
  $region3: #{transformer_forward.25} parent=0 // pred_check_branch
    %8 = sbr.rel (0) target = $region5
  $region4: #{transformer_forward.25} parent=0 // pred_region
    _
  $region5: #{transformer_forward.25} parent=0 // pred_fallthru
    _
  // Predicated region
  $region6: #{transformer_forward.25} parent=0 // pred_check
    _
  $region7: #{transformer_forward.25} parent=0 // pred_check_branch
    %10 = sbr.rel (0) target = $region9
  $region8: #{transformer_forward.25} parent=0 // pred_region
    _
  $region9: #{transformer_forward.25} parent=0 // pred_fallthru
    _
  %p12 = scmp.eq.s32.totalorder 0, 0
  // Predicated region
  $region10: #{transformer_forward.25} parent=0 // pred_check
    %p13 = pneg %p12
  $region11: #{transformer_forward.25} parent=0 // pred_check_branch
    %15 = sbr.rel (%p13) target = $region13
  $region12: #{transformer_forward.25} parent=0 // pred_region
    %16 = vst [vmem:[#allocation2] sm:$0xff] 0.0
    %17 = vst [vmem:[#allocation2 + $0x8] sm:$0xff] 0.0
    %18 = vst [vmem:[#allocation2 + $0x10] sm:$0xff] 0.0
    %19 = vst [vmem:[#allocation2 + $0x18] sm:$0xff] 0.0
    %20 = vst [vmem:[#allocation2 + $0x20] sm:$0xff] 0.0
    %21 = vst [vmem:[#allocation2 + $0x28] sm:$0xff] 0.0
    %22 = vst [vmem:[#allocation2 + $0x30] sm:$0xff] 0.0
    %23 = vst [vmem:[#allocation2 + $0x38] sm:$0xff] 0.0
  $region13: #{transformer_forward.25} parent=0 // pred_fallthru
    _
  %v24 = vld [vmem:[#allocation2] sm:$0xff]
  %v25 = vld [vmem:[#allocation2 + $0x8] sm:$0xff]
  %v26 = vld [vmem:[#allocation2 + $0x10] sm:$0xff]
  %v27 = vld [vmem:[#allocation2 + $0x18] sm:$0xff]
  %v28 = vld [vmem:[#allocation2 + $0x20] sm:$0xff]
  %v29 = vld [vmem:[#allocation2 + $0x28] sm:$0xff]
  %v30 = vld [vmem:[#allocation2 + $0x30] sm:$0xff]
  %v31 = vld [vmem:[#allocation2 + $0x38] sm:$0xff]
  %v32 = vld [vmem:[%s0] sm:$0xff]
  %v33 = vld [vmem:[%s0 + $0x8] sm:$0xff]
  %v34 = vpack.c.bf16 %v33, %v32
  %v35 = vld [vmem:[%s1] sm:$0xff]
  %v36 = vld [vmem:[%s1 + $0x8] sm:$0xff]
  %v37 = vld [vmem:[%s1 + $0x10] sm:$0xff]
  %v38 = vld [vmem:[%s1 + $0x18] sm:$0xff]
  %v39 = vld [vmem:[%s1 + $0x20] sm:$0xff]
  %v40 = vld [vmem:[%s1 + $0x28] sm:$0xff]
  %v41 = vld [vmem:[%s1 + $0x30] sm:$0xff]
  %v42 = vld [vmem:[%s1 + $0x38] sm:$0xff]
  %v51 = vunpack.c.l.b16 %v35
  %v52 = vunpack.c.h.b16 %v35
  %v53 = vunpack.c.l.b16 %v36
  %v54 = vunpack.c.h.b16 %v36
  %v55 = vunpack.c.l.b16 %v37
  %v56 = vunpack.c.h.b16 %v37
  %v57 = vunpack.c.l.b16 %v38
  %v58 = vunpack.c.h.b16 %v38
  %v59 = vunpack.c.l.b16 %v39
  %v60 = vunpack.c.h.b16 %v39
  %v61 = vunpack.c.l.b16 %v40
  %v62 = vunpack.c.h.b16 %v40
  %v63 = vunpack.c.l.b16 %v41
  %v64 = vunpack.c.h.b16 %v41
  %v65 = vunpack.c.l.b16 %v42
  %v66 = vunpack.c.h.b16 %v42
  %v67 = vpack.c.b16 %v55, %v51
  %v68 = vpack.c.b16 %v56, %v52
  %v69 = vpack.c.b16 %v57, %v53
  %v70 = vpack.c.b16 %v58, %v54
  %v71 = vpack.c.b16 %v63, %v59
  %v72 = vpack.c.b16 %v64, %v60
  %v73 = vpack.c.b16 %v65, %v61
  %v74 = vpack.c.b16 %v66, %v62
  %vm83 = vcmask 261120
  %v85 = vsel %vm83, %v34, 0
  %87 = vmatpush.bf16.msra.mxu0 0
  %88 = vmatpush.bf16.msra.mxu0 0
  %89 = vmatpush.bf16.msra.mxu0 0
  %90 = vmatpush.bf16.msra.mxu0 0
  %91 = vmatpush.bf16.msra.mxu0 0
  %92 = vmatpush.bf16.msra.mxu0 0
  %93 = vmatpush.bf16.msra.mxu0 %v71
  %94 = vmatpush.bf16.msra.mxu0 %v67
  %95 = vmatmul.bf16.gmra.mxu0 %v85
  %v96 = vpop.f32.mrf.mxu0
  %v97 = vadd.f32 0.0, %v96
  %v98 = vpop.f32.mrf.mxu0
  %v99 = vadd.f32 0.0, %v98
  %100 = vdwg.mxu0
  %101 = vmatpush.bf16.msra.mxu0 0
  %102 = vmatpush.bf16.msra.mxu0 0
  %103 = vmatpush.bf16.msra.mxu0 0
  %104 = vmatpush.bf16.msra.mxu0 0
  %105 = vmatpush.bf16.msra.mxu0 0
  %106 = vmatpush.bf16.msra.mxu0 0
  %107 = vmatpush.bf16.msra.mxu0 %v72
  %108 = vmatpush.bf16.msra.mxu0 %v68
  %109 = vmatmul.bf16.gmra.mxu0 %v85
  %v110 = vpop.f32.mrf.mxu0
  %v111 = vadd.f32 0.0, %v110
  %v112 = vpop.f32.mrf.mxu0
  %v113 = vadd.f32 0.0, %v112
  %114 = vdwg.mxu0
  %115 = vmatpush.bf16.msra.mxu0 0
  %116 = vmatpush.bf16.msra.mxu0 0
  %117 = vmatpush.bf16.msra.mxu0 0
  %118 = vmatpush.bf16.msra.mxu0 0
  %119 = vmatpush.bf16.msra.mxu0 0
  %120 = vmatpush.bf16.msra.mxu0 0
  %121 = vmatpush.bf16.msra.mxu0 %v73
  %122 = vmatpush.bf16.msra.mxu0 %v69
  %123 = vmatmul.bf16.gmra.mxu0 %v85
  %v124 = vpop.f32.mrf.mxu0
  %v125 = vadd.f32 0.0, %v124
  %v126 = vpop.f32.mrf.mxu0
  %v127 = vadd.f32 0.0, %v126
  %128 = vdwg.mxu0
  %129 = vmatpush.bf16.msra.mxu0 0
  %130 = vmatpush.bf16.msra.mxu0 0
  %131 = vmatpush.bf16.msra.mxu0 0
  %132 = vmatpush.bf16.msra.mxu0 0
  %133 = vmatpush.bf16.msra.mxu0 0
  %134 = vmatpush.bf16.msra.mxu0 0
  %135 = vmatpush.bf16.msra.mxu0 %v74
  %136 = vmatpush.bf16.msra.mxu0 %v70
  %137 = vmatmul.bf16.gmra.mxu0 %v85
  %v138 = vpop.f32.mrf.mxu0
  %v139 = vadd.f32 0.0, %v138
  %v140 = vpop.f32.mrf.mxu0
  %v141 = vadd.f32 0.0, %v140
  %142 = vdwg.mxu0
  %v143 = vadd.f32 %v24, %v97
  %v144 = vadd.f32 %v25, %v111
  %v145 = vadd.f32 %v26, %v125
  %v146 = vadd.f32 %v27, %v139
  %v147 = vadd.f32 %v28, %v99
  %v148 = vadd.f32 %v29, %v113
  %v149 = vadd.f32 %v30, %v127
  %v150 = vadd.f32 %v31, %v141
  %151 = vst [vmem:[#allocation2] sm:$0xff] %v143
  %152 = vst [vmem:[#allocation2 + $0x8] sm:$0xff] %v144
  %153 = vst [vmem:[#allocation2 + $0x10] sm:$0xff] %v145
  %154 = vst [vmem:[#allocation2 + $0x18] sm:$0xff] %v146
  %155 = vst [vmem:[#allocation2 + $0x20] sm:$0xff] %v147
  %156 = vst [vmem:[#allocation2 + $0x28] sm:$0xff] %v148
  %157 = vst [vmem:[#allocation2 + $0x30] sm:$0xff] %v149
  %158 = vst [vmem:[#allocation2 + $0x38] sm:$0xff] %v150
  // Predicated region
  $region14: #{transformer_forward.25} parent=0 // pred_check
    %p159 = pneg %p12
  $region15: #{transformer_forward.25} parent=0 // pred_check_branch
    %161 = sbr.rel (%p159) target = $region17
  $region16: #{transformer_forward.25} parent=0 // pred_region
    %v162 = vld [vmem:[#allocation2] sm:$0xff]
    %v163 = vld [vmem:[#allocation2 + $0x8] sm:$0xff]
    %v164 = vld [vmem:[#allocation2 + $0x10] sm:$0xff]
    %v165 = vld [vmem:[#allocation2 + $0x18] sm:$0xff]
    %v166 = vld [vmem:[#allocation2 + $0x20] sm:$0xff]
    %v167 = vld [vmem:[#allocation2 + $0x28] sm:$0xff]
    %v168 = vld [vmem:[#allocation2 + $0x30] sm:$0xff]
    %v169 = vld [vmem:[#allocation2 + $0x38] sm:$0xff]
    %170 = vst [vmem:[%s2] sm:$0xff] %v162
    %171 = vst [vmem:[%s2 + $0x8] sm:$0xff] %v163
    %172 = vst [vmem:[%s2 + $0x10] sm:$0xff] %v164
    %173 = vst [vmem:[%s2 + $0x18] sm:$0xff] %v165
    %174 = vst [vmem:[%s2 + $0x20] sm:$0xff] %v166
    %175 = vst [vmem:[%s2 + $0x28] sm:$0xff] %v167
    %176 = vst [vmem:[%s2 + $0x30] sm:$0xff] %v168
    %177 = vst [vmem:[%s2 + $0x38] sm:$0xff] %v169
  $region17: #{transformer_forward.25} parent=0 // pred_fallthru
    _
  // Predicated region
  $region18: #{transformer_forward.25} parent=0 // pred_check
    _
  $region19: #{transformer_forward.25} parent=0 // pred_check_branch
    %179 = sbr.rel (0) target = $region21
  $region20: #{transformer_forward.25} parent=0 // pred_region
    _
  $region21: #{transformer_forward.25} parent=0 // pred_fallthru
    _
  // Predicated region
  $region22: #{transformer_forward.25} parent=0 // pred_check
    _
  $region23: #{transformer_forward.25} parent=0 // pred_check_branch
    %181 = sbr.rel (0) target = $region25
  $region24: #{transformer_forward.25} parent=0 // pred_region
    _
  $region25: #{transformer_forward.25} parent=0 // pred_fallthru
    _

// kernel: transformer_forward.24
$region0: #{transformer_forward.24}
  #allocation0 [shape = 'u32[]', space=smem, size = 0x4, offset = 0x4, fixed_abs, tag = 'smem constant byte address 0x4 - core index']
  #allocation1 [shape = 'u32[72,128]{1,0:T(1,128)}', space=vmem, size = 0x9000, scoped, tag = 'internal scratch']
  #allocation2 [shape = 'f32[16,32]{1,0:T(8,128)}', space=vmem, size = 0x2000, scoped, tag = 'scratch operand']
  %s0 = inlined_call_operand.vmem [shape: f32[16,32], index: 0, kind: input, shape index: {}]
  %s1 = inlined_call_operand.vmem [shape: bf16[32,64], index: 1, kind: input, shape index: {}]
  %s2 = inlined_call_operand.vmem [shape: f32[1,64], index: 2, kind: input, shape index: {}]
  %s3 = inlined_call_operand.vmem [shape: bf16[64,32], index: 3, kind: input, shape index: {}]
  %s4 = inlined_call_operand.vmem [shape: f32[1,32], index: 4, kind: input, shape index: {}]
  %s5 = inlined_call_operand.vmem [shape: f32[16,32], index: 5, kind: output, shape index: {}]
  %s6 = sld [smem:[#allocation0]]
  $region38: #{transformer_forward.24} parent=0
    _
  %s8 = ssub.s32 1, %s6
  %s9 = scalar_select 0, %s8, %s6
  // Predicated region
  $region2: #{transformer_forward.24} parent=0 // pred_check
    _
  $region3: #{transformer_forward.24} parent=0 // pred_check_branch
    %11 = sbr.rel (0) target = $region5
  $region4: #{transformer_forward.24} parent=0 // pred_region
    _
  $region5: #{transformer_forward.24} parent=0 // pred_fallthru
    _
  // Predicated region
  $region6: #{transformer_forward.24} parent=0 // pred_check
    _
  $region7: #{transformer_forward.24} parent=0 // pred_check_branch
    %13 = sbr.rel (0) target = $region9
  $region8: #{transformer_forward.24} parent=0 // pred_region
    _
  $region9: #{transformer_forward.24} parent=0 // pred_fallthru
    _
  // Predicated region
  $region10: #{transformer_forward.24} parent=0 // pred_check
    _
  $region11: #{transformer_forward.24} parent=0 // pred_check_branch
    %15 = sbr.rel (0) target = $region13
  $region12: #{transformer_forward.24} parent=0 // pred_region
    _
  $region13: #{transformer_forward.24} parent=0 // pred_fallthru
    _
  // Predicated region
  $region14: #{transformer_forward.24} parent=0 // pred_check
    _
  $region15: #{transformer_forward.24} parent=0 // pred_check_branch
    %17 = sbr.rel (0) target = $region17
  $region16: #{transformer_forward.24} parent=0 // pred_region
    _
  $region17: #{transformer_forward.24} parent=0 // pred_fallthru
    _
  // Predicated region
  $region18: #{transformer_forward.24} parent=0 // pred_check
    _
  $region19: #{transformer_forward.24} parent=0 // pred_check_branch
    %19 = sbr.rel (0) target = $region21
  $region20: #{transformer_forward.24} parent=0 // pred_region
    _
  $region21: #{transformer_forward.24} parent=0 // pred_fallthru
    _
  %p21 = scmp.eq.s32.totalorder 0, 0
  // Predicated region
  $region22: #{transformer_forward.24} parent=0 // pred_check
    %p22 = pneg %p21
  $region23: #{transformer_forward.24} parent=0 // pred_check_branch
    %24 = sbr.rel (%p22) target = $region25
  $region24: #{transformer_forward.24} parent=0 // pred_region
    %vm25 = vcmask 261120
    %26 = vst.msk [vmem:[#allocation2] sm:$0xff] %vm25, 0.0
    %27 = vst.msk [vmem:[#allocation2 + $0x8] sm:$0xff] %vm25, 0.0
  $region25: #{transformer_forward.24} parent=0 // pred_fallthru
    _
  %v28 = vld [vmem:[%s0] sm:$0xff]
  %v29 = vld [vmem:[%s0 + $0x8] sm:$0xff]
  %v30 = vpack.c.bf16 %v29, %v28
  %v31 = vld [vmem:[%s1] sm:$0xf]
  %v32 = vld [vmem:[%s1 + $0x4] sm:$0xf]
  %v33 = vld [vmem:[%s1 + $0x8] sm:$0xf]
  %v34 = vld [vmem:[%s1 + $0xc] sm:$0xf]
  %v35 = vld [vmem:[%s2] sm:$0x1]
  %v37 = vperm.slane %v35, 0
  %v43 = vunpack.c.l.b16 %v31
  %v44 = vunpack.c.l.b16 %v32
  %v45 = vunpack.c.l.b16 %v33
  %v46 = vunpack.c.l.b16 %v34
  %v47 = vpack.c.b16 %v44, %v43
  %v48 = vpack.c.b16 %v46, %v45
  %vm51 = vcmask 261120
  %v53 = vsel %vm51, %v30, 0
  %55 = vmatpush.bf16.msra.mxu0 0
  %56 = vmatpush.bf16.msra.mxu0 0
  %57 = vmatpush.bf16.msra.mxu0 0
  %58 = vmatpush.bf16.msra.mxu0 0
  %59 = vmatpush.bf16.msra.mxu0 0
  %60 = vmatpush.bf16.msra.mxu0 0
  %61 = vmatpush.bf16.msra.mxu0 %v48
  %62 = vmatpush.bf16.msra.mxu0 %v47
  %63 = vmatmul.bf16.gmra.mxu0 %v53
  %v64 = vpop.f32.mrf.mxu0
  %v65 = vadd.f32 %v37, %v64
  %v66 = vpop.f32.mrf.mxu0
  %v67 = vadd.f32 %v37, %v66
  %68 = vdwg.mxu0
  %v69 = vmax.f32 %v65, 0.0
  %v70 = vmax.f32 %v67, 0.0
  %v71 = vpack.c.bf16 %v70, %v69
  %v72 = vld [vmem:[#allocation2] sm:$0xff]
  %v73 = vld [vmem:[#allocation2 + $0x8] sm:$0xff]
  %v74 = vld [vmem:[%s3] sm:$0xf]
  %v75 = vld [vmem:[%s3 + $0x4] sm:$0xf]
  %v76 = vld [vmem:[%s3 + $0x8] sm:$0xf]
  %v77 = vld [vmem:[%s3 + $0xc] sm:$0xf]
  %v78 = vld [vmem:[%s3 + $0x10] sm:$0xf]
  %v79 = vld [vmem:[%s3 + $0x14] sm:$0xf]
  %v80 = vld [vmem:[%s3 + $0x18] sm:$0xf]
  %v81 = vld [vmem:[%s3 + $0x1c] sm:$0xf]
  %v90 = vunpack.c.l.b16 %v74
  %v91 = vunpack.c.l.b16 %v75
  %v92 = vunpack.c.l.b16 %v76
  %v93 = vunpack.c.l.b16 %v77
  %v94 = vunpack.c.l.b16 %v78
  %v95 = vunpack.c.l.b16 %v79
  %v96 = vunpack.c.l.b16 %v80
  %v97 = vunpack.c.l.b16 %v81
  %v98 = vpack.c.b16 %v91, %v90
  %v99 = vpack.c.b16 %v93, %v92
  %v100 = vpack.c.b16 %v95, %v94
  %v101 = vpack.c.b16 %v97, %v96
  %vm106 = vcmask 523264
  %v108 = vsel %vm106, %v71, 0
  %110 = vmatpush.bf16.msra.mxu0 0
  %111 = vmatpush.bf16.msra.mxu0 0
  %112 = vmatpush.bf16.msra.mxu0 0
  %113 = vmatpush.bf16.msra.mxu0 0
  %114 = vmatpush.bf16.msra.mxu0 %v101
  %115 = vmatpush.bf16.msra.mxu0 %v100
  %116 = vmatpush.bf16.msra.mxu0 %v99
  %117 = vmatpush.bf16.msra.mxu0 %v98
  %118 = vmatmul.bf16.gmra.mxu0 %v108
  %v119 = vpop.f32.mrf.mxu0
  %v120 = vadd.f32 0.0, %v119
  %v121 = vpop.f32.mrf.mxu0
  %v122 = vadd.f32 0.0, %v121
  %123 = vdwg.mxu0
  %v124 = vadd.f32 %v72, %v120
  %v125 = vadd.f32 %v73, %v122
  %126 = vst.msk [vmem:[#allocation2] sm:$0xff] %vm51, %v124
  %127 = vst.msk [vmem:[#allocation2 + $0x8] sm:$0xff] %vm51, %v125
  // Predicated region
  $region26: #{transformer_forward.24} parent=0 // pred_check
    %p128 = pneg %p21
  $region27: #{transformer_forward.24} parent=0 // pred_check_branch
    %130 = sbr.rel (%p128) target = $region29
  $region28: #{transformer_forward.24} parent=0 // pred_region
    %v131 = vld [vmem:[#allocation2] sm:$0xff]
    %v132 = vld [vmem:[#allocation2 + $0x8] sm:$0xff]
    %v133 = vld [vmem:[%s4] sm:$0x1]
    %v135 = vperm.slane %v133, 0
    %v137 = vadd.f32 %v131, %v135
    %v138 = vadd.f32 %v132, %v135
    %v139 = vadd.f32 %v137, %v28
    %v140 = vadd.f32 %v138, %v29
    %v141 = vsel %vm51, %v139, 0.0
    %142 = vadd.xlane.f32.xlu0 %v141
    %v143 = vpop.xlane.xlu0 %142
    %v144 = vsel %vm51, %v140, 0.0
    %145 = vadd.xlane.f32.xlu0 %v144
    %v146 = vpop.xlane.xlu0 %145
    %v147 = vrcp.pop 32.0
    %v148 = vmul.f32 32.0, %v147
    %v149 = vsub.f32 1.0, %v148
    %v150 = vmul.f32 %v147, %v149
    %v151 = vadd.f32 %v147, %v150
    %vm152 = vweird.f32 %v147
    %v153 = vsel %vm152, %v147, %v151
    %v154 = vmul.f32 %v143, %v153
    %v155 = vmul.f32 %v146, %v153
    %v156 = vsub.f32 %v139, %v154
    %v157 = vsub.f32 %v140, %v155
    %v158 = vmul.f32 %v156, %v156
    %v159 = vmul.f32 %v157, %v157
    %v160 = vsel %vm51, %v158, 0.0
    %161 = vadd.xlane.f32.xlu0 %v160
    %v162 = vpop.xlane.xlu0 %161
    %v163 = vsel %vm51, %v159, 0.0
    %164 = vadd.xlane.f32.xlu0 %v163
    %v165 = vpop.xlane.xlu0 %164
    %v166 = vmul.f32 %v162, %v153
    %v167 = vmul.f32 %v165, %v153
    %v168 = vadd.f32 %v166, 1e-05
    %v169 = vadd.f32 %v167, 1e-05
    %v170 = vrsqrt.pop %v168
    %v171 = vmul.f32 %v170, %v168
    %v172 = vmul.f32 %v171, %v170
    %v173 = vmul.f32 0.5, %v172
    %v174 = vsub.f32 1.5, %v173
    %v175 = vmul.f32 %v170, %v174
    %vm176 = vweird.f32 %v168
    %vm177 = vweird.f32 %v170
    %vm178 = vmor %vm176, %vm177
    %v179 = vsel %vm178, %v170, %v175
    %v180 = vrsqrt.pop %v169
    %v181 = vmul.f32 %v180, %v169
    %v182 = vmul.f32 %v181, %v180
    %v183 = vmul.f32 0.5, %v182
    %v184 = vsub.f32 1.5, %v183
    %v185 = vmul.f32 %v180, %v184
    %vm186 = vweird.f32 %v169
    %vm187 = vweird.f32 %v180
    %vm188 = vmor %vm186, %vm187
    %v189 = vsel %vm188, %v180, %v185
    %v190 = vmul.f32 %v156, %v179
    %v191 = vmul.f32 %v157, %v189
    %192 = vst.msk [vmem:[%s5] sm:$0xff] %vm51, %v190
    %193 = vst.msk [vmem:[%s5 + $0x8] sm:$0xff] %vm51, %v191
  $region29: #{transformer_forward.24} parent=0 // pred_fallthru
    _
  // Predicated region
  $region30: #{transformer_forward.24} parent=0 // pred_check
    _
  $region31: #{transformer_forward.24} parent=0 // pred_check_branch
    %195 = sbr.rel (0) target = $region33
  $region32: #{transformer_forward.24} parent=0 // pred_region
    _
  $region33: #{transformer_forward.24} parent=0 // pred_fallthru
    _
  // Predicated region
  $region34: #{transformer_forward.24} parent=0 // pred_check
    _
  $region35: #{transformer_forward.24} parent=0 // pred_check_branch
    %197 = sbr.rel (0) target = $region37
  $region36: #{transformer_forward.24} parent=0 // pred_region
    _
  $region37: #{transformer_forward.24} parent=0 // pred_fallthru
    _

// kernel: transformer_forward.22
$region0: #{transformer_forward.22}
  #allocation0 [shape = 'u32[]', space=smem, size = 0x4, offset = 0x4, fixed_abs, tag = 'smem constant byte address 0x4 - core index']
  #allocation1 [shape = 'u32[72,128]{1,0:T(1,128)}', space=vmem, size = 0x9000, scoped, tag = 'internal scratch']
  %s0 = inlined_call_operand.vmem [shape: bf16[2,2,8,8], index: 0, kind: input, shape index: {}]
  %s1 = inlined_call_operand.vmem [shape: bf16[2,2,16,8], index: 1, kind: input, shape index: {}]
  %s2 = inlined_call_operand.vmem [shape: bf16[2,2,16,8], index: 2, kind: input, shape index: {}]
  %s3 = inlined_call_operand.vmem [shape: bf16[2,2,8,8], index: 3, kind: output, shape index: {0}]
  %s4 = inlined_call_operand.hbm [shape: f32[2,2,8,16], index: 4, kind: output, shape index: {1}]
  %5 = xla_tuple %s3, %s4
  %s6 = sld [smem:[#allocation0]]
  $region53: #{transformer_forward.22} parent=0
    _
  %s8 = ssub.s32 1, %s6
  %s9 = scalar_select 0, %s8, %s6
  $region1: #{transformer_forward.22} parent=0
    #allocation2 [shape = 'u8[16384]{0}', space=vmem, size = 0x4000, scoped, tag = 'output window, operand 1']
    #allocation3 [shape = 's32[2]{0}', space=sflag, size = 0x8, scoped, tag = 'scoped memory for transformer_forward.22']
    %10 = vsyncpa [#allocation3], 0
    %s11 = scalar_lea.sflag [#allocation3], 1
    %12 = vsyncpa %s11, 0
    loop: start=0, step=1, limit=4
    $region2: #{transformer_forward.22} parent=1 // loop_pre_header
      _
    $region3: #{transformer_forward.22} parent=1 // loop_header
      %s14 = sphi 0, %s18
      %p15 = scmp.ge.s32.totalorder %s14, 4
      %s21 = sphi 0, %s33
      %s22 = sphi 0, %s29
      %s23 = sphi 0, %s21
      %s24 = sphi 0, %s22
      %s25 = sphi 0, %s23
      %s26 = sphi 0, %s24
      %s38 = sphi 0, %s40
      %s41 = sphi 0, %s38
      %s42 = sphi 0, %s41
      %s58 = sphi 0, %s42
      %s66 = sphi 0, %s68
      %s69 = sphi 0, %s66
      %s70 = sphi 0, %s69
      %s86 = sphi 0, %s70
      %s94 = sphi 0, %s96
      %s97 = sphi 0, %s94
      %s98 = sphi 0, %s97
      %s114 = sphi 0, %s98
      %s122 = sphi 0, %s124
      %s125 = sphi 0, %s122
      %s126 = sphi 0, %s125
      %s142 = sphi 0, %s126
      %s150 = sphi 0, %s152
      %s153 = sphi 0, %s150
      %s154 = sphi 0, %s153
      %s170 = sphi 0, %s154
    $region4: #{transformer_forward.22} parent=1 // loop_header_branch
      %17 = sbr.rel (%p15) target = $region8
    $region5: #{transformer_forward.22} parent=1 // loop_body
      %s19 = ssub.s32 %s14, 1
      %s20 = ssub.s32 %s14, 2
      %s27 = sadd.s32 1, %s22
      %p28 = scmp.ge.s32.totalorder %s27, 1
      %s29 = scalar_select %p28, 0, %s27
      %s30 = sadd.s32 1, %s21
      %s31 = scalar_select %p28, %s30, %s21
      %p32 = scmp.ge.s32.totalorder %s31, 2
      %s33 = scalar_select %p32, 0, %s31
      %s34 = ssub.s32 %s21, %s33
      %s35 = ssub.s32 %s22, %s29
      %s36 = sor.u32 %s34, %s35
      %p37 = scmp.eq.s32.totalorder %s36, 0
      %s39 = sadd.s32 %s38, 1
      %s40 = scalar_select %p37, %s38, %s39
      %p43 = pneg %p37
      %p44 = scmp.eq.s32.totalorder %s14, 1
      %p45 = por %p43, %p44
      %p46 = scmp.ne.s32.totalorder %s38, %s41
      %p47 = scmp.eq.s32.totalorder %s14, 0
      %p48 = por %p46, %p47
      %p49 = scmp.ne.s32.totalorder %s38, %s41
      %p50 = scmp.eq.s32.totalorder %s19, 1
      %p51 = por %p49, %p50
      %p52 = scmp.ne.s32.totalorder %s41, %s42
      %p53 = scmp.eq.s32.totalorder %s19, 0
      %p54 = por %p52, %p53
      %p55 = scmp.ne.s32.totalorder %s41, %s42
      %p56 = scmp.eq.s32.totalorder %s20, 1
      %p57 = por %p55, %p56
      %p59 = scmp.ne.s32.totalorder %s42, %s58
      %p60 = scmp.eq.s32.totalorder %s20, 0
      %p61 = por %p59, %p60
      %s62 = ssub.s32 %s21, %s33
      %s63 = ssub.s32 %s22, %s29
      %s64 = sor.u32 %s62, %s63
      %p65 = scmp.eq.s32.totalorder %s64, 0
      %s67 = sadd.s32 %s66, 1
      %s68 = scalar_select %p65, %s66, %s67
      %p71 = pneg %p65
      %p72 = scmp.eq.s32.totalorder %s14, 1
      %p73 = por %p71, %p72
      %p74 = scmp.ne.s32.totalorder %s66, %s69
      %p75 = scmp.eq.s32.totalorder %s14, 0
      %p76 = por %p74, %p75
      %p77 = scmp.ne.s32.totalorder %s66, %s69
      %p78 = scmp.eq.s32.totalorder %s19, 1
      %p79 = por %p77, %p78
      %p80 = scmp.ne.s32.totalorder %s69, %s70
      %p81 = scmp.eq.s32.totalorder %s19, 0
      %p82 = por %p80, %p81
      %p83 = scmp.ne.s32.totalorder %s69, %s70
      %p84 = scmp.eq.s32.totalorder %s20, 1
      %p85 = por %p83, %p84
      %p87 = scmp.ne.s32.totalorder %s70, %s86
      %p88 = scmp.eq.s32.totalorder %s20, 0
      %p89 = por %p87, %p88
      %s90 = ssub.s32 %s21, %s33
      %s91 = ssub.s32 %s22, %s29
      %s92 = sor.u32 %s90, %s91
      %p93 = scmp.eq.s32.totalorder %s92, 0
      %s95 = sadd.s32 %s94, 1
      %s96 = scalar_select %p93, %s94, %s95
      %p99 = pneg %p93
      %p100 = scmp.eq.s32.totalorder %s14, 1
      %p101 = por %p99, %p100
      %p102 = scmp.ne.s32.totalorder %s94, %s97
      %p103 = scmp.eq.s32.totalorder %s14, 0
      %p104 = por %p102, %p103
      %p105 = scmp.ne.s32.totalorder %s94, %s97
      %p106 = scmp.eq.s32.totalorder %s19, 1
      %p107 = por %p105, %p106
      %p108 = scmp.ne.s32.totalorder %s97, %s98
      %p109 = scmp.eq.s32.totalorder %s19, 0
      %p110 = por %p108, %p109
      %p111 = scmp.ne.s32.totalorder %s97, %s98
      %p112 = scmp.eq.s32.totalorder %s20, 1
      %p113 = por %p111, %p112
      %p115 = scmp.ne.s32.totalorder %s98, %s114
      %p116 = scmp.eq.s32.totalorder %s20, 0
      %p117 = por %p115, %p116
      %s118 = ssub.s32 %s21, %s33
      %s119 = ssub.s32 %s22, %s29
      %s120 = sor.u32 %s118, %s119
      %p121 = scmp.eq.s32.totalorder %s120, 0
      %s123 = sadd.s32 %s122, 1
      %s124 = scalar_select %p121, %s122, %s123
      %p127 = pneg %p121
      %p128 = scmp.eq.s32.totalorder %s14, 1
      %p129 = por %p127, %p128
      %p130 = scmp.ne.s32.totalorder %s122, %s125
      %p131 = scmp.eq.s32.totalorder %s14, 0
      %p132 = por %p130, %p131
      %p133 = scmp.ne.s32.totalorder %s122, %s125
      %p134 = scmp.eq.s32.totalorder %s19, 1
      %p135 = por %p133, %p134
      %p136 = scmp.ne.s32.totalorder %s125, %s126
      %p137 = scmp.eq.s32.totalorder %s19, 0
      %p138 = por %p136, %p137
      %p139 = scmp.ne.s32.totalorder %s125, %s126
      %p140 = scmp.eq.s32.totalorder %s20, 1
      %p141 = por %p139, %p140
      %p143 = scmp.ne.s32.totalorder %s126, %s142
      %p144 = scmp.eq.s32.totalorder %s20, 0
      %p145 = por %p143, %p144
      %s146 = ssub.s32 %s21, %s33
      %s147 = ssub.s32 %s22, %s29
      %s148 = sor.u32 %s146, %s147
      %p149 = scmp.eq.s32.totalorder %s148, 0
      %s151 = sadd.s32 %s150, 1
      %s152 = scalar_select %p149, %s150, %s151
      %p155 = pneg %p149
      %p156 = scmp.eq.s32.totalorder %s14, 1
      %p157 = por %p155, %p156
      %p158 = scmp.ne.s32.totalorder %s150, %s153
      %p159 = scmp.eq.s32.totalorder %s14, 0
      %p160 = por %p158, %p159
      %p161 = scmp.ne.s32.totalorder %s150, %s153
      %p162 = scmp.eq.s32.totalorder %s19, 1
      %p163 = por %p161, %p162
      %p164 = scmp.ne.s32.totalorder %s153, %s154
      %p165 = scmp.eq.s32.totalorder %s19, 0
      %p166 = por %p164, %p165
      %p167 = scmp.ne.s32.totalorder %s153, %s154
      %p168 = scmp.eq.s32.totalorder %s20, 1
      %p169 = por %p167, %p168
      %p171 = scmp.ne.s32.totalorder %s154, %s170
      %p172 = scmp.eq.s32.totalorder %s20, 0
      %p173 = por %p171, %p172
      %p174 = scmp.le.s32.totalorder 1, %s14
      %p175 = scmp.lt.s32.totalorder %s14, 3
      %p176 = pnand %p174, %p175
      %p177 = pneg %p176
      // Predicated region
      $region9: #{transformer_forward.22} parent=5 // pred_check
        _
      $region10: #{transformer_forward.22} parent=5 // pred_check_branch
        %179 = sbr.rel (%p176) target = $region12
      $region11: #{transformer_forward.22} parent=5 // pred_region
        %s180 = ssub.s32 %s14, 1
      $region12: #{transformer_forward.22} parent=5 // pred_fallthru
        _
      %p181 = scmp.lt.s32.totalorder %s14, 2
      // Predicated region
      $region13: #{transformer_forward.22} parent=5 // pred_check
        %p182 = pneg %p181
      $region14: #{transformer_forward.22} parent=5 // pred_check_branch
        %184 = sbr.rel (%p182) target = $region16
      $region15: #{transformer_forward.22} parent=5 // pred_region
        // Predicated region
        $region17: #{transformer_forward.22} parent=15 // pred_check
          %p185 = pneg %p48
        $region18: #{transformer_forward.22} parent=15 // pred_check_branch
          %187 = sbr.rel (%p185) target = $region20
        $region19: #{transformer_forward.22} parent=15 // pred_region
          %s188 = smul.u32 2, %s22
          %p189 = scmp.lt.s32.totalorder %s21, 1
          %s190 = scalar_select %p189, %s21, 1
          %p191 = scmp.lt.s32.totalorder %s188, 1
          %s192 = scalar_select %p191, %s188, 1
          %s193 = smul.addr %s190, 2
          %s194 = sadd.s32 %s192, %s193
          %s195 = smul.addr %s194, 4
          %s196 = scalar_lea.vmem %s0, %s195
          %s197 = smul.u32 2, %s22
        $region20: #{transformer_forward.22} parent=15 // pred_fallthru
          _
        // Predicated region
        $region21: #{transformer_forward.22} parent=15 // pred_check
          %p198 = pneg %p76
        $region22: #{transformer_forward.22} parent=15 // pred_check_branch
          %200 = sbr.rel (%p198) target = $region24
        $region23: #{transformer_forward.22} parent=15 // pred_region
          %s201 = smul.u32 2, %s22
          %p202 = scmp.lt.s32.totalorder %s21, 1
          %s203 = scalar_select %p202, %s21, 1
          %p204 = scmp.lt.s32.totalorder %s201, 1
          %s205 = scalar_select %p204, %s201, 1
          %s206 = smul.addr %s205, 2
          %s207 = smul.addr %s203, 4
          %s208 = sadd.s32 %s206, %s207
          %s209 = smul.addr %s208, 4
          %s210 = scalar_lea.vmem %s1, %s209
          %s211 = smul.u32 2, %s22
        $region24: #{transformer_forward.22} parent=15 // pred_fallthru
          _
        // Predicated region
        $region25: #{transformer_forward.22} parent=15 // pred_check
          %p212 = pneg %p104
        $region26: #{transformer_forward.22} parent=15 // pred_check_branch
          %214 = sbr.rel (%p212) target = $region28
        $region27: #{transformer_forward.22} parent=15 // pred_region
          %s215 = smul.u32 2, %s22
          %p216 = scmp.lt.s32.totalorder %s21, 1
          %s217 = scalar_select %p216, %s21, 1
          %p218 = scmp.lt.s32.totalorder %s215, 1
          %s219 = scalar_select %p218, %s215, 1
          %s220 = smul.addr %s219, 2
          %s221 = smul.addr %s217, 4
          %s222 = sadd.s32 %s220, %s221
          %s223 = smul.addr %s222, 4
          %s224 = scalar_lea.vmem %s2, %s223
          %s225 = smul.u32 2, %s22
        $region28: #{transformer_forward.22} parent=15 // pred_fallthru
          _
      $region16: #{transformer_forward.22} parent=5 // pred_fallthru
        _
      %p226 = scmp.le.s32.totalorder 1, %s14
      %p227 = scmp.lt.s32.totalorder %s14, 3
      %p228 = pnand %p226, %p227
      %p229 = pneg %p228
      // Predicated region
      $region29: #{transformer_forward.22} parent=5 // pred_check
        _
      $region30: #{transformer_forward.22} parent=5 // pred_check_branch
        %231 = sbr.rel (%p228) target = $region32
      $region31: #{transformer_forward.22} parent=5 // pred_region
        %s232 = ssub.s32 %s14, 1
        %s233 = smul.u32 2, %s24
        %p234 = scmp.lt.s32.totalorder %s23, 1
        %s235 = scalar_select %p234, %s23, 1
        %p236 = scmp.lt.s32.totalorder %s233, 1
        %s237 = scalar_select %p236, %s233, 1
        %s238 = smul.addr %s235, 2
        %s239 = sadd.s32 %s237, %s238
        %s240 = smul.addr %s239, 4
        %s241 = scalar_lea.vmem %s0, %s240
        %p242 = pneg %p54
        %p243 = pneg %p51
        %s244 = smul.u32 2, %s24
        %p245 = scmp.lt.s32.totalorder %s23, 1
        %s246 = scalar_select %p245, %s23, 1
        %p247 = scmp.lt.s32.totalorder %s244, 1
        %s248 = scalar_select %p247, %s244, 1
        %s249 = smul.addr %s248, 2
        %s250 = smul.addr %s246, 4
        %s251 = sadd.s32 %s249, %s250
        %s252 = smul.addr %s251, 4
        %s253 = scalar_lea.vmem %s1, %s252
        %p254 = pneg %p82
        %p255 = pneg %p79
        %s256 = smul.u32 2, %s24
        %p257 = scmp.lt.s32.totalorder %s23, 1
        %s258 = scalar_select %p257, %s23, 1
        %p259 = scmp.lt.s32.totalorder %s256, 1
        %s260 = scalar_select %p259, %s256, 1
        %s261 = smul.addr %s260, 2
        %s262 = smul.addr %s258, 4
        %s263 = sadd.s32 %s261, %s262
        %s264 = smul.addr %s263, 4
        %s265 = scalar_lea.vmem %s2, %s264
        %p266 = pneg %p110
        %p267 = pneg %p107
        %p268 = pneg %p138
        %p269 = pneg %p135
        %s270 = smul.u32 2, %s24
        %p271 = scmp.lt.s32.totalorder %s23, 1
        %s272 = scalar_select %p271, %s23, 1
        %p273 = scmp.lt.s32.totalorder %s270, 1
        %s274 = scalar_select %p273, %s270, 1
        %s275 = smul.addr %s272, 2
        %s276 = sadd.s32 %s274, %s275
        %s277 = smul.addr %s276, 4
        %s278 = scalar_lea.vmem %s3, %s277
        %p279 = pneg %p166
        %p280 = pneg %p163
        %s281 = sand.u32 %s153, 1
        %s282 = scalar_lea.sflag [#allocation3], %s281
        %s283 = sand.u32 %s153, 1
        %s284 = smul.addr %s283, 16
        %s285 = scalar_lea.vmem [#allocation2], %s284
        %s286 = smul.u32 2, %s24
        %p287 = scmp.lt.s32.totalorder %s23, 1
        %s288 = scalar_select %p287, %s23, 1
        %p289 = scmp.lt.s32.totalorder %s286, 1
        %s290 = scalar_select %p289, %s286, 1
        %s291 = smul.addr %s288, 2
        %s292 = sadd.s32 %s290, %s291
        %s293 = smul.addr %s292, 4
        %s294 = scalar_lea.vmem %s0, %s293
        %s295 = smul.u32 2, %s24
        %s296 = smul.u32 2, %s24
        %p297 = scmp.lt.s32.totalorder %s23, 1
        %s298 = scalar_select %p297, %s23, 1
        %p299 = scmp.lt.s32.totalorder %s296, 1
        %s300 = scalar_select %p299, %s296, 1
        %s301 = smul.addr %s300, 2
        %s302 = smul.addr %s298, 4
        %s303 = sadd.s32 %s301, %s302
        %s304 = smul.addr %s303, 4
        %s305 = scalar_lea.vmem %s1, %s304
        %s306 = smul.u32 2, %s24
        %s307 = smul.u32 2, %s24
        %p308 = scmp.lt.s32.totalorder %s23, 1
        %s309 = scalar_select %p308, %s23, 1
        %p310 = scmp.lt.s32.totalorder %s307, 1
        %s311 = scalar_select %p310, %s307, 1
        %s312 = smul.addr %s311, 2
        %s313 = smul.addr %s309, 4
        %s314 = sadd.s32 %s312, %s313
        %s315 = smul.addr %s314, 4
        %s316 = scalar_lea.vmem %s2, %s315
        %s317 = smul.u32 2, %s24
        %s318 = smul.u32 2, %s24
        %p319 = scmp.lt.s32.totalorder %s23, 1
        %s320 = scalar_select %p319, %s23, 1
        %p321 = scmp.lt.s32.totalorder %s318, 1
        %s322 = scalar_select %p321, %s318, 1
        %s323 = smul.addr %s320, 2
        %s324 = sadd.s32 %s322, %s323
        %s325 = smul.addr %s324, 4
        %s326 = scalar_lea.vmem %s3, %s325
        %s327 = smul.u32 2, %s24
        %s328 = smul.u32 2, %s24
        %v330 = vld [vmem:[%s294] sm:$0xf]
        %v331 = vld [vmem:[%s294 + $0x4] sm:$0xf]
        %v332 = vld [vmem:[%s305] sm:$0xf]
        %v333 = vld [vmem:[%s305 + $0x4] sm:$0xf]
        %v334 = vld [vmem:[%s305 + $0x8] sm:$0xf]
        %v335 = vld [vmem:[%s305 + $0xc] sm:$0xf]
        %v336 = vld [vmem:[%s316] sm:$0xf]
        %v337 = vld [vmem:[%s316 + $0x4] sm:$0xf]
        %v338 = vld [vmem:[%s316 + $0x8] sm:$0xf]
        %v339 = vld [vmem:[%s316 + $0xc] sm:$0xf]
        %v342 = vunpack.c.l.b16 %v332
        %v343 = vunpack.c.l.b16 %v333
        %v344 = vpack.c.b16 %v343, %v342
        %vm345 = vcmask 64512
        %v347 = vsel %vm345, %v330, 0
        %v350 = vsel %vm345, %v344, 0
        %352 = vmatpush.bf16.xpose.msra.mxu0 0
        %353 = vmatpush.bf16.xpose.msra.mxu0 0
        %354 = vmatpush.bf16.xpose.msra.mxu0 0
        %355 = vmatpush.bf16.xpose.msra.mxu0 0
        %356 = vmatpush.bf16.xpose.msra.mxu0 0
        %357 = vmatpush.bf16.xpose.msra.mxu0 0
        %358 = vmatpush.bf16.xpose.msra.mxu0 0
        %359 = vmatpush.bf16.xpose.msra.mxu0 %v350
        %360 = vmatmul.bf16.gmra.mxu0 %v347
        %v361 = vpop.f32.mrf.mxu0
        %v362 = vadd.f32 0.0, %v361
        %v363 = vpop.f32.mrf.mxu0
        %364 = vdwg.mxu0
        %v367 = vunpack.c.l.b16 %v334
        %v368 = vunpack.c.l.b16 %v335
        %v369 = vpack.c.b16 %v368, %v367
        %v371 = vsel %vm345, %v331, 0
        %v374 = vsel %vm345, %v369, 0
        %376 = vmatpush.bf16.xpose.msra.mxu0 0
        %377 = vmatpush.bf16.xpose.msra.mxu0 0
        %378 = vmatpush.bf16.xpose.msra.mxu0 0
        %379 = vmatpush.bf16.xpose.msra.mxu0 0
        %380 = vmatpush.bf16.xpose.msra.mxu0 0
        %381 = vmatpush.bf16.xpose.msra.mxu0 0
        %382 = vmatpush.bf16.xpose.msra.mxu0 0
        %383 = vmatpush.bf16.xpose.msra.mxu0 %v374
        %384 = vmatmul.bf16.gmra.mxu0 %v371
        %v385 = vpop.f32.mrf.mxu0
        %v386 = vadd.f32 0.0, %v385
        %v387 = vpop.f32.mrf.mxu0
        %388 = vdwg.mxu0
        %v389 = vmul.f32 %v362, 0.35355338
        %v390 = vmul.f32 %v386, 0.35355338
        %vm391 = vcmask 130048
        %v392 = vsel %vm391, %v389, -inf
        %393 = vmax.xlane.f32.xlu0 %v392
        %v394 = vpop.xlane.xlu0 %393
        %v395 = vsel %vm391, %v390, -inf
        %396 = vmax.xlane.f32.xlu0 %v395
        %v397 = vpop.xlane.xlu0 %396
        %v398 = vsub.f32 %v389, %v394
        %v399 = vsub.f32 %v390, %v397
        %v400 = vmul.f32 %v398, 1.442695
        %v401 = vpow.pop %v400
        %v402 = vmul.f32 %v399, 1.442695
        %v403 = vpow.pop %v402
        %v404 = vsel %vm391, %v401, 0.0
        %405 = vadd.xlane.f32.xlu0 %v404
        %v406 = vpop.xlane.xlu0 %405
        %v407 = vsel %vm391, %v403, 0.0
        %408 = vadd.xlane.f32.xlu0 %v407
        %v409 = vpop.xlane.xlu0 %408
        %v410 = vrcp.pop %v406
        %v411 = vrcp.pop %v409
        %v412 = vmul.f32 %v401, %v410
        %v413 = vmul.f32 %v403, %v411
        %v414 = vpack.c.bf16 %v412, %v412
        %v415 = vpack.c.bf16 %v413, %v413
        %v418 = vunpack.c.l.b16 %v336
        %v419 = vunpack.c.l.b16 %v337
        %v420 = vpack.c.b16 %v419, %v418
        %v423 = vsel %vm391, %v414, 0
        %425 = vmatpush.bf16.msra.mxu0 0
        %426 = vmatpush.bf16.msra.mxu0 0
        %427 = vmatpush.bf16.msra.mxu0 0
        %428 = vmatpush.bf16.msra.mxu0 0
        %429 = vmatpush.bf16.msra.mxu0 0
        %430 = vmatpush.bf16.msra.mxu0 0
        %431 = vmatpush.bf16.msra.mxu0 0
        %432 = vmatpush.bf16.msra.mxu0 %v420
        %433 = vmatmul.bf16.gmra.mxu0 %v423
        %v434 = vpop.f32.mrf.mxu0
        %v435 = vadd.f32 0.0, %v434
        %v436 = vpop.f32.mrf.mxu0
        %437 = vdwg.mxu0
        %v440 = vunpack.c.l.b16 %v338
        %v441 = vunpack.c.l.b16 %v339
        %v442 = vpack.c.b16 %v441, %v440
        %v445 = vsel %vm391, %v415, 0
        %447 = vmatpush.bf16.msra.mxu0 0
        %448 = vmatpush.bf16.msra.mxu0 0
        %449 = vmatpush.bf16.msra.mxu0 0
        %450 = vmatpush.bf16.msra.mxu0 0
        %451 = vmatpush.bf16.msra.mxu0 0
        %452 = vmatpush.bf16.msra.mxu0 0
        %453 = vmatpush.bf16.msra.mxu0 0
        %454 = vmatpush.bf16.msra.mxu0 %v442
        %455 = vmatmul.bf16.gmra.mxu0 %v445
        %v456 = vpop.f32.mrf.mxu0
        %v457 = vadd.f32 0.0, %v456
        %v458 = vpop.f32.mrf.mxu0
        %459 = vdwg.mxu0
        %v460 = vpack.c.bf16 %v435, %v435
        %v461 = vpack.c.bf16 %v457, %v457
        %vm462 = vcmask 60416
        %463 = vst.msk [vmem:[%s326] sm:$0xf] %vm462, %v460
        %464 = vst.msk [vmem:[%s326 + $0x4] sm:$0xf] %vm462, %v461
        %465 = vst.msk [vmem:[%s285] sm:$0xff] %vm391, %v412
        %466 = vst.msk [vmem:[%s285 + $0x8] sm:$0xff] %vm391, %v413
        %s467 = smul.u32 2, %s24
        %p468 = scmp.lt.s32.totalorder %s23, 1
        %s469 = scalar_select %p468, %s23, 1
        %p470 = scmp.lt.s32.totalorder %s467, 1
        %s471 = scalar_select %p470, %s467, 1
        %s472 = smul.addr %s469, 2
        %s473 = sadd.s32 %s471, %s472
        %s474 = smul.addr %s473, 4
        %s475 = scalar_lea.vmem %s3, %s474
        %s476 = sand.u32 %s153, 1
        %s477 = scalar_lea.sflag [#allocation3], %s476
        %s478 = sand.u32 %s153, 1
        %s479 = smul.addr %s478, 16
        %s480 = scalar_lea.vmem [#allocation2], %s479
        // Predicated region
        $region33: #{transformer_forward.22} parent=31 // pred_check
          %p481 = pneg %p135
        $region34: #{transformer_forward.22} parent=31 // pred_check_branch
          %483 = sbr.rel (%p481) target = $region36
        $region35: #{transformer_forward.22} parent=31 // pred_region
          %s484 = smul.u32 2, %s24
        $region36: #{transformer_forward.22} parent=31 // pred_fallthru
          _
        // Predicated region
        $region37: #{transformer_forward.22} parent=31 // pred_check
          %p485 = pneg %p163
        $region38: #{transformer_forward.22} parent=31 // pred_check_branch
          %487 = sbr.rel (%p485) target = $region40
        $region39: #{transformer_forward.22} parent=31 // pred_region
          %s488 = smul.u32 2, %s24
          %490 = vsyncadd %s477, 0
          %s491 = smul.addr %s23, 2
          %s492 = sadd.s32 %s488, %s491
          %s493 = smul.addr %s492, 8
          %s494 = scalar_lea.hbm %s4, %s493
          %s495 = sshll.u32 %s480, 4
          %s496 = int_to_ptr.vmem [resolvable:$true] %s495
          %s497 = sshll.u32 %s494, 4
          %s498 = int_to_ptr.hbm [resolvable:$true] %s497
          %503 = dma.vmem_to_hbm [thread:$0]  %s496, 256, %s498, %s477, 128, 128, 8
        $region40: #{transformer_forward.22} parent=31 // pred_fallthru
          _
      $region32: #{transformer_forward.22} parent=5 // pred_fallthru
        _
      %p504 = scmp.le.s32.totalorder 2, %s14
      // Predicated region
      $region41: #{transformer_forward.22} parent=5 // pred_check
        %p505 = pneg %p504
      $region42: #{transformer_forward.22} parent=5 // pred_check_branch
        %507 = sbr.rel (%p505) target = $region44
      $region43: #{transformer_forward.22} parent=5 // pred_region
        %s508 = ssub.s32 %s14, 2
        // Predicated region
        $region45: #{transformer_forward.22} parent=43 // pred_check
          %p509 = pneg %p141
        $region46: #{transformer_forward.22} parent=43 // pred_check_branch
          %511 = sbr.rel (%p509) target = $region48
        $region47: #{transformer_forward.22} parent=43 // pred_region
          %s512 = smul.u32 2, %s26
          %p513 = scmp.lt.s32.totalorder %s25, 1
          %s514 = scalar_select %p513, %s25, 1
          %p515 = scmp.lt.s32.totalorder %s512, 1
          %s516 = scalar_select %p515, %s512, 1
          %s517 = smul.addr %s514, 2
          %s518 = sadd.s32 %s516, %s517
          %s519 = smul.addr %s518, 4
          %s520 = scalar_lea.vmem %s3, %s519
        $region48: #{transformer_forward.22} parent=43 // pred_fallthru
          _
        // Predicated region
        $region49: #{transformer_forward.22} parent=43 // pred_check
          %p521 = pneg %p169
        $region50: #{transformer_forward.22} parent=43 // pred_check_branch
          %523 = sbr.rel (%p521) target = $region52
        $region51: #{transformer_forward.22} parent=43 // pred_region
          %s524 = sand.u32 %s154, 1
          %s525 = scalar_lea.sflag [#allocation3], %s524
          %s526 = sand.u32 %s154, 1
          %s527 = smul.addr %s526, 16
          %s528 = scalar_lea.vmem [#allocation2], %s527
          %530 = dma.done %s525, 256
        $region52: #{transformer_forward.22} parent=43 // pred_fallthru
          _
      $region44: #{transformer_forward.22} parent=5 // pred_fallthru
        _
    $region6: #{transformer_forward.22} parent=1 // loop_footer
      %s18 = sadd.s32 1, %s14
    $region7: #{transformer_forward.22} parent=1 // loop_footer_branch
      %13 = sbr.rel target = $region3
    $region8: #{transformer_forward.22} parent=1 // loop_exit
      _
    %531 = vsyncpa [#allocation3], 1
    %s532 = scalar_lea.sflag [#allocation3], 1
    %533 = vsyncpa %s532, 1

</llo_original>
